<compile_context>
chip_gen: v5e
topology: v5e:2x2
jax: 0.10.0
libtpu: 0.0.40
codegen_flags: <defaults>
</compile_context>

<pallas_src>
import functools
import jax
import jax.numpy as jnp
from jax.experimental import pallas as pl
from jax.experimental.pallas import tpu as pltpu


def _round_up(x, m):
    return ((x + m - 1) // m) * m


def _choose_tm_rows(M):
    """M-tile when M sits on sublanes (standard GEMM layout)."""
    if M <= 512:                       # single grid step for tiny layers
        return max(_round_up(M, 8), 16)
    for tm in (1024, 512, 256, 128, 64, 32, 16):
        if M >= 2 * tm:
            return tm
    return 16


def _choose_tm_lanes(M):
    """M-tile when M sits on lanes (transposed GEMM layout)."""
    if M <= 512:                       # single grid step for tiny layers
        return _round_up(M, 128)
    for tm in (2048, 1024, 512, 256, 128):
        if M >= 2 * tm:
            return tm
    return 128


# ----------------------------- Pallas kernels ------------------------------


def _gemm_act_kernel(p_ref, w_ref, o_ref, *, act):
    """o = act(p @ w) for one (TM, Np) tile; f32 accumulate, o may be bf16."""
    y = jnp.dot(p_ref[...], w_ref[...], preferred_element_type=jnp.float32)
    if act == "leaky":
        y = jnp.where(y >= 0.0, y, 0.2 * y)
    elif act == "sigmoid":
        y = jax.nn.sigmoid(y)
    o_ref[...] = y.astype(o_ref.dtype)


def _gemm_t_act_kernel(wt_ref, pt_ref, o_ref, *, act):
    """Transposed layout: o(Coutp, TM) = act(wt @ pt); M lane-dense."""
    y = jnp.dot(wt_ref[...], pt_ref[...], preferred_element_type=jnp.float32)
    if act == "leaky":
        y = jnp.where(y >= 0.0, y, 0.2 * y)
    elif act == "sigmoid":
        y = jax.nn.sigmoid(y)
    o_ref[...] = y.astype(o_ref.dtype)


def _gemm_stats_kernel(p_ref, w_ref, y_ref, sum_ref, sq_ref):
    """y = p @ w (stored bf16) plus fused per-column f32 sum / sum-of-squares.

    sum/sq map to block (0, 0) every grid step -> stay VMEM-resident and
    accumulate across the (arbitrary) M axis.
    """
    @pl.when(pl.program_id(0) == 0)
    def _():
        sum_ref[...] = jnp.zeros_like(sum_ref)
        sq_ref[...] = jnp.zeros_like(sq_ref)

    y = jnp.dot(p_ref[...], w_ref[...], preferred_element_type=jnp.float32)
    y_ref[...] = y.astype(y_ref.dtype)
    sum_ref[...] += jnp.sum(y, axis=0, keepdims=True)
    sq_ref[...] += jnp.sum(y * y, axis=0, keepdims=True)


def _affine_act_kernel(x_ref, scale_ref, shift_ref, o_ref, *, act):
    y = x_ref[...].astype(jnp.float32) * scale_ref[...] + shift_ref[...]
    if act == "leaky":
        y = jnp.where(y >= 0.0, y, 0.2 * y)
    elif act == "sigmoid":
        y = jax.nn.sigmoid(y)
    o_ref[...] = y.astype(o_ref.dtype)


# ----------------------------- Pallas wrappers ------------------------------


def gemm_act(p, w, *, act, tm, out_dtype):
    Mp, K = p.shape
    _, Np = w.shape
    kern = functools.partial(_gemm_act_kernel, act=act)
    return pl.pallas_call(
        kern,
        out_shape=jax.ShapeDtypeStruct((Mp, Np), out_dtype),
        grid=(Mp // tm,),
        in_specs=[
            pl.BlockSpec((tm, K), lambda i: (i, 0)),
            pl.BlockSpec((K, Np), lambda i: (0, 0)),
        ],
        out_specs=pl.BlockSpec((tm, Np), lambda i: (i, 0)),
        compiler_params=pltpu.CompilerParams(
            dimension_semantics=("parallel",),
        ),
    )(p, w)


def gemm_t_act(wt, pt, *, act, tm, out_dtype):
    """Transposed GEMM: wt (Coutp, K) @ pt (K, Mp) -> (Coutp, Mp)."""
    Coutp, K = wt.shape
    _, Mp = pt.shape
    kern = functools.partial(_gemm_t_act_kernel, act=act)
    return pl.pallas_call(
        kern,
        out_shape=jax.ShapeDtypeStruct((Coutp, Mp), out_dtype),
        grid=(Mp // tm,),
        in_specs=[
            pl.BlockSpec((Coutp, K), lambda i: (0, 0)),
            pl.BlockSpec((K, tm), lambda i: (0, i)),
        ],
        out_specs=pl.BlockSpec((Coutp, tm), lambda i: (0, i)),
        compiler_params=pltpu.CompilerParams(
            dimension_semantics=("parallel",),
        ),
    )(wt, pt)


def gemm_with_stats(p, w, *, tm):
    Mp, K = p.shape
    _, Np = w.shape
    return pl.pallas_call(
        _gemm_stats_kernel,
        out_shape=(
            jax.ShapeDtypeStruct((Mp, Np), jnp.bfloat16),
            jax.ShapeDtypeStruct((1, Np), jnp.float32),
            jax.ShapeDtypeStruct((1, Np), jnp.float32),
        ),
        grid=(Mp // tm,),
        in_specs=[
            pl.BlockSpec((tm, K), lambda i: (i, 0)),
            pl.BlockSpec((K, Np), lambda i: (0, 0)),
        ],
        out_specs=(
            pl.BlockSpec((tm, Np), lambda i: (i, 0)),
            pl.BlockSpec((1, Np), lambda i: (0, 0)),
            pl.BlockSpec((1, Np), lambda i: (0, 0)),
        ),
        compiler_params=pltpu.CompilerParams(
            # sum/sq accumulate across this axis -> must not be sharded.
            dimension_semantics=("arbitrary",),
        ),
    )(p, w)


def affine_act(x, scale, shift, *, act, tm, out_dtype):
    Mp, Np = x.shape
    kern = functools.partial(_affine_act_kernel, act=act)
    return pl.pallas_call(
        kern,
        out_shape=jax.ShapeDtypeStruct((Mp, Np), out_dtype),
        grid=(Mp // tm,),
        in_specs=[
            pl.BlockSpec((tm, Np), lambda i: (i, 0)),
            pl.BlockSpec((1, Np), lambda i: (0, 0)),
            pl.BlockSpec((1, Np), lambda i: (0, 0)),
        ],
        out_specs=pl.BlockSpec((tm, Np), lambda i: (i, 0)),
        compiler_params=pltpu.CompilerParams(
            dimension_semantics=("parallel",),
        ),
    )(x, scale, shift)


# ----------------------------- JAX glue: im2col -----------------------------


def _s2d(x_nhwc):
    """2x2 space-to-depth of the pad-1 input: (B,H,W,C) -> (B,Hs,Ws,4C)."""
    B, H, W, C = x_nhwc.shape
    xp = jnp.pad(x_nhwc, ((0, 0), (1, 1), (1, 1), (0, 0)))
    Hs, Ws = (H + 2) // 2, (W + 2) // 2
    # (B, hs, di, ws, dj, ci) -> (B, hs, ws, di, dj, ci)
    s = xp.reshape(B, Hs, 2, Ws, 2, C).transpose(0, 1, 3, 2, 4, 5)
    return s.reshape(B, Hs, Ws, 4 * C), Hs, Ws


def _extract_patches_s2d(x_nhwc):
    """Stride-2 4x4 pad-1 conv patches, (M, 16C), K ordered (wi,wj,di,dj,ci)."""
    B = x_nhwc.shape[0]
    C = x_nhwc.shape[3]
    s2d, Hs, Ws = _s2d(x_nhwc)
    Ho, Wo = Hs - 1, Ws - 1
    cols = [s2d[:, wi:wi + Ho, wj:wj + Wo, :] for wi in range(2) for wj in range(2)]
    p = jnp.stack(cols, axis=3)                       # (B,Ho,Wo,4,4C)
    return p.reshape(B * Ho * Wo, 16 * C), Ho, Wo


def _extract_patches_s2d_t(x_nhwc):
    """Same patches but transposed: (16C, M) with M lane-major (b,ho,wo)."""
    B = x_nhwc.shape[0]
    C = x_nhwc.shape[3]
    s2d, Hs, Ws = _s2d(x_nhwc)
    Ho, Wo = Hs - 1, Ws - 1
    cols = [s2d[:, wi:wi + Ho, wj:wj + Wo, :] for wi in range(2) for wj in range(2)]
    p = jnp.stack(cols, axis=0)                       # (4,B,Ho,Wo,4C)
    pt = p.transpose(0, 4, 1, 2, 3).reshape(16 * C, B * Ho * Wo)
    return pt, Ho, Wo


def _weight_mat_s2d_co_major(w_oihw):
    """(Cout,Cin,4,4) -> (Cout, 16*Cin) matching the s2d K order."""
    Cout, Cin, _, _ = w_oihw.shape
    w = w_oihw.reshape(Cout, Cin, 2, 2, 2, 2)         # (co, ci, wi, di, wj, dj)
    w = w.transpose(0, 2, 4, 3, 5, 1)                 # (co, wi, wj, di, dj, ci)
    return w.reshape(Cout, 16 * Cin)


def _extract_patches(x_nhwc, kh, kw, stride, pad):
    """Generic im2col: (B,H,W,C) -> (B*Ho*Wo, C*kh*kw), K ordered (ci,kh,kw)."""
    B, H, W, C = x_nhwc.shape
    if pad:
        x_nhwc = jnp.pad(x_nhwc, ((0, 0), (pad, pad), (pad, pad), (0, 0)))
    Hp, Wp = x_nhwc.shape[1], x_nhwc.shape[2]
    Ho = (Hp - kh) // stride + 1
    Wo = (Wp - kw) // stride + 1
    cols = []
    for i in range(kh):
        for j in range(kw):
            sl = x_nhwc[:, i:i + stride * (Ho - 1) + 1:stride,
                        j:j + stride * (Wo - 1) + 1:stride, :]
            cols.append(sl)
    p = jnp.stack(cols, axis=-1)                      # (B,Ho,Wo,C,kh*kw)
    return p.reshape(B * Ho * Wo, C * kh * kw), Ho, Wo


# ------------------------------- conv blocks ---------------------------------


def conv_block(x_nhwc, w_oihw, *, stride, pad, act, bn=None,
               out_dtype=jnp.bfloat16):
    """Conv2d(k=4, bias=False) [+ BatchNorm2d training-mode stats] + act."""
    B = x_nhwc.shape[0]
    Cout, Cin, KH, KW = w_oihw.shape
    x_bf = x_nhwc.astype(jnp.bfloat16)
    is_s2d = (stride == 2 and pad == 1 and KH == 4 and KW == 4)

    if bn is None and Cout < 128:
        # Transposed GEMM: Cout on sublanes (pads to 16 instead of 128 lanes),
        # M lane-dense -> unmasked stores and far fewer output HBM bytes.
        if is_s2d:
            pt, Ho, Wo = _extract_patches_s2d_t(x_bf)
            wct = _weight_mat_s2d_co_major(w_oihw)
        else:
            patches, Ho, Wo = _extract_patches(x_bf, KH, KW, stride, pad)
            pt = patches.T
            wct = w_oihw.reshape(Cout, Cin * KH * KW)
        K, M = pt.shape
        tm = _choose_tm_lanes(M)
        Mp = _round_up(M, tm)
        Coutp = _round_up(Cout, 16)
        pt = jnp.pad(pt, ((0, 0), (0, Mp - M)))
        wt = jnp.pad(wct, ((0, Coutp - Cout), (0, 0))).astype(jnp.bfloat16)
        y_t = gemm_t_act(wt, pt, act=act, tm=tm, out_dtype=out_dtype)
        y = y_t[:Cout, :M].reshape(Cout, B, Ho, Wo)
        return jnp.transpose(y, (1, 2, 3, 0))

    # Standard (M, Cout) layout.
    if is_s2d:
        patches, Ho, Wo = _extract_patches_s2d(x_bf)
        wmat = _weight_mat_s2d_co_major(w_oihw).T
    else:
        patches, Ho, Wo = _extract_patches(x_bf, KH, KW, stride, pad)
        wmat = w_oihw.reshape(Cout, Cin * KH * KW).T
    M, K = patches.shape
    tm = _choose_tm_rows(M)
    Mp = _round_up(M, tm)
    Np = _round_up(Cout, 128)
    p_pad = jnp.pad(patches, ((0, Mp - M), (0, 0)))
    w_pad = jnp.pad(wmat, ((0, 0), (0, Np - Cout))).astype(jnp.bfloat16)

    if bn is None:
        y = gemm_act(p_pad, w_pad, act=act, tm=tm, out_dtype=out_dtype)
    else:
        gamma, beta = bn
        # One pass for GEMM + per-channel stats; padded rows are zero so
        # dividing by the true M yields exact mean / biased variance.
        y_lin, s, sq = gemm_with_stats(p_pad, w_pad, tm=tm)
        mean = s / M
        var = jnp.maximum(sq / M - mean * mean, 0.0)   # clamp f32 cancellation
        g = jnp.pad(gamma.astype(jnp.float32), (0, Np - Cout)).reshape(1, Np)
        b = jnp.pad(beta.astype(jnp.float32), (0, Np - Cout)).reshape(1, Np)
        scale = g * jax.lax.rsqrt(var + 1e-5)
        shift = b - mean * scale
        y = affine_act(y_lin, scale, shift, act=act, tm=tm, out_dtype=out_dtype)

    return y[:M, :Cout].reshape(B, Ho, Wo, Cout)


# --------------------------- Discriminator forward ---------------------------


def discriminator_forward(x_nchw, p):
    # Single NCHW -> NHWC transpose + bf16 cast for the whole network.
    x = jnp.transpose(x_nchw, (0, 2, 3, 1)).astype(jnp.bfloat16)
    x = conv_block(x, p["w1"], stride=2, pad=1, act="leaky")
    x = conv_block(x, p["w2"], stride=2, pad=1, act="leaky")
    x = conv_block(x, p["w3"], stride=2, pad=1, act="leaky", bn=(p["g3"], p["b3"]))
    x = conv_block(x, p["w4"], stride=2, pad=1, act="leaky", bn=(p["g4"], p["b4"]))
    x = conv_block(x, p["w5"], stride=2, pad=1, act="leaky", bn=(p["g5"], p["b5"]))
    x = conv_block(x, p["w6"], stride=1, pad=0, act="sigmoid",
                   out_dtype=jnp.float32)
    return x.reshape(-1)  # == output.view(-1, 1).squeeze(1)


# ------------------------------ JAX reference -------------------------------


def ref_forward(x, p):
    def conv(v, w, s, pad):
        return jax.lax.conv_general_dilated(
            v, w, (s, s), [(pad, pad), (pad, pad)],
            dimension_numbers=("NCHW", "OIHW", "NCHW"),
            precision=jax.lax.Precision.HIGHEST)

    lrelu = lambda v: jnp.where(v >= 0.0, v, 0.2 * v)

    def bn(v, g, b):
        m = jnp.mean(v, axis=(0, 2, 3), keepdims=True)
        var = jnp.mean((v - m) ** 2, axis=(0, 2, 3), keepdims=True)
        return (v - m) * jax.lax.rsqrt(var + 1e-5) * g.reshape(1, -1, 1, 1) \
            + b.reshape(1, -1, 1, 1)

    v = lrelu(conv(x, p["w1"], 2, 1))
    v = lrelu(conv(v, p["w2"], 2, 1))
    v = lrelu(bn(conv(v, p["w3"], 2, 1), p["g3"], p["b3"]))
    v = lrelu(bn(conv(v, p["w4"], 2, 1), p["g4"], p["b4"]))
    v = lrelu(bn(conv(v, p["w5"], 2, 1), p["g5"], p["b5"]))
    v = jax.nn.sigmoid(conv(v, p["w6"], 1, 0))
    return v.reshape(-1)


# ---------------------------------- main ------------------------------------

if __name__ == "__main__":
    key = jax.random.PRNGKey(0)
    keys = jax.random.split(key, 16)

    # Small but architecture-consistent config: the final 4x4 valid conv after
    # five stride-2 convs requires a 128x128 input; keep num_features small.
    nf, cin, batch = 8, 3, 2

    params = {
        "w1": 0.02 * jax.random.normal(keys[0], (nf, cin, 4, 4), jnp.float32),
        "w2": 0.02 * jax.random.normal(keys[1], (nf, nf, 4, 4), jnp.float32),
        "w3": 0.02 * jax.random.normal(keys[2], (nf * 2, nf, 4, 4), jnp.float32),
        "w4": 0.02 * jax.random.normal(keys[3], (nf * 4, nf * 2, 4, 4), jnp.float32),
        "w5": 0.02 * jax.random.normal(keys[4], (nf * 8, nf * 4, 4, 4), jnp.float32),
        "w6": 0.02 * jax.random.normal(keys[5], (1, nf * 8, 4, 4), jnp.float32),
        "g3": 1.0 + 0.1 * jax.random.normal(keys[6], (nf * 2,), jnp.float32),
        "b3": 0.1 * jax.random.normal(keys[7], (nf * 2,), jnp.float32),
        "g4": 1.0 + 0.1 * jax.random.normal(keys[8], (nf * 4,), jnp.float32),
        "b4": 0.1 * jax.random.normal(keys[9], (nf * 4,), jnp.float32),
        "g5": 1.0 + 0.1 * jax.random.normal(keys[10], (nf * 8,), jnp.float32),
        "b5": 0.1 * jax.random.normal(keys[11], (nf * 8,), jnp.float32),
    }

    x = jax.random.normal(keys[12], (batch, cin, 128, 128), jnp.float32)

    fwd = jax.jit(discriminator_forward)
    out = jax.block_until_ready(fwd(x, params))
    ref = jax.block_until_ready(ref_forward(x, params))

    assert out.shape == (batch,), out.shape
    assert bool(jnp.all(jnp.isfinite(out)))
    assert bool(jnp.allclose(out, ref, atol=2e-2)), (out, ref)

    print("KERNEL_OK")
</pallas_src>

<mosaic_0001>
module attributes {stable_mosaic.version = 11 : i64} {
  func.func @_gemm_t_act_kernel(%arg0: i32, %arg1: memref<16x48xbf16, #tpu.memory_space<vmem>>, %arg2: memref<48x2048xbf16, #tpu.memory_space<vmem>>, %arg3: memref<16x2048xbf16, #tpu.memory_space<vmem>>) attributes {dimension_semantics = [#tpu.dimension_semantics<parallel>], iteration_bounds = array<i64: 4>, scalar_prefetch = 0 : i64, scratch_operands = 0 : i64, tpu.core_type = #tpu.core_type<tc>, window_params = [{pipeline_mode = #tpu.pipeline_mode<synchronous>, transform_indices = @transform_0, window_bounds = array<i64: 16, 48>}, {transform_indices = @transform_1, window_bounds = array<i64: 48, 2048>}, {transform_indices = @transform_2, window_bounds = array<i64: 16, 2048>}]} {
    %c0 = arith.constant 0 : index
    %c0_0 = arith.constant 0 : index
    %0 = vector.load %arg1[%c0, %c0_0] : memref<16x48xbf16, #tpu.memory_space<vmem>>, vector<16x48xbf16>
    %c0_1 = arith.constant 0 : index
    %c0_2 = arith.constant 0 : index
    %1 = vector.load %arg2[%c0_1, %c0_2] : memref<48x2048xbf16, #tpu.memory_space<vmem>>, vector<48x2048xbf16>
    %cst = arith.constant dense<0.000000e+00> : vector<16x2048xf32>
    %2 = tpu.matmul %0, %1, %cst {dimension_numbers = #tpu.dot_dimension_numbers<[1], [0], [0], [1], [0, 0, 1, 1], [], []>} : vector<16x48xbf16>, vector<48x2048xbf16>, vector<16x2048xf32> -> vector<16x2048xf32>
    %cst_3 = arith.constant 0.000000e+00 : f32
    %3 = vector.broadcast %cst_3 : f32 to vector<16x2048xf32>
    %4 = arith.cmpf oge, %2, %3 : vector<16x2048xf32>
    %cst_4 = arith.constant 2.000000e-01 : f32
    %5 = vector.broadcast %cst_4 : f32 to vector<16x2048xf32>
    %6 = arith.mulf %5, %2 : vector<16x2048xf32>
    %7 = arith.select %4, %2, %6 : vector<16x2048xi1>, vector<16x2048xf32>
    %8 = arith.truncf %7 : vector<16x2048xf32> to vector<16x2048xbf16>
    %c0_5 = arith.constant 0 : index
    %c0_6 = arith.constant 0 : index
    %9 = vector.load %arg3[%c0_5, %c0_6] : memref<16x2048xbf16, #tpu.memory_space<vmem>>, vector<16x2048xbf16>
    tpu.vector_store %arg3[%c0_5, %c0_6], %8 {strides = array<i32>} : memref<16x2048xbf16, #tpu.memory_space<vmem>>, vector<16x2048xbf16>,
    return
  }
  func.func @transform_0(%arg0: i32) -> (i32, i32) {
    %c0_i32 = arith.constant 0 : i32
    %c0_i32_0 = arith.constant 0 : i32
    %c0_i32_1 = arith.constant 0 : i32
    return %c0_i32, %c0_i32_0 : i32, i32
  }
  func.func @transform_1(%arg0: i32) -> (i32, i32) {
    %c0_i32 = arith.constant 0 : i32
    %c0_i32_0 = arith.constant 0 : i32
    return %c0_i32, %arg0 : i32, i32
  }
  func.func @transform_2(%arg0: i32) -> (i32, i32) {
    %c0_i32 = arith.constant 0 : i32
    %c0_i32_0 = arith.constant 0 : i32
    return %c0_i32, %arg0 : i32, i32
  }
}

module attributes {stable_mosaic.version = 11 : i64} {
  func.func @_gemm_t_act_kernel(%arg0: i32, %arg1: memref<16x128xbf16, #tpu.memory_space<vmem>>, %arg2: memref<128x1024xbf16, #tpu.memory_space<vmem>>, %arg3: memref<16x1024xbf16, #tpu.memory_space<vmem>>) attributes {dimension_semantics = [#tpu.dimension_semantics<parallel>], iteration_bounds = array<i64: 2>, scalar_prefetch = 0 : i64, scratch_operands = 0 : i64, tpu.core_type = #tpu.core_type<tc>, window_params = [{pipeline_mode = #tpu.pipeline_mode<synchronous>, transform_indices = @transform_0, window_bounds = array<i64: 16, 128>}, {transform_indices = @transform_1, window_bounds = array<i64: 128, 1024>}, {transform_indices = @transform_2, window_bounds = array<i64: 16, 1024>}]} {
    %c0 = arith.constant 0 : index
    %c0_0 = arith.constant 0 : index
    %0 = vector.load %arg1[%c0, %c0_0] : memref<16x128xbf16, #tpu.memory_space<vmem>>, vector<16x128xbf16>
    %c0_1 = arith.constant 0 : index
    %c0_2 = arith.constant 0 : index
    %1 = vector.load %arg2[%c0_1, %c0_2] : memref<128x1024xbf16, #tpu.memory_space<vmem>>, vector<128x1024xbf16>
    %cst = arith.constant dense<0.000000e+00> : vector<16x1024xf32>
    %2 = tpu.matmul %0, %1, %cst {dimension_numbers = #tpu.dot_dimension_numbers<[1], [0], [0], [1], [0, 0, 1, 1], [], []>} : vector<16x128xbf16>, vector<128x1024xbf16>, vector<16x1024xf32> -> vector<16x1024xf32>
    %cst_3 = arith.constant 0.000000e+00 : f32
    %3 = vector.broadcast %cst_3 : f32 to vector<16x1024xf32>
    %4 = arith.cmpf oge, %2, %3 : vector<16x1024xf32>
    %cst_4 = arith.constant 2.000000e-01 : f32
    %5 = vector.broadcast %cst_4 : f32 to vector<16x1024xf32>
    %6 = arith.mulf %5, %2 : vector<16x1024xf32>
    %7 = arith.select %4, %2, %6 : vector<16x1024xi1>, vector<16x1024xf32>
    %8 = arith.truncf %7 : vector<16x1024xf32> to vector<16x1024xbf16>
    %c0_5 = arith.constant 0 : index
    %c0_6 = arith.constant 0 : index
    %9 = vector.load %arg3[%c0_5, %c0_6] : memref<16x1024xbf16, #tpu.memory_space<vmem>>, vector<16x1024xbf16>
    tpu.vector_store %arg3[%c0_5, %c0_6], %8 {strides = array<i32>} : memref<16x1024xbf16, #tpu.memory_space<vmem>>, vector<16x1024xbf16>,
    return
  }
  func.func @transform_0(%arg0: i32) -> (i32, i32) {
    %c0_i32 = arith.constant 0 : i32
    %c0_i32_0 = arith.constant 0 : i32
    %c0_i32_1 = arith.constant 0 : i32
    return %c0_i32, %c0_i32_0 : i32, i32
  }
  func.func @transform_1(%arg0: i32) -> (i32, i32) {
    %c0_i32 = arith.constant 0 : i32
    %c0_i32_0 = arith.constant 0 : i32
    return %c0_i32, %arg0 : i32, i32
  }
  func.func @transform_2(%arg0: i32) -> (i32, i32) {
    %c0_i32 = arith.constant 0 : i32
    %c0_i32_0 = arith.constant 0 : i32
    return %c0_i32, %arg0 : i32, i32
  }
}

module attributes {stable_mosaic.version = 11 : i64} {
  func.func @_gemm_stats_kernel(%arg0: i32, %arg1: memref<512x128xbf16, #tpu.memory_space<vmem>>, %arg2: memref<128x128xbf16, #tpu.memory_space<vmem>>, %arg3: memref<512x128xbf16, #tpu.memory_space<vmem>>, %arg4: memref<1x128xf32, #tpu.memory_space<vmem>>, %arg5: memref<1x128xf32, #tpu.memory_space<vmem>>) attributes {dimension_semantics = [#tpu.dimension_semantics<arbitrary>], iteration_bounds = array<i64: 1>, scalar_prefetch = 0 : i64, scratch_operands = 0 : i64, tpu.core_type = #tpu.core_type<tc>, window_params = [{transform_indices = @transform_0, window_bounds = array<i64: 512, 128>}, {pipeline_mode = #tpu.pipeline_mode<synchronous>, transform_indices = @transform_1, window_bounds = array<i64: 128, 128>}, {transform_indices = @transform_2, window_bounds = array<i64: 512, 128>}, {pipeline_mode = #tpu.pipeline_mode<synchronous>, transform_indices = @transform_3, window_bounds = array<i64: 1, 128>}, {pipeline_mode = #tpu.pipeline_mode<synchronous>, transform_indices = @transform_4, window_bounds = array<i64: 1, 128>}]} {
    %c0_i32 = arith.constant 0 : i32
    %0 = arith.cmpi eq, %arg0, %c0_i32 : i32
    %1 = arith.extui %0 : i1 to i32
    %c0_i32_0 = arith.constant 0 : i32
    %2 = arith.cmpi ne, %1, %c0_i32_0 : i32
    scf.if %2 {
      %cst_16 = arith.constant 0.000000e+00 : f32
      %19 = vector.broadcast %cst_16 : f32 to vector<1x128xf32>
      %c0_17 = arith.constant 0 : index
      %c0_18 = arith.constant 0 : index
      %20 = vector.load %arg4[%c0_17, %c0_18] : memref<1x128xf32, #tpu.memory_space<vmem>>, vector<1x128xf32>
      tpu.vector_store %arg4[%c0_17, %c0_18], %19 {strides = array<i32>} : memref<1x128xf32, #tpu.memory_space<vmem>>, vector<1x128xf32>,
      %cst_19 = arith.constant 0.000000e+00 : f32
      %21 = vector.broadcast %cst_19 : f32 to vector<1x128xf32>
      %c0_20 = arith.constant 0 : index
      %c0_21 = arith.constant 0 : index
      %22 = vector.load %arg5[%c0_20, %c0_21] : memref<1x128xf32, #tpu.memory_space<vmem>>, vector<1x128xf32>
      tpu.vector_store %arg5[%c0_20, %c0_21], %21 {strides = array<i32>} : memref<1x128xf32, #tpu.memory_space<vmem>>, vector<1x128xf32>,
    } else {
    }
    %c0 = arith.constant 0 : index
    %c0_1 = arith.constant 0 : index
    %3 = vector.load %arg1[%c0, %c0_1] : memref<512x128xbf16, #tpu.memory_space<vmem>>, vector<512x128xbf16>
    %c0_2 = arith.constant 0 : index
    %c0_3 = arith.constant 0 : index
    %4 = vector.load %arg2[%c0_2, %c0_3] : memref<128x128xbf16, #tpu.memory_space<vmem>>, vector<128x128xbf16>
    %cst = arith.constant dense<0.000000e+00> : vector<512x128xf32>
    %5 = tpu.matmul %3, %4, %cst {dimension_numbers = #tpu.dot_dimension_numbers<[1], [0], [0], [1], [0, 0, 1, 1], [], []>} : vector<512x128xbf16>, vector<128x128xbf16>, vector<512x128xf32> -> vector<512x128xf32>
    %6 = arith.truncf %5 : vector<512x128xf32> to vector<512x128xbf16>
    %c0_4 = arith.constant 0 : index
    %c0_5 = arith.constant 0 : index
    %7 = vector.load %arg3[%c0_4, %c0_5] : memref<512x128xbf16, #tpu.memory_space<vmem>>, vector<512x128xbf16>
    tpu.vector_store %arg3[%c0_4, %c0_5], %6 {strides = array<i32>} : memref<512x128xbf16, #tpu.memory_space<vmem>>, vector<512x128xbf16>,
    %c0_6 = arith.constant 0 : index
    %c0_7 = arith.constant 0 : index
    %8 = vector.load %arg4[%c0_6, %c0_7] : memref<1x128xf32, #tpu.memory_space<vmem>>, vector<1x128xf32>
    %cst_8 = arith.constant dense<0.000000e+00> : vector<128xf32>
    %9 = vector.multi_reduction <add>, %5, %cst_8 [0] : vector<512x128xf32> to vector<128xf32>
    %10 = vector.shape_cast %9 : vector<128xf32> to vector<1x128xf32>
    %11 = arith.addf %8, %10 : vector<1x128xf32>
    %c0_9 = arith.constant 0 : index
    %c0_10 = arith.constant 0 : index
    %12 = vector.load %arg4[%c0_9, %c0_10] : memref<1x128xf32, #tpu.memory_space<vmem>>, vector<1x128xf32>
    tpu.vector_store %arg4[%c0_9, %c0_10], %11 {strides = array<i32>} : memref<1x128xf32, #tpu.memory_space<vmem>>, vector<1x128xf32>,
    %c0_11 = arith.constant 0 : index
    %c0_12 = arith.constant 0 : index
    %13 = vector.load %arg5[%c0_11, %c0_12] : memref<1x128xf32, #tpu.memory_space<vmem>>, vector<1x128xf32>
    %14 = arith.mulf %5, %5 : vector<512x128xf32>
    %cst_13 = arith.constant dense<0.000000e+00> : vector<128xf32>
    %15 = vector.multi_reduction <add>, %14, %cst_13 [0] : vector<512x128xf32> to vector<128xf32>
    %16 = vector.shape_cast %15 : vector<128xf32> to vector<1x128xf32>
    %17 = arith.addf %13, %16 : vector<1x128xf32>
    %c0_14 = arith.constant 0 : index
    %c0_15 = arith.constant 0 : index
    %18 = vector.load %arg5[%c0_14, %c0_15] : memref<1x128xf32, #tpu.memory_space<vmem>>, vector<1x128xf32>
    tpu.vector_store %arg5[%c0_14, %c0_15], %17 {strides = array<i32>} : memref<1x128xf32, #tpu.memory_space<vmem>>, vector<1x128xf32>,
    return
  }
  func.func @transform_0(%arg0: i32) -> (i32, i32) {
    %c0_i32 = arith.constant 0 : i32
    %c0_i32_0 = arith.constant 0 : i32
    return %arg0, %c0_i32 : i32, i32
  }
  func.func @transform_1(%arg0: i32) -> (i32, i32) {
    %c0_i32 = arith.constant 0 : i32
    %c0_i32_0 = arith.constant 0 : i32
    %c0_i32_1 = arith.constant 0 : i32
    return %c0_i32, %c0_i32_0 : i32, i32
  }
  func.func @transform_2(%arg0: i32) -> (i32, i32) {
    %c0_i32 = arith.constant 0 : i32
    %c0_i32_0 = arith.constant 0 : i32
    return %arg0, %c0_i32 : i32, i32
  }
  func.func @transform_3(%arg0: i32) -> (i32, i32) {
    %c0_i32 = arith.constant 0 : i32
    %c0_i32_0 = arith.constant 0 : i32
    %c0_i32_1 = arith.constant 0 : i32
    return %c0_i32, %c0_i32_0 : i32, i32
  }
  func.func @transform_4(%arg0: i32) -> (i32, i32) {
    %c0_i32 = arith.constant 0 : i32
    %c0_i32_0 = arith.constant 0 : i32
    %c0_i32_1 = arith.constant 0 : i32
    return %c0_i32, %c0_i32_0 : i32, i32
  }
}

module attributes {stable_mosaic.version = 11 : i64} {
  func.func @_affine_act_kernel(%arg0: i32, %arg1: memref<512x128xbf16, #tpu.memory_space<vmem>>, %arg2: memref<1x128xf32, #tpu.memory_space<vmem>>, %arg3: memref<1x128xf32, #tpu.memory_space<vmem>>, %arg4: memref<512x128xbf16, #tpu.memory_space<vmem>>) attributes {dimension_semantics = [#tpu.dimension_semantics<parallel>], iteration_bounds = array<i64: 1>, scalar_prefetch = 0 : i64, scratch_operands = 0 : i64, tpu.core_type = #tpu.core_type<tc>, window_params = [{transform_indices = @transform_0, window_bounds = array<i64: 512, 128>}, {pipeline_mode = #tpu.pipeline_mode<synchronous>, transform_indices = @transform_1, window_bounds = array<i64: 1, 128>}, {pipeline_mode = #tpu.pipeline_mode<synchronous>, transform_indices = @transform_2, window_bounds = array<i64: 1, 128>}, {transform_indices = @transform_3, window_bounds = array<i64: 512, 128>}]} {
    %c0 = arith.constant 0 : index
    %c0_0 = arith.constant 0 : index
    %0 = vector.load %arg1[%c0, %c0_0] : memref<512x128xbf16, #tpu.memory_space<vmem>>, vector<512x128xbf16>
    %1 = arith.extf %0 : vector<512x128xbf16> to vector<512x128xf32>
    %c0_1 = arith.constant 0 : index
    %c0_2 = arith.constant 0 : index
    %2 = vector.load %arg2[%c0_1, %c0_2] : memref<1x128xf32, #tpu.memory_space<vmem>>, vector<1x128xf32>
    %3 = vector.broadcast %2 : vector<1x128xf32> to vector<512x128xf32>
    %4 = arith.mulf %1, %3 : vector<512x128xf32>
    %c0_3 = arith.constant 0 : index
    %c0_4 = arith.constant 0 : index
    %5 = vector.load %arg3[%c0_3, %c0_4] : memref<1x128xf32, #tpu.memory_space<vmem>>, vector<1x128xf32>
    %6 = vector.broadcast %5 : vector<1x128xf32> to vector<512x128xf32>
    %7 = arith.addf %4, %6 : vector<512x128xf32>
    %cst = arith.constant 0.000000e+00 : f32
    %8 = vector.broadcast %cst : f32 to vector<512x128xf32>
    %9 = arith.cmpf oge, %7, %8 : vector<512x128xf32>
    %cst_5 = arith.constant 2.000000e-01 : f32
    %10 = vector.broadcast %cst_5 : f32 to vector<512x128xf32>
    %11 = arith.mulf %10, %7 : vector<512x128xf32>
    %12 = arith.select %9, %7, %11 : vector<512x128xi1>, vector<512x128xf32>
    %13 = arith.truncf %12 : vector<512x128xf32> to vector<512x128xbf16>
    %c0_6 = arith.constant 0 : index
    %c0_7 = arith.constant 0 : index
    %14 = vector.load %arg4[%c0_6, %c0_7] : memref<512x128xbf16, #tpu.memory_space<vmem>>, vector<512x128xbf16>
    tpu.vector_store %arg4[%c0_6, %c0_7], %13 {strides = array<i32>} : memref<512x128xbf16, #tpu.memory_space<vmem>>, vector<512x128xbf16>,
    return
  }
  func.func @transform_0(%arg0: i32) -> (i32, i32) {
    %c0_i32 = arith.constant 0 : i32
    %c0_i32_0 = arith.constant 0 : i32
    return %arg0, %c0_i32 : i32, i32
  }
  func.func @transform_1(%arg0: i32) -> (i32, i32) {
    %c0_i32 = arith.constant 0 : i32
    %c0_i32_0 = arith.constant 0 : i32
    %c0_i32_1 = arith.constant 0 : i32
    return %c0_i32, %c0_i32_0 : i32, i32
  }
  func.func @transform_2(%arg0: i32) -> (i32, i32) {
    %c0_i32 = arith.constant 0 : i32
    %c0_i32_0 = arith.constant 0 : i32
    %c0_i32_1 = arith.constant 0 : i32
    return %c0_i32, %c0_i32_0 : i32, i32
  }
  func.func @transform_3(%arg0: i32) -> (i32, i32) {
    %c0_i32 = arith.constant 0 : i32
    %c0_i32_0 = arith.constant 0 : i32
    return %arg0, %c0_i32 : i32, i32
  }
}

module attributes {stable_mosaic.version = 11 : i64} {
  func.func @_gemm_stats_kernel(%arg0: i32, %arg1: memref<128x256xbf16, #tpu.memory_space<vmem>>, %arg2: memref<256x128xbf16, #tpu.memory_space<vmem>>, %arg3: memref<128x128xbf16, #tpu.memory_space<vmem>>, %arg4: memref<1x128xf32, #tpu.memory_space<vmem>>, %arg5: memref<1x128xf32, #tpu.memory_space<vmem>>) attributes {dimension_semantics = [#tpu.dimension_semantics<arbitrary>], iteration_bounds = array<i64: 1>, scalar_prefetch = 0 : i64, scratch_operands = 0 : i64, tpu.core_type = #tpu.core_type<tc>, window_params = [{transform_indices = @transform_0, window_bounds = array<i64: 128, 256>}, {pipeline_mode = #tpu.pipeline_mode<synchronous>, transform_indices = @transform_1, window_bounds = array<i64: 256, 128>}, {transform_indices = @transform_2, window_bounds = array<i64: 128, 128>}, {pipeline_mode = #tpu.pipeline_mode<synchronous>, transform_indices = @transform_3, window_bounds = array<i64: 1, 128>}, {pipeline_mode = #tpu.pipeline_mode<synchronous>, transform_indices = @transform_4, window_bounds = array<i64: 1, 128>}]} {
    %c0_i32 = arith.constant 0 : i32
    %0 = arith.cmpi eq, %arg0, %c0_i32 : i32
    %1 = arith.extui %0 : i1 to i32
    %c0_i32_0 = arith.constant 0 : i32
    %2 = arith.cmpi ne, %1, %c0_i32_0 : i32
    scf.if %2 {
      %cst_16 = arith.constant 0.000000e+00 : f32
      %19 = vector.broadcast %cst_16 : f32 to vector<1x128xf32>
      %c0_17 = arith.constant 0 : index
      %c0_18 = arith.constant 0 : index
      %20 = vector.load %arg4[%c0_17, %c0_18] : memref<1x128xf32, #tpu.memory_space<vmem>>, vector<1x128xf32>
      tpu.vector_store %arg4[%c0_17, %c0_18], %19 {strides = array<i32>} : memref<1x128xf32, #tpu.memory_space<vmem>>, vector<1x128xf32>,
      %cst_19 = arith.constant 0.000000e+00 : f32
      %21 = vector.broadcast %cst_19 : f32 to vector<1x128xf32>
      %c0_20 = arith.constant 0 : index
      %c0_21 = arith.constant 0 : index
      %22 = vector.load %arg5[%c0_20, %c0_21] : memref<1x128xf32, #tpu.memory_space<vmem>>, vector<1x128xf32>
      tpu.vector_store %arg5[%c0_20, %c0_21], %21 {strides = array<i32>} : memref<1x128xf32, #tpu.memory_space<vmem>>, vector<1x128xf32>,
    } else {
    }
    %c0 = arith.constant 0 : index
    %c0_1 = arith.constant 0 : index
    %3 = vector.load %arg1[%c0, %c0_1] : memref<128x256xbf16, #tpu.memory_space<vmem>>, vector<128x256xbf16>
    %c0_2 = arith.constant 0 : index
    %c0_3 = arith.constant 0 : index
    %4 = vector.load %arg2[%c0_2, %c0_3] : memref<256x128xbf16, #tpu.memory_space<vmem>>, vector<256x128xbf16>
    %cst = arith.constant dense<0.000000e+00> : vector<128x128xf32>
    %5 = tpu.matmul %3, %4, %cst {dimension_numbers = #tpu.dot_dimension_numbers<[1], [0], [0], [1], [0, 0, 1, 1], [], []>} : vector<128x256xbf16>, vector<256x128xbf16>, vector<128x128xf32> -> vector<128x128xf32>
    %6 = arith.truncf %5 : vector<128x128xf32> to vector<128x128xbf16>
    %c0_4 = arith.constant 0 : index
    %c0_5 = arith.constant 0 : index
    %7 = vector.load %arg3[%c0_4, %c0_5] : memref<128x128xbf16, #tpu.memory_space<vmem>>, vector<128x128xbf16>
    tpu.vector_store %arg3[%c0_4, %c0_5], %6 {strides = array<i32>} : memref<128x128xbf16, #tpu.memory_space<vmem>>, vector<128x128xbf16>,
    %c0_6 = arith.constant 0 : index
    %c0_7 = arith.constant 0 : index
    %8 = vector.load %arg4[%c0_6, %c0_7] : memref<1x128xf32, #tpu.memory_space<vmem>>, vector<1x128xf32>
    %cst_8 = arith.constant dense<0.000000e+00> : vector<128xf32>
    %9 = vector.multi_reduction <add>, %5, %cst_8 [0] : vector<128x128xf32> to vector<128xf32>
    %10 = vector.shape_cast %9 : vector<128xf32> to vector<1x128xf32>
    %11 = arith.addf %8, %10 : vector<1x128xf32>
    %c0_9 = arith.constant 0 : index
    %c0_10 = arith.constant 0 : index
    %12 = vector.load %arg4[%c0_9, %c0_10] : memref<1x128xf32, #tpu.memory_space<vmem>>, vector<1x128xf32>
    tpu.vector_store %arg4[%c0_9, %c0_10], %11 {strides = array<i32>} : memref<1x128xf32, #tpu.memory_space<vmem>>, vector<1x128xf32>,
    %c0_11 = arith.constant 0 : index
    %c0_12 = arith.constant 0 : index
    %13 = vector.load %arg5[%c0_11, %c0_12] : memref<1x128xf32, #tpu.memory_space<vmem>>, vector<1x128xf32>
    %14 = arith.mulf %5, %5 : vector<128x128xf32>
    %cst_13 = arith.constant dense<0.000000e+00> : vector<128xf32>
    %15 = vector.multi_reduction <add>, %14, %cst_13 [0] : vector<128x128xf32> to vector<128xf32>
    %16 = vector.shape_cast %15 : vector<128xf32> to vector<1x128xf32>
    %17 = arith.addf %13, %16 : vector<1x128xf32>
    %c0_14 = arith.constant 0 : index
    %c0_15 = arith.constant 0 : index
    %18 = vector.load %arg5[%c0_14, %c0_15] : memref<1x128xf32, #tpu.memory_space<vmem>>, vector<1x128xf32>
    tpu.vector_store %arg5[%c0_14, %c0_15], %17 {strides = array<i32>} : memref<1x128xf32, #tpu.memory_space<vmem>>, vector<1x128xf32>,
    return
  }
  func.func @transform_0(%arg0: i32) -> (i32, i32) {
    %c0_i32 = arith.constant 0 : i32
    %c0_i32_0 = arith.constant 0 : i32
    return %arg0, %c0_i32 : i32, i32
  }
  func.func @transform_1(%arg0: i32) -> (i32, i32) {
    %c0_i32 = arith.constant 0 : i32
    %c0_i32_0 = arith.constant 0 : i32
    %c0_i32_1 = arith.constant 0 : i32
    return %c0_i32, %c0_i32_0 : i32, i32
  }
  func.func @transform_2(%arg0: i32) -> (i32, i32) {
    %c0_i32 = arith.constant 0 : i32
    %c0_i32_0 = arith.constant 0 : i32
    return %arg0, %c0_i32 : i32, i32
  }
  func.func @transform_3(%arg0: i32) -> (i32, i32) {
    %c0_i32 = arith.constant 0 : i32
    %c0_i32_0 = arith.constant 0 : i32
    %c0_i32_1 = arith.constant 0 : i32
    return %c0_i32, %c0_i32_0 : i32, i32
  }
  func.func @transform_4(%arg0: i32) -> (i32, i32) {
    %c0_i32 = arith.constant 0 : i32
    %c0_i32_0 = arith.constant 0 : i32
    %c0_i32_1 = arith.constant 0 : i32
    return %c0_i32, %c0_i32_0 : i32, i32
  }
}

module attributes {stable_mosaic.version = 11 : i64} {
  func.func @_affine_act_kernel(%arg0: i32, %arg1: memref<128x128xbf16, #tpu.memory_space<vmem>>, %arg2: memref<1x128xf32, #tpu.memory_space<vmem>>, %arg3: memref<1x128xf32, #tpu.memory_space<vmem>>, %arg4: memref<128x128xbf16, #tpu.memory_space<vmem>>) attributes {dimension_semantics = [#tpu.dimension_semantics<parallel>], iteration_bounds = array<i64: 1>, scalar_prefetch = 0 : i64, scratch_operands = 0 : i64, tpu.core_type = #tpu.core_type<tc>, window_params = [{transform_indices = @transform_0, window_bounds = array<i64: 128, 128>}, {pipeline_mode = #tpu.pipeline_mode<synchronous>, transform_indices = @transform_1, window_bounds = array<i64: 1, 128>}, {pipeline_mode = #tpu.pipeline_mode<synchronous>, transform_indices = @transform_2, window_bounds = array<i64: 1, 128>}, {transform_indices = @transform_3, window_bounds = array<i64: 128, 128>}]} {
    %c0 = arith.constant 0 : index
    %c0_0 = arith.constant 0 : index
    %0 = vector.load %arg1[%c0, %c0_0] : memref<128x128xbf16, #tpu.memory_space<vmem>>, vector<128x128xbf16>
    %1 = arith.extf %0 : vector<128x128xbf16> to vector<128x128xf32>
    %c0_1 = arith.constant 0 : index
    %c0_2 = arith.constant 0 : index
    %2 = vector.load %arg2[%c0_1, %c0_2] : memref<1x128xf32, #tpu.memory_space<vmem>>, vector<1x128xf32>
    %3 = vector.broadcast %2 : vector<1x128xf32> to vector<128x128xf32>
    %4 = arith.mulf %1, %3 : vector<128x128xf32>
    %c0_3 = arith.constant 0 : index
    %c0_4 = arith.constant 0 : index
    %5 = vector.load %arg3[%c0_3, %c0_4] : memref<1x128xf32, #tpu.memory_space<vmem>>, vector<1x128xf32>
    %6 = vector.broadcast %5 : vector<1x128xf32> to vector<128x128xf32>
    %7 = arith.addf %4, %6 : vector<128x128xf32>
    %cst = arith.constant 0.000000e+00 : f32
    %8 = vector.broadcast %cst : f32 to vector<128x128xf32>
    %9 = arith.cmpf oge, %7, %8 : vector<128x128xf32>
    %cst_5 = arith.constant 2.000000e-01 : f32
    %10 = vector.broadcast %cst_5 : f32 to vector<128x128xf32>
    %11 = arith.mulf %10, %7 : vector<128x128xf32>
    %12 = arith.select %9, %7, %11 : vector<128x128xi1>, vector<128x128xf32>
    %13 = arith.truncf %12 : vector<128x128xf32> to vector<128x128xbf16>
    %c0_6 = arith.constant 0 : index
    %c0_7 = arith.constant 0 : index
    %14 = vector.load %arg4[%c0_6, %c0_7] : memref<128x128xbf16, #tpu.memory_space<vmem>>, vector<128x128xbf16>
    tpu.vector_store %arg4[%c0_6, %c0_7], %13 {strides = array<i32>} : memref<128x128xbf16, #tpu.memory_space<vmem>>, vector<128x128xbf16>,
    return
  }
  func.func @transform_0(%arg0: i32) -> (i32, i32) {
    %c0_i32 = arith.constant 0 : i32
    %c0_i32_0 = arith.constant 0 : i32
    return %arg0, %c0_i32 : i32, i32
  }
  func.func @transform_1(%arg0: i32) -> (i32, i32) {
    %c0_i32 = arith.constant 0 : i32
    %c0_i32_0 = arith.constant 0 : i32
    %c0_i32_1 = arith.constant 0 : i32
    return %c0_i32, %c0_i32_0 : i32, i32
  }
  func.func @transform_2(%arg0: i32) -> (i32, i32) {
    %c0_i32 = arith.constant 0 : i32
    %c0_i32_0 = arith.constant 0 : i32
    %c0_i32_1 = arith.constant 0 : i32
    return %c0_i32, %c0_i32_0 : i32, i32
  }
  func.func @transform_3(%arg0: i32) -> (i32, i32) {
    %c0_i32 = arith.constant 0 : i32
    %c0_i32_0 = arith.constant 0 : i32
    return %arg0, %c0_i32 : i32, i32
  }
}

module attributes {stable_mosaic.version = 11 : i64} {
  func.func @_gemm_stats_kernel(%arg0: i32, %arg1: memref<32x512xbf16, #tpu.memory_space<vmem>>, %arg2: memref<512x128xbf16, #tpu.memory_space<vmem>>, %arg3: memref<32x128xbf16, #tpu.memory_space<vmem>>, %arg4: memref<1x128xf32, #tpu.memory_space<vmem>>, %arg5: memref<1x128xf32, #tpu.memory_space<vmem>>) attributes {dimension_semantics = [#tpu.dimension_semantics<arbitrary>], iteration_bounds = array<i64: 1>, scalar_prefetch = 0 : i64, scratch_operands = 0 : i64, tpu.core_type = #tpu.core_type<tc>, window_params = [{transform_indices = @transform_0, window_bounds = array<i64: 32, 512>}, {pipeline_mode = #tpu.pipeline_mode<synchronous>, transform_indices = @transform_1, window_bounds = array<i64: 512, 128>}, {transform_indices = @transform_2, window_bounds = array<i64: 32, 128>}, {pipeline_mode = #tpu.pipeline_mode<synchronous>, transform_indices = @transform_3, window_bounds = array<i64: 1, 128>}, {pipeline_mode = #tpu.pipeline_mode<synchronous>, transform_indices = @transform_4, window_bounds = array<i64: 1, 128>}]} {
    %c0_i32 = arith.constant 0 : i32
    %0 = arith.cmpi eq, %arg0, %c0_i32 : i32
    %1 = arith.extui %0 : i1 to i32
    %c0_i32_0 = arith.constant 0 : i32
    %2 = arith.cmpi ne, %1, %c0_i32_0 : i32
    scf.if %2 {
      %cst_16 = arith.constant 0.000000e+00 : f32
      %19 = vector.broadcast %cst_16 : f32 to vector<1x128xf32>
      %c0_17 = arith.constant 0 : index
      %c0_18 = arith.constant 0 : index
      %20 = vector.load %arg4[%c0_17, %c0_18] : memref<1x128xf32, #tpu.memory_space<vmem>>, vector<1x128xf32>
      tpu.vector_store %arg4[%c0_17, %c0_18], %19 {strides = array<i32>} : memref<1x128xf32, #tpu.memory_space<vmem>>, vector<1x128xf32>,
      %cst_19 = arith.constant 0.000000e+00 : f32
      %21 = vector.broadcast %cst_19 : f32 to vector<1x128xf32>
      %c0_20 = arith.constant 0 : index
      %c0_21 = arith.constant 0 : index
      %22 = vector.load %arg5[%c0_20, %c0_21] : memref<1x128xf32, #tpu.memory_space<vmem>>, vector<1x128xf32>
      tpu.vector_store %arg5[%c0_20, %c0_21], %21 {strides = array<i32>} : memref<1x128xf32, #tpu.memory_space<vmem>>, vector<1x128xf32>,
    } else {
    }
    %c0 = arith.constant 0 : index
    %c0_1 = arith.constant 0 : index
    %3 = vector.load %arg1[%c0, %c0_1] : memref<32x512xbf16, #tpu.memory_space<vmem>>, vector<32x512xbf16>
    %c0_2 = arith.constant 0 : index
    %c0_3 = arith.constant 0 : index
    %4 = vector.load %arg2[%c0_2, %c0_3] : memref<512x128xbf16, #tpu.memory_space<vmem>>, vector<512x128xbf16>
    %cst = arith.constant dense<0.000000e+00> : vector<32x128xf32>
    %5 = tpu.matmul %3, %4, %cst {dimension_numbers = #tpu.dot_dimension_numbers<[1], [0], [0], [1], [0, 0, 1, 1], [], []>} : vector<32x512xbf16>, vector<512x128xbf16>, vector<32x128xf32> -> vector<32x128xf32>
    %6 = arith.truncf %5 : vector<32x128xf32> to vector<32x128xbf16>
    %c0_4 = arith.constant 0 : index
    %c0_5 = arith.constant 0 : index
    %7 = vector.load %arg3[%c0_4, %c0_5] : memref<32x128xbf16, #tpu.memory_space<vmem>>, vector<32x128xbf16>
    tpu.vector_store %arg3[%c0_4, %c0_5], %6 {strides = array<i32>} : memref<32x128xbf16, #tpu.memory_space<vmem>>, vector<32x128xbf16>,
    %c0_6 = arith.constant 0 : index
    %c0_7 = arith.constant 0 : index
    %8 = vector.load %arg4[%c0_6, %c0_7] : memref<1x128xf32, #tpu.memory_space<vmem>>, vector<1x128xf32>
    %cst_8 = arith.constant dense<0.000000e+00> : vector<128xf32>
    %9 = vector.multi_reduction <add>, %5, %cst_8 [0] : vector<32x128xf32> to vector<128xf32>
    %10 = vector.shape_cast %9 : vector<128xf32> to vector<1x128xf32>
    %11 = arith.addf %8, %10 : vector<1x128xf32>
    %c0_9 = arith.constant 0 : index
    %c0_10 = arith.constant 0 : index
    %12 = vector.load %arg4[%c0_9, %c0_10] : memref<1x128xf32, #tpu.memory_space<vmem>>, vector<1x128xf32>
    tpu.vector_store %arg4[%c0_9, %c0_10], %11 {strides = array<i32>} : memref<1x128xf32, #tpu.memory_space<vmem>>, vector<1x128xf32>,
    %c0_11 = arith.constant 0 : index
    %c0_12 = arith.constant 0 : index
    %13 = vector.load %arg5[%c0_11, %c0_12] : memref<1x128xf32, #tpu.memory_space<vmem>>, vector<1x128xf32>
    %14 = arith.mulf %5, %5 : vector<32x128xf32>
    %cst_13 = arith.constant dense<0.000000e+00> : vector<128xf32>
    %15 = vector.multi_reduction <add>, %14, %cst_13 [0] : vector<32x128xf32> to vector<128xf32>
    %16 = vector.shape_cast %15 : vector<128xf32> to vector<1x128xf32>
    %17 = arith.addf %13, %16 : vector<1x128xf32>
    %c0_14 = arith.constant 0 : index
    %c0_15 = arith.constant 0 : index
    %18 = vector.load %arg5[%c0_14, %c0_15] : memref<1x128xf32, #tpu.memory_space<vmem>>, vector<1x128xf32>
    tpu.vector_store %arg5[%c0_14, %c0_15], %17 {strides = array<i32>} : memref<1x128xf32, #tpu.memory_space<vmem>>, vector<1x128xf32>,
    return
  }
  func.func @transform_0(%arg0: i32) -> (i32, i32) {
    %c0_i32 = arith.constant 0 : i32
    %c0_i32_0 = arith.constant 0 : i32
    return %arg0, %c0_i32 : i32, i32
  }
  func.func @transform_1(%arg0: i32) -> (i32, i32) {
    %c0_i32 = arith.constant 0 : i32
    %c0_i32_0 = arith.constant 0 : i32
    %c0_i32_1 = arith.constant 0 : i32
    return %c0_i32, %c0_i32_0 : i32, i32
  }
  func.func @transform_2(%arg0: i32) -> (i32, i32) {
    %c0_i32 = arith.constant 0 : i32
    %c0_i32_0 = arith.constant 0 : i32
    return %arg0, %c0_i32 : i32, i32
  }
  func.func @transform_3(%arg0: i32) -> (i32, i32) {
    %c0_i32 = arith.constant 0 : i32
    %c0_i32_0 = arith.constant 0 : i32
    %c0_i32_1 = arith.constant 0 : i32
    return %c0_i32, %c0_i32_0 : i32, i32
  }
  func.func @transform_4(%arg0: i32) -> (i32, i32) {
    %c0_i32 = arith.constant 0 : i32
    %c0_i32_0 = arith.constant 0 : i32
    %c0_i32_1 = arith.constant 0 : i32
    return %c0_i32, %c0_i32_0 : i32, i32
  }
}

module attributes {stable_mosaic.version = 11 : i64} {
  func.func @_affine_act_kernel(%arg0: i32, %arg1: memref<32x128xbf16, #tpu.memory_space<vmem>>, %arg2: memref<1x128xf32, #tpu.memory_space<vmem>>, %arg3: memref<1x128xf32, #tpu.memory_space<vmem>>, %arg4: memref<32x128xbf16, #tpu.memory_space<vmem>>) attributes {dimension_semantics = [#tpu.dimension_semantics<parallel>], iteration_bounds = array<i64: 1>, scalar_prefetch = 0 : i64, scratch_operands = 0 : i64, tpu.core_type = #tpu.core_type<tc>, window_params = [{transform_indices = @transform_0, window_bounds = array<i64: 32, 128>}, {pipeline_mode = #tpu.pipeline_mode<synchronous>, transform_indices = @transform_1, window_bounds = array<i64: 1, 128>}, {pipeline_mode = #tpu.pipeline_mode<synchronous>, transform_indices = @transform_2, window_bounds = array<i64: 1, 128>}, {transform_indices = @transform_3, window_bounds = array<i64: 32, 128>}]} {
    %c0 = arith.constant 0 : index
    %c0_0 = arith.constant 0 : index
    %0 = vector.load %arg1[%c0, %c0_0] : memref<32x128xbf16, #tpu.memory_space<vmem>>, vector<32x128xbf16>
    %1 = arith.extf %0 : vector<32x128xbf16> to vector<32x128xf32>
    %c0_1 = arith.constant 0 : index
    %c0_2 = arith.constant 0 : index
    %2 = vector.load %arg2[%c0_1, %c0_2] : memref<1x128xf32, #tpu.memory_space<vmem>>, vector<1x128xf32>
    %3 = vector.broadcast %2 : vector<1x128xf32> to vector<32x128xf32>
    %4 = arith.mulf %1, %3 : vector<32x128xf32>
    %c0_3 = arith.constant 0 : index
    %c0_4 = arith.constant 0 : index
    %5 = vector.load %arg3[%c0_3, %c0_4] : memref<1x128xf32, #tpu.memory_space<vmem>>, vector<1x128xf32>
    %6 = vector.broadcast %5 : vector<1x128xf32> to vector<32x128xf32>
    %7 = arith.addf %4, %6 : vector<32x128xf32>
    %cst = arith.constant 0.000000e+00 : f32
    %8 = vector.broadcast %cst : f32 to vector<32x128xf32>
    %9 = arith.cmpf oge, %7, %8 : vector<32x128xf32>
    %cst_5 = arith.constant 2.000000e-01 : f32
    %10 = vector.broadcast %cst_5 : f32 to vector<32x128xf32>
    %11 = arith.mulf %10, %7 : vector<32x128xf32>
    %12 = arith.select %9, %7, %11 : vector<32x128xi1>, vector<32x128xf32>
    %13 = arith.truncf %12 : vector<32x128xf32> to vector<32x128xbf16>
    %c0_6 = arith.constant 0 : index
    %c0_7 = arith.constant 0 : index
    %14 = vector.load %arg4[%c0_6, %c0_7] : memref<32x128xbf16, #tpu.memory_space<vmem>>, vector<32x128xbf16>
    tpu.vector_store %arg4[%c0_6, %c0_7], %13 {strides = array<i32>} : memref<32x128xbf16, #tpu.memory_space<vmem>>, vector<32x128xbf16>,
    return
  }
  func.func @transform_0(%arg0: i32) -> (i32, i32) {
    %c0_i32 = arith.constant 0 : i32
    %c0_i32_0 = arith.constant 0 : i32
    return %arg0, %c0_i32 : i32, i32
  }
  func.func @transform_1(%arg0: i32) -> (i32, i32) {
    %c0_i32 = arith.constant 0 : i32
    %c0_i32_0 = arith.constant 0 : i32
    %c0_i32_1 = arith.constant 0 : i32
    return %c0_i32, %c0_i32_0 : i32, i32
  }
  func.func @transform_2(%arg0: i32) -> (i32, i32) {
    %c0_i32 = arith.constant 0 : i32
    %c0_i32_0 = arith.constant 0 : i32
    %c0_i32_1 = arith.constant 0 : i32
    return %c0_i32, %c0_i32_0 : i32, i32
  }
  func.func @transform_3(%arg0: i32) -> (i32, i32) {
    %c0_i32 = arith.constant 0 : i32
    %c0_i32_0 = arith.constant 0 : i32
    return %arg0, %c0_i32 : i32, i32
  }
}

module attributes {stable_mosaic.version = 11 : i64} {
  func.func @_gemm_t_act_kernel(%arg0: i32, %arg1: memref<16x1024xbf16, #tpu.memory_space<vmem>>, %arg2: memref<1024x128xbf16, #tpu.memory_space<vmem>>, %arg3: memref<16x128xf32, #tpu.memory_space<vmem>>) attributes {dimension_semantics = [#tpu.dimension_semantics<parallel>], iteration_bounds = array<i64: 1>, scalar_prefetch = 0 : i64, scratch_operands = 0 : i64, tpu.core_type = #tpu.core_type<tc>, window_params = [{pipeline_mode = #tpu.pipeline_mode<synchronous>, transform_indices = @transform_0, window_bounds = array<i64: 16, 1024>}, {transform_indices = @transform_1, window_bounds = array<i64: 1024, 128>}, {transform_indices = @transform_2, window_bounds = array<i64: 16, 128>}]} {
    %c0 = arith.constant 0 : index
    %c0_0 = arith.constant 0 : index
    %0 = vector.load %arg1[%c0, %c0_0] : memref<16x1024xbf16, #tpu.memory_space<vmem>>, vector<16x1024xbf16>
    %c0_1 = arith.constant 0 : index
    %c0_2 = arith.constant 0 : index
    %1 = vector.load %arg2[%c0_1, %c0_2] : memref<1024x128xbf16, #tpu.memory_space<vmem>>, vector<1024x128xbf16>
    %cst = arith.constant dense<0.000000e+00> : vector<16x128xf32>
    %2 = tpu.matmul %0, %1, %cst {dimension_numbers = #tpu.dot_dimension_numbers<[1], [0], [0], [1], [0, 0, 1, 1], [], []>} : vector<16x1024xbf16>, vector<1024x128xbf16>, vector<16x128xf32> -> vector<16x128xf32>
    %3 = arith.negf %2 : vector<16x128xf32>
    %4 = math.exp %3 : vector<16x128xf32>
    %cst_3 = arith.constant 1.000000e+00 : f32
    %5 = vector.broadcast %cst_3 : f32 to vector<16x128xf32>
    %6 = arith.addf %5, %4 : vector<16x128xf32>
    %7 = arith.divf %5, %6 : vector<16x128xf32>
    %c0_4 = arith.constant 0 : index
    %c0_5 = arith.constant 0 : index
    %8 = vector.load %arg3[%c0_4, %c0_5] : memref<16x128xf32, #tpu.memory_space<vmem>>, vector<16x128xf32>
    tpu.vector_store %arg3[%c0_4, %c0_5], %7 {strides = array<i32>} : memref<16x128xf32, #tpu.memory_space<vmem>>, vector<16x128xf32>,
    return
  }
  func.func @transform_0(%arg0: i32) -> (i32, i32) {
    %c0_i32 = arith.constant 0 : i32
    %c0_i32_0 = arith.constant 0 : i32
    %c0_i32_1 = arith.constant 0 : i32
    return %c0_i32, %c0_i32_0 : i32, i32
  }
  func.func @transform_1(%arg0: i32) -> (i32, i32) {
    %c0_i32 = arith.constant 0 : i32
    %c0_i32_0 = arith.constant 0 : i32
    return %c0_i32, %arg0 : i32, i32
  }
  func.func @transform_2(%arg0: i32) -> (i32, i32) {
    %c0_i32 = arith.constant 0 : i32
    %c0_i32_0 = arith.constant 0 : i32
    return %c0_i32, %arg0 : i32, i32
  }
}

</mosaic_0001>

<llo_original>
// kernel: discriminator_forward.9
$region0: #{discriminator_forward.9}
  #allocation0 [shape = 'u32[]', space=smem, size = 0x4, offset = 0x4, fixed_abs, tag = 'smem constant byte address 0x4 - core index']
  #allocation1 [shape = 'u32[72,128]{1,0:T(1,128)}', space=vmem, size = 0x9000, scoped, tag = 'internal scratch']
  %s0 = inlined_call_operand.vmem [shape: bf16[16,48], index: 0, kind: input, shape index: {}]
  %s1 = inlined_call_operand.vmem [shape: bf16[48,8192], index: 1, kind: input, shape index: {}]
  %s2 = inlined_call_operand.vmem [shape: bf16[16,8192], index: 2, kind: output, shape index: {}]
  %s3 = sld [smem:[#allocation0]]
  $region83: #{discriminator_forward.9} parent=0
    _
  %s5 = ssub.s32 1, %s3
  %s6 = scalar_select 0, %s5, %s3
  $region1: #{discriminator_forward.9} parent=0
    #allocation2 [shape = 'u8[393216]{0}', space=vmem, size = 0x60000, scoped, tag = 'input window, operand 1']
    #allocation3 [shape = 'u8[131072]{0}', space=vmem, size = 0x20000, scoped, tag = 'output window, operand 0']
    loop: start=0, step=1, limit=6
    $region2: #{discriminator_forward.9} parent=1 // loop_pre_header
      _
    $region3: #{discriminator_forward.9} parent=1 // loop_header
      %s8 = sphi 0, %s12
      %p9 = scmp.ge.s32.totalorder %s8, 6
      %s16 = sphi 0, %s16
      %s18 = sphi 0, %s16
      %s19 = sphi 0, %s18
      %s33 = sphi 0, %s19
      %s39 = sphi 0, %s41
      %s42 = sphi 0, %s39
      %s43 = sphi 0, %s42
      %s59 = sphi 0, %s43
      %s65 = sphi 0, %s67
      %s68 = sphi 0, %s65
      %s69 = sphi 0, %s68
      %s85 = sphi 0, %s69
    $region4: #{discriminator_forward.9} parent=1 // loop_header_branch
      %11 = sbr.rel (%p9) target = $region8
    $region5: #{discriminator_forward.9} parent=1 // loop_body
      %s13 = ssub.s32 %s8, 1
      %s14 = ssub.s32 %s8, 2
      %s15 = sadd.s32 %s8, 1
      %s17 = sadd.s32 %s16, 1
      %p20 = scmp.eq.s32.totalorder %s8, 3
      %p21 = scmp.ne.s32.totalorder %s16, %s18
      %p22 = scmp.eq.s32.totalorder %s8, 0
      %p23 = por %p21, %p22
      %p24 = scmp.ne.s32.totalorder %s16, %s18
      %p25 = scmp.eq.s32.totalorder %s13, 3
      %p26 = por %p24, %p25
      %p27 = scmp.ne.s32.totalorder %s18, %s19
      %p28 = scmp.eq.s32.totalorder %s13, 0
      %p29 = por %p27, %p28
      %p30 = scmp.ne.s32.totalorder %s18, %s19
      %p31 = scmp.eq.s32.totalorder %s14, 3
      %p32 = por %p30, %p31
      %p34 = scmp.ne.s32.totalorder %s19, %s33
      %p35 = scmp.eq.s32.totalorder %s14, 0
      %p36 = por %p34, %p35
      %s37 = ssub.s32 %s8, %s15
      %p38 = scmp.eq.s32.totalorder %s37, 0
      %s40 = sadd.s32 %s39, 1
      %s41 = scalar_select %p38, %s39, %s40
      %p44 = pneg %p38
      %p45 = scmp.eq.s32.totalorder %s8, 3
      %p46 = por %p44, %p45
      %p47 = scmp.ne.s32.totalorder %s39, %s42
      %p48 = scmp.eq.s32.totalorder %s8, 0
      %p49 = por %p47, %p48
      %p50 = scmp.ne.s32.totalorder %s39, %s42
      %p51 = scmp.eq.s32.totalorder %s13, 3
      %p52 = por %p50, %p51
      %p53 = scmp.ne.s32.totalorder %s42, %s43
      %p54 = scmp.eq.s32.totalorder %s13, 0
      %p55 = por %p53, %p54
      %p56 = scmp.ne.s32.totalorder %s42, %s43
      %p57 = scmp.eq.s32.totalorder %s14, 3
      %p58 = por %p56, %p57
      %p60 = scmp.ne.s32.totalorder %s43, %s59
      %p61 = scmp.eq.s32.totalorder %s14, 0
      %p62 = por %p60, %p61
      %s63 = ssub.s32 %s8, %s15
      %p64 = scmp.eq.s32.totalorder %s63, 0
      %s66 = sadd.s32 %s65, 1
      %s67 = scalar_select %p64, %s65, %s66
      %p70 = pneg %p64
      %p71 = scmp.eq.s32.totalorder %s8, 3
      %p72 = por %p70, %p71
      %p73 = scmp.ne.s32.totalorder %s65, %s68
      %p74 = scmp.eq.s32.totalorder %s8, 0
      %p75 = por %p73, %p74
      %p76 = scmp.ne.s32.totalorder %s65, %s68
      %p77 = scmp.eq.s32.totalorder %s13, 3
      %p78 = por %p76, %p77
      %p79 = scmp.ne.s32.totalorder %s68, %s69
      %p80 = scmp.eq.s32.totalorder %s13, 0
      %p81 = por %p79, %p80
      %p82 = scmp.ne.s32.totalorder %s68, %s69
      %p83 = scmp.eq.s32.totalorder %s14, 3
      %p84 = por %p82, %p83
      %p86 = scmp.ne.s32.totalorder %s69, %s85
      %p87 = scmp.eq.s32.totalorder %s14, 0
      %p88 = por %p86, %p87
      %p89 = scmp.le.s32.totalorder 1, %s8
      %p90 = scmp.lt.s32.totalorder %s8, 5
      %p91 = pnand %p89, %p90
      %p92 = pneg %p91
      // Predicated region
      $region9: #{discriminator_forward.9} parent=5 // pred_check
        _
      $region10: #{discriminator_forward.9} parent=5 // pred_check_branch
        %94 = sbr.rel (%p91) target = $region12
      $region11: #{discriminator_forward.9} parent=5 // pred_region
        %s95 = ssub.s32 %s8, 1
        // Predicated region
        $region13: #{discriminator_forward.9} parent=11 // pred_check
          %p96 = pneg %p29
        $region14: #{discriminator_forward.9} parent=11 // pred_check_branch
          %98 = sbr.rel (%p96) target = $region16
        $region15: #{discriminator_forward.9} parent=11 // pred_region
          _
        $region16: #{discriminator_forward.9} parent=11 // pred_fallthru
          _
      $region12: #{discriminator_forward.9} parent=5 // pred_fallthru
        _
      %p99 = scmp.lt.s32.totalorder %s8, 4
      // Predicated region
      $region17: #{discriminator_forward.9} parent=5 // pred_check
        %p100 = pneg %p99
      $region18: #{discriminator_forward.9} parent=5 // pred_check_branch
        %102 = sbr.rel (%p100) target = $region20
      $region19: #{discriminator_forward.9} parent=5 // pred_region
        // Predicated region
        $region21: #{discriminator_forward.9} parent=19 // pred_check
          %p103 = pneg %p49
        $region22: #{discriminator_forward.9} parent=19 // pred_check_branch
          %105 = sbr.rel (%p103) target = $region24
        $region23: #{discriminator_forward.9} parent=19 // pred_region
          %s106 = sand.u32 %s39, 1
          %s107 = sand.u32 %s39, 1
          %s108 = smul.addr %s107, 384
          %s109 = scalar_lea.vmem [#allocation2], %s108
          %s110 = smul.u32 16, %s8
          %s111 = smul.addr %s110, 4
          %s112 = scalar_lea.vmem %s1, %s111
          // Predicated region
          $region25: #{discriminator_forward.9} parent=23 // pred_check
            _
          $region26: #{discriminator_forward.9} parent=23 // pred_check_branch
            %114 = sbr.rel (0) target = $region28
          $region27: #{discriminator_forward.9} parent=23 // pred_region
            // Predicated region
            $region29: #{discriminator_forward.9} parent=27 // pred_check
              _
            $region30: #{discriminator_forward.9} parent=27 // pred_check_branch
              %116 = sbr.rel (0) target = $region32
            $region31: #{discriminator_forward.9} parent=27 // pred_region
              loop: start=0, step=1, limit=1
              $region33: #{discriminator_forward.9} parent=31 // loop_pre_header
                _
              $region34: #{discriminator_forward.9} parent=31 // loop_header
                %s118 = sphi 0, %s122
                %p119 = scmp.ge.s32.totalorder %s118, 1
                %s123 = sphi %s112, %s112
                %s124 = sphi %s109, %s109
              $region35: #{discriminator_forward.9} parent=31 // loop_header_branch
                %121 = sbr.rel (%p119) target = $region39
              $region36: #{discriminator_forward.9} parent=31 // loop_body
                %v125 = vld [vmem:[%s123] sm:$0xff]
                %126 = vst [vmem:[%s124] sm:$0xff] %v125
                %v127 = vld [vmem:[%s123 + $0x8] sm:$0xff]
                %128 = vst [vmem:[%s124 + $0x8] sm:$0xff] %v127
                %v129 = vld [vmem:[%s123 + $0x10] sm:$0xff]
                %130 = vst [vmem:[%s124 + $0x10] sm:$0xff] %v129
                %v131 = vld [vmem:[%s123 + $0x18] sm:$0xff]
                %132 = vst [vmem:[%s124 + $0x18] sm:$0xff] %v131
                %v133 = vld [vmem:[%s123 + $0x20] sm:$0xff]
                %134 = vst [vmem:[%s124 + $0x20] sm:$0xff] %v133
                %v135 = vld [vmem:[%s123 + $0x28] sm:$0xff]
                %136 = vst [vmem:[%s124 + $0x28] sm:$0xff] %v135
                %v137 = vld [vmem:[%s123 + $0x30] sm:$0xff]
                %138 = vst [vmem:[%s124 + $0x30] sm:$0xff] %v137
                %v139 = vld [vmem:[%s123 + $0x38] sm:$0xff]
                %140 = vst [vmem:[%s124 + $0x38] sm:$0xff] %v139
                %v141 = vld [vmem:[%s123 + $0x100] sm:$0xff]
                %142 = vst [vmem:[%s124 + $0x40] sm:$0xff] %v141
                %v143 = vld [vmem:[%s123 + $0x108] sm:$0xff]
                %144 = vst [vmem:[%s124 + $0x48] sm:$0xff] %v143
                %v145 = vld [vmem:[%s123 + $0x110] sm:$0xff]
                %146 = vst [vmem:[%s124 + $0x50] sm:$0xff] %v145
                %v147 = vld [vmem:[%s123 + $0x118] sm:$0xff]
                %148 = vst [vmem:[%s124 + $0x58] sm:$0xff] %v147
                %v149 = vld [vmem:[%s123 + $0x120] sm:$0xff]
                %150 = vst [vmem:[%s124 + $0x60] sm:$0xff] %v149
                %v151 = vld [vmem:[%s123 + $0x128] sm:$0xff]
                %152 = vst [vmem:[%s124 + $0x68] sm:$0xff] %v151
                %v153 = vld [vmem:[%s123 + $0x130] sm:$0xff]
                %154 = vst [vmem:[%s124 + $0x70] sm:$0xff] %v153
                %v155 = vld [vmem:[%s123 + $0x138] sm:$0xff]
                %156 = vst [vmem:[%s124 + $0x78] sm:$0xff] %v155
                %v157 = vld [vmem:[%s123 + $0x200] sm:$0xff]
                %158 = vst [vmem:[%s124 + $0x80] sm:$0xff] %v157
                %v159 = vld [vmem:[%s123 + $0x208] sm:$0xff]
                %160 = vst [vmem:[%s124 + $0x88] sm:$0xff] %v159
                %v161 = vld [vmem:[%s123 + $0x210] sm:$0xff]
                %162 = vst [vmem:[%s124 + $0x90] sm:$0xff] %v161
                %v163 = vld [vmem:[%s123 + $0x218] sm:$0xff]
                %164 = vst [vmem:[%s124 + $0x98] sm:$0xff] %v163
                %v165 = vld [vmem:[%s123 + $0x220] sm:$0xff]
                %166 = vst [vmem:[%s124 + $0xa0] sm:$0xff] %v165
                %v167 = vld [vmem:[%s123 + $0x228] sm:$0xff]
                %168 = vst [vmem:[%s124 + $0xa8] sm:$0xff] %v167
                %v169 = vld [vmem:[%s123 + $0x230] sm:$0xff]
                %170 = vst [vmem:[%s124 + $0xb0] sm:$0xff] %v169
                %v171 = vld [vmem:[%s123 + $0x238] sm:$0xff]
                %172 = vst [vmem:[%s124 + $0xb8] sm:$0xff] %v171
                %v173 = vld [vmem:[%s123 + $0x300] sm:$0xff]
                %174 = vst [vmem:[%s124 + $0xc0] sm:$0xff] %v173
                %v175 = vld [vmem:[%s123 + $0x308] sm:$0xff]
                %176 = vst [vmem:[%s124 + $0xc8] sm:$0xff] %v175
                %v177 = vld [vmem:[%s123 + $0x310] sm:$0xff]
                %178 = vst [vmem:[%s124 + $0xd0] sm:$0xff] %v177
                %v179 = vld [vmem:[%s123 + $0x318] sm:$0xff]
                %180 = vst [vmem:[%s124 + $0xd8] sm:$0xff] %v179
                %v181 = vld [vmem:[%s123 + $0x320] sm:$0xff]
                %182 = vst [vmem:[%s124 + $0xe0] sm:$0xff] %v181
                %v183 = vld [vmem:[%s123 + $0x328] sm:$0xff]
                %184 = vst [vmem:[%s124 + $0xe8] sm:$0xff] %v183
                %v185 = vld [vmem:[%s123 + $0x330] sm:$0xff]
                %186 = vst [vmem:[%s124 + $0xf0] sm:$0xff] %v185
                %v187 = vld [vmem:[%s123 + $0x338] sm:$0xff]
                %188 = vst [vmem:[%s124 + $0xf8] sm:$0xff] %v187
                %v189 = vld [vmem:[%s123 + $0x400] sm:$0xff]
                %190 = vst [vmem:[%s124 + $0x100] sm:$0xff] %v189
                %v191 = vld [vmem:[%s123 + $0x408] sm:$0xff]
                %192 = vst [vmem:[%s124 + $0x108] sm:$0xff] %v191
                %v193 = vld [vmem:[%s123 + $0x410] sm:$0xff]
                %194 = vst [vmem:[%s124 + $0x110] sm:$0xff] %v193
                %v195 = vld [vmem:[%s123 + $0x418] sm:$0xff]
                %196 = vst [vmem:[%s124 + $0x118] sm:$0xff] %v195
                %v197 = vld [vmem:[%s123 + $0x420] sm:$0xff]
                %198 = vst [vmem:[%s124 + $0x120] sm:$0xff] %v197
                %v199 = vld [vmem:[%s123 + $0x428] sm:$0xff]
                %200 = vst [vmem:[%s124 + $0x128] sm:$0xff] %v199
                %v201 = vld [vmem:[%s123 + $0x430] sm:$0xff]
                %202 = vst [vmem:[%s124 + $0x130] sm:$0xff] %v201
                %v203 = vld [vmem:[%s123 + $0x438] sm:$0xff]
                %204 = vst [vmem:[%s124 + $0x138] sm:$0xff] %v203
                %v205 = vld [vmem:[%s123 + $0x500] sm:$0xff]
                %206 = vst [vmem:[%s124 + $0x140] sm:$0xff] %v205
                %v207 = vld [vmem:[%s123 + $0x508] sm:$0xff]
                %208 = vst [vmem:[%s124 + $0x148] sm:$0xff] %v207
                %v209 = vld [vmem:[%s123 + $0x510] sm:$0xff]
                %210 = vst [vmem:[%s124 + $0x150] sm:$0xff] %v209
                %v211 = vld [vmem:[%s123 + $0x518] sm:$0xff]
                %212 = vst [vmem:[%s124 + $0x158] sm:$0xff] %v211
                %v213 = vld [vmem:[%s123 + $0x520] sm:$0xff]
                %214 = vst [vmem:[%s124 + $0x160] sm:$0xff] %v213
                %v215 = vld [vmem:[%s123 + $0x528] sm:$0xff]
                %216 = vst [vmem:[%s124 + $0x168] sm:$0xff] %v215
                %v217 = vld [vmem:[%s123 + $0x530] sm:$0xff]
                %218 = vst [vmem:[%s124 + $0x170] sm:$0xff] %v217
                %v219 = vld [vmem:[%s123 + $0x538] sm:$0xff]
                %220 = vst [vmem:[%s124 + $0x178] sm:$0xff] %v219
              $region37: #{discriminator_forward.9} parent=31 // loop_footer
                %s122 = sadd.s32 1, %s118
              $region38: #{discriminator_forward.9} parent=31 // loop_footer_branch
                %117 = sbr.rel target = $region34
              $region39: #{discriminator_forward.9} parent=31 // loop_exit
                _
            $region32: #{discriminator_forward.9} parent=27 // pred_fallthru
              _
            // Predicated region
            $region40: #{discriminator_forward.9} parent=27 // pred_check
              _
            $region41: #{discriminator_forward.9} parent=27 // pred_check_branch
              %222 = sbr.rel target = $region43
            $region42: #{discriminator_forward.9} parent=27 // pred_region
              _
            $region43: #{discriminator_forward.9} parent=27 // pred_fallthru
              _
          $region28: #{discriminator_forward.9} parent=23 // pred_fallthru
            _
          %223 = vnop
        $region24: #{discriminator_forward.9} parent=19 // pred_fallthru
          _
      $region20: #{discriminator_forward.9} parent=5 // pred_fallthru
        _
      %p224 = scmp.le.s32.totalorder 1, %s8
      %p225 = scmp.lt.s32.totalorder %s8, 5
      %p226 = pnand %p224, %p225
      %p227 = pneg %p226
      // Predicated region
      $region44: #{discriminator_forward.9} parent=5 // pred_check
        _
      $region45: #{discriminator_forward.9} parent=5 // pred_check_branch
        %229 = sbr.rel (%p226) target = $region47
      $region46: #{discriminator_forward.9} parent=5 // pred_region
        %s230 = ssub.s32 %s8, 1
        %s231 = sand.u32 %s42, 1
        %s232 = sand.u32 %s42, 1
        %s233 = smul.addr %s232, 384
        %s234 = scalar_lea.vmem [#allocation2], %s233
        // Predicated region
        $region48: #{discriminator_forward.9} parent=46 // pred_check
          %p235 = pneg %p55
        $region49: #{discriminator_forward.9} parent=46 // pred_check_branch
          %237 = sbr.rel (%p235) target = $region51
        $region50: #{discriminator_forward.9} parent=46 // pred_region
          _
        $region51: #{discriminator_forward.9} parent=46 // pred_fallthru
          _
        %p238 = pneg %p29
        %p239 = pneg %p26
        %s240 = sand.u32 %s42, 1
        %s241 = sand.u32 %s42, 1
        %s242 = smul.addr %s241, 384
        %s243 = scalar_lea.vmem [#allocation2], %s242
        %p244 = pneg %p55
        %p245 = pneg %p52
        %p246 = pneg %p81
        %p247 = pneg %p78
        %s248 = sand.u32 %s68, 1
        %s249 = sand.u32 %s68, 1
        %s250 = smul.addr %s249, 128
        %s251 = scalar_lea.vmem [#allocation3], %s250
        %s252 = smul.u32 16, %s13
        %s253 = smul.u32 16, %s13
        %v255 = vld [vmem:[%s0] sm:$0xf]
        %v256 = vld [vmem:[%s0 + $0x4] sm:$0xf]
        %v257 = vld [vmem:[%s234] sm:$0xff]
        %v258 = vld [vmem:[%s234 + $0x8] sm:$0xff]
        %v259 = vld [vmem:[%s234 + $0x10] sm:$0xff]
        %v260 = vld [vmem:[%s234 + $0x18] sm:$0xff]
        %v261 = vld [vmem:[%s234 + $0x20] sm:$0xff]
        %v262 = vld [vmem:[%s234 + $0x28] sm:$0xff]
        %v263 = vld [vmem:[%s234 + $0x30] sm:$0xff]
        %v264 = vld [vmem:[%s234 + $0x38] sm:$0xff]
        %v265 = vld [vmem:[%s234 + $0x40] sm:$0xff]
        %v266 = vld [vmem:[%s234 + $0x48] sm:$0xff]
        %v267 = vld [vmem:[%s234 + $0x50] sm:$0xff]
        %v268 = vld [vmem:[%s234 + $0x58] sm:$0xff]
        %v269 = vld [vmem:[%s234 + $0x60] sm:$0xff]
        %v270 = vld [vmem:[%s234 + $0x68] sm:$0xff]
        %v271 = vld [vmem:[%s234 + $0x70] sm:$0xff]
        %v272 = vld [vmem:[%s234 + $0x78] sm:$0xff]
        %v273 = vld [vmem:[%s234 + $0x80] sm:$0xff]
        %v274 = vld [vmem:[%s234 + $0x88] sm:$0xff]
        %v275 = vld [vmem:[%s234 + $0x90] sm:$0xff]
        %v276 = vld [vmem:[%s234 + $0x98] sm:$0xff]
        %v277 = vld [vmem:[%s234 + $0xa0] sm:$0xff]
        %v278 = vld [vmem:[%s234 + $0xa8] sm:$0xff]
        %v279 = vld [vmem:[%s234 + $0xb0] sm:$0xff]
        %v280 = vld [vmem:[%s234 + $0xb8] sm:$0xff]
        %v281 = vld [vmem:[%s234 + $0xc0] sm:$0xff]
        %v282 = vld [vmem:[%s234 + $0xc8] sm:$0xff]
        %v283 = vld [vmem:[%s234 + $0xd0] sm:$0xff]
        %v284 = vld [vmem:[%s234 + $0xd8] sm:$0xff]
        %v285 = vld [vmem:[%s234 + $0xe0] sm:$0xff]
        %v286 = vld [vmem:[%s234 + $0xe8] sm:$0xff]
        %v287 = vld [vmem:[%s234 + $0xf0] sm:$0xff]
        %v288 = vld [vmem:[%s234 + $0xf8] sm:$0xff]
        %v289 = vld [vmem:[%s234 + $0x100] sm:$0xff]
        %v290 = vld [vmem:[%s234 + $0x108] sm:$0xff]
        %v291 = vld [vmem:[%s234 + $0x110] sm:$0xff]
        %v292 = vld [vmem:[%s234 + $0x118] sm:$0xff]
        %v293 = vld [vmem:[%s234 + $0x120] sm:$0xff]
        %v294 = vld [vmem:[%s234 + $0x128] sm:$0xff]
        %v295 = vld [vmem:[%s234 + $0x130] sm:$0xff]
        %v296 = vld [vmem:[%s234 + $0x138] sm:$0xff]
        %v297 = vld [vmem:[%s234 + $0x140] sm:$0xff]
        %v298 = vld [vmem:[%s234 + $0x148] sm:$0xff]
        %v299 = vld [vmem:[%s234 + $0x150] sm:$0xff]
        %v300 = vld [vmem:[%s234 + $0x158] sm:$0xff]
        %v301 = vld [vmem:[%s234 + $0x160] sm:$0xff]
        %v302 = vld [vmem:[%s234 + $0x168] sm:$0xff]
        %v303 = vld [vmem:[%s234 + $0x170] sm:$0xff]
        %v304 = vld [vmem:[%s234 + $0x178] sm:$0xff]
        %v307 = vunpack.c.l.b16 %v255
        %v308 = vunpack.c.l.b16 %v256
        %v309 = vpack.c.b16 %v308, %v307
        %v358 = vunpack.c.l.b16 %v257
        %v359 = vunpack.c.h.b16 %v257
        %v360 = vunpack.c.l.b16 %v258
        %v361 = vunpack.c.h.b16 %v258
        %v362 = vunpack.c.l.b16 %v259
        %v363 = vunpack.c.h.b16 %v259
        %v364 = vunpack.c.l.b16 %v260
        %v365 = vunpack.c.h.b16 %v260
        %v366 = vunpack.c.l.b16 %v261
        %v367 = vunpack.c.h.b16 %v261
        %v368 = vunpack.c.l.b16 %v262
        %v369 = vunpack.c.h.b16 %v262
        %v370 = vunpack.c.l.b16 %v263
        %v371 = vunpack.c.h.b16 %v263
        %v372 = vunpack.c.l.b16 %v264
        %v373 = vunpack.c.h.b16 %v264
        %v374 = vunpack.c.l.b16 %v265
        %v375 = vunpack.c.h.b16 %v265
        %v376 = vunpack.c.l.b16 %v266
        %v377 = vunpack.c.h.b16 %v266
        %v378 = vunpack.c.l.b16 %v267
        %v379 = vunpack.c.h.b16 %v267
        %v380 = vunpack.c.l.b16 %v268
        %v381 = vunpack.c.h.b16 %v268
        %v382 = vunpack.c.l.b16 %v269
        %v383 = vunpack.c.h.b16 %v269
        %v384 = vunpack.c.l.b16 %v270
        %v385 = vunpack.c.h.b16 %v270
        %v386 = vunpack.c.l.b16 %v271
        %v387 = vunpack.c.h.b16 %v271
        %v388 = vunpack.c.l.b16 %v272
        %v389 = vunpack.c.h.b16 %v272
        %v390 = vunpack.c.l.b16 %v273
        %v391 = vunpack.c.h.b16 %v273
        %v392 = vunpack.c.l.b16 %v274
        %v393 = vunpack.c.h.b16 %v274
        %v394 = vunpack.c.l.b16 %v275
        %v395 = vunpack.c.h.b16 %v275
        %v396 = vunpack.c.l.b16 %v276
        %v397 = vunpack.c.h.b16 %v276
        %v398 = vunpack.c.l.b16 %v277
        %v399 = vunpack.c.h.b16 %v277
        %v400 = vunpack.c.l.b16 %v278
        %v401 = vunpack.c.h.b16 %v278
        %v402 = vunpack.c.l.b16 %v279
        %v403 = vunpack.c.h.b16 %v279
        %v404 = vunpack.c.l.b16 %v280
        %v405 = vunpack.c.h.b16 %v280
        %v406 = vunpack.c.l.b16 %v281
        %v407 = vunpack.c.h.b16 %v281
        %v408 = vunpack.c.l.b16 %v282
        %v409 = vunpack.c.h.b16 %v282
        %v410 = vunpack.c.l.b16 %v283
        %v411 = vunpack.c.h.b16 %v283
        %v412 = vunpack.c.l.b16 %v284
        %v413 = vunpack.c.h.b16 %v284
        %v414 = vunpack.c.l.b16 %v285
        %v415 = vunpack.c.h.b16 %v285
        %v416 = vunpack.c.l.b16 %v286
        %v417 = vunpack.c.h.b16 %v286
        %v418 = vunpack.c.l.b16 %v287
        %v419 = vunpack.c.h.b16 %v287
        %v420 = vunpack.c.l.b16 %v288
        %v421 = vunpack.c.h.b16 %v288
        %v422 = vunpack.c.l.b16 %v289
        %v423 = vunpack.c.h.b16 %v289
        %v424 = vunpack.c.l.b16 %v290
        %v425 = vunpack.c.h.b16 %v290
        %v426 = vunpack.c.l.b16 %v291
        %v427 = vunpack.c.h.b16 %v291
        %v428 = vunpack.c.l.b16 %v292
        %v429 = vunpack.c.h.b16 %v292
        %v430 = vunpack.c.l.b16 %v293
        %v431 = vunpack.c.h.b16 %v293
        %v432 = vunpack.c.l.b16 %v294
        %v433 = vunpack.c.h.b16 %v294
        %v434 = vunpack.c.l.b16 %v295
        %v435 = vunpack.c.h.b16 %v295
        %v436 = vunpack.c.l.b16 %v296
        %v437 = vunpack.c.h.b16 %v296
        %v438 = vunpack.c.l.b16 %v297
        %v439 = vunpack.c.h.b16 %v297
        %v440 = vunpack.c.l.b16 %v298
        %v441 = vunpack.c.h.b16 %v298
        %v442 = vunpack.c.l.b16 %v299
        %v443 = vunpack.c.h.b16 %v299
        %v444 = vunpack.c.l.b16 %v300
        %v445 = vunpack.c.h.b16 %v300
        %v446 = vunpack.c.l.b16 %v301
        %v447 = vunpack.c.h.b16 %v301
        %v448 = vunpack.c.l.b16 %v302
        %v449 = vunpack.c.h.b16 %v302
        %v450 = vunpack.c.l.b16 %v303
        %v451 = vunpack.c.h.b16 %v303
        %v452 = vunpack.c.l.b16 %v304
        %v453 = vunpack.c.h.b16 %v304
        %v454 = vpack.c.b16 %v374, %v358
        %v455 = vpack.c.b16 %v375, %v359
        %v456 = vpack.c.b16 %v376, %v360
        %v457 = vpack.c.b16 %v377, %v361
        %v458 = vpack.c.b16 %v378, %v362
        %v459 = vpack.c.b16 %v379, %v363
        %v460 = vpack.c.b16 %v380, %v364
        %v461 = vpack.c.b16 %v381, %v365
        %v462 = vpack.c.b16 %v382, %v366
        %v463 = vpack.c.b16 %v383, %v367
        %v464 = vpack.c.b16 %v384, %v368
        %v465 = vpack.c.b16 %v385, %v369
        %v466 = vpack.c.b16 %v386, %v370
        %v467 = vpack.c.b16 %v387, %v371
        %v468 = vpack.c.b16 %v388, %v372
        %v469 = vpack.c.b16 %v389, %v373
        %v470 = vpack.c.b16 %v406, %v390
        %v471 = vpack.c.b16 %v407, %v391
        %v472 = vpack.c.b16 %v408, %v392
        %v473 = vpack.c.b16 %v409, %v393
        %v474 = vpack.c.b16 %v410, %v394
        %v475 = vpack.c.b16 %v411, %v395
        %v476 = vpack.c.b16 %v412, %v396
        %v477 = vpack.c.b16 %v413, %v397
        %v478 = vpack.c.b16 %v414, %v398
        %v479 = vpack.c.b16 %v415, %v399
        %v480 = vpack.c.b16 %v416, %v400
        %v481 = vpack.c.b16 %v417, %v401
        %v482 = vpack.c.b16 %v418, %v402
        %v483 = vpack.c.b16 %v419, %v403
        %v484 = vpack.c.b16 %v420, %v404
        %v485 = vpack.c.b16 %v421, %v405
        %v486 = vpack.c.b16 %v438, %v422
        %v487 = vpack.c.b16 %v439, %v423
        %v488 = vpack.c.b16 %v440, %v424
        %v489 = vpack.c.b16 %v441, %v425
        %v490 = vpack.c.b16 %v442, %v426
        %v491 = vpack.c.b16 %v443, %v427
        %v492 = vpack.c.b16 %v444, %v428
        %v493 = vpack.c.b16 %v445, %v429
        %v494 = vpack.c.b16 %v446, %v430
        %v495 = vpack.c.b16 %v447, %v431
        %v496 = vpack.c.b16 %v448, %v432
        %v497 = vpack.c.b16 %v449, %v433
        %v498 = vpack.c.b16 %v450, %v434
        %v499 = vpack.c.b16 %v451, %v435
        %v500 = vpack.c.b16 %v452, %v436
        %v501 = vpack.c.b16 %v453, %v437
        %vm550 = vcmask 392192
        %v552 = vsel %vm550, %v309, 0
        %554 = vmatpush.bf16.msra.mxu0 0
        %555 = vmatpush.bf16.msra.mxu0 0
        %556 = vmatpush.bf16.msra.mxu0 0
        %557 = vmatpush.bf16.msra.mxu0 0
        %558 = vmatpush.bf16.msra.mxu0 0
        %559 = vmatpush.bf16.msra.mxu0 %v486
        %560 = vmatpush.bf16.msra.mxu0 %v470
        %561 = vmatpush.bf16.msra.mxu0 %v454
        %562 = vmatmul.bf16.gmra.mxu0 %v552
        %v563 = vpop.f32.mrf.mxu0
        %v564 = vadd.f32 0.0, %v563
        %v565 = vpop.f32.mrf.mxu0
        %v566 = vadd.f32 0.0, %v565
        %567 = vdwg.mxu0
        %568 = vmatpush.bf16.msra.mxu0 0
        %569 = vmatpush.bf16.msra.mxu0 0
        %570 = vmatpush.bf16.msra.mxu0 0
        %571 = vmatpush.bf16.msra.mxu0 0
        %572 = vmatpush.bf16.msra.mxu0 0
        %573 = vmatpush.bf16.msra.mxu0 %v487
        %574 = vmatpush.bf16.msra.mxu0 %v471
        %575 = vmatpush.bf16.msra.mxu0 %v455
        %576 = vmatmul.bf16.gmra.mxu0 %v552
        %v577 = vpop.f32.mrf.mxu0
        %v578 = vadd.f32 0.0, %v577
        %v579 = vpop.f32.mrf.mxu0
        %v580 = vadd.f32 0.0, %v579
        %581 = vdwg.mxu0
        %582 = vmatpush.bf16.msra.mxu0 0
        %583 = vmatpush.bf16.msra.mxu0 0
        %584 = vmatpush.bf16.msra.mxu0 0
        %585 = vmatpush.bf16.msra.mxu0 0
        %586 = vmatpush.bf16.msra.mxu0 0
        %587 = vmatpush.bf16.msra.mxu0 %v488
        %588 = vmatpush.bf16.msra.mxu0 %v472
        %589 = vmatpush.bf16.msra.mxu0 %v456
        %590 = vmatmul.bf16.gmra.mxu0 %v552
        %v591 = vpop.f32.mrf.mxu0
        %v592 = vadd.f32 0.0, %v591
        %v593 = vpop.f32.mrf.mxu0
        %v594 = vadd.f32 0.0, %v593
        %595 = vdwg.mxu0
        %596 = vmatpush.bf16.msra.mxu0 0
        %597 = vmatpush.bf16.msra.mxu0 0
        %598 = vmatpush.bf16.msra.mxu0 0
        %599 = vmatpush.bf16.msra.mxu0 0
        %600 = vmatpush.bf16.msra.mxu0 0
        %601 = vmatpush.bf16.msra.mxu0 %v489
        %602 = vmatpush.bf16.msra.mxu0 %v473
        %603 = vmatpush.bf16.msra.mxu0 %v457
        %604 = vmatmul.bf16.gmra.mxu0 %v552
        %v605 = vpop.f32.mrf.mxu0
        %v606 = vadd.f32 0.0, %v605
        %v607 = vpop.f32.mrf.mxu0
        %v608 = vadd.f32 0.0, %v607
        %609 = vdwg.mxu0
        %610 = vmatpush.bf16.msra.mxu0 0
        %611 = vmatpush.bf16.msra.mxu0 0
        %612 = vmatpush.bf16.msra.mxu0 0
        %613 = vmatpush.bf16.msra.mxu0 0
        %614 = vmatpush.bf16.msra.mxu0 0
        %615 = vmatpush.bf16.msra.mxu0 %v490
        %616 = vmatpush.bf16.msra.mxu0 %v474
        %617 = vmatpush.bf16.msra.mxu0 %v458
        %618 = vmatmul.bf16.gmra.mxu0 %v552
        %v619 = vpop.f32.mrf.mxu0
        %v620 = vadd.f32 0.0, %v619
        %v621 = vpop.f32.mrf.mxu0
        %v622 = vadd.f32 0.0, %v621
        %623 = vdwg.mxu0
        %624 = vmatpush.bf16.msra.mxu0 0
        %625 = vmatpush.bf16.msra.mxu0 0
        %626 = vmatpush.bf16.msra.mxu0 0
        %627 = vmatpush.bf16.msra.mxu0 0
        %628 = vmatpush.bf16.msra.mxu0 0
        %629 = vmatpush.bf16.msra.mxu0 %v491
        %630 = vmatpush.bf16.msra.mxu0 %v475
        %631 = vmatpush.bf16.msra.mxu0 %v459
        %632 = vmatmul.bf16.gmra.mxu0 %v552
        %v633 = vpop.f32.mrf.mxu0
        %v634 = vadd.f32 0.0, %v633
        %v635 = vpop.f32.mrf.mxu0
        %v636 = vadd.f32 0.0, %v635
        %637 = vdwg.mxu0
        %638 = vmatpush.bf16.msra.mxu0 0
        %639 = vmatpush.bf16.msra.mxu0 0
        %640 = vmatpush.bf16.msra.mxu0 0
        %641 = vmatpush.bf16.msra.mxu0 0
        %642 = vmatpush.bf16.msra.mxu0 0
        %643 = vmatpush.bf16.msra.mxu0 %v492
        %644 = vmatpush.bf16.msra.mxu0 %v476
        %645 = vmatpush.bf16.msra.mxu0 %v460
        %646 = vmatmul.bf16.gmra.mxu0 %v552
        %v647 = vpop.f32.mrf.mxu0
        %v648 = vadd.f32 0.0, %v647
        %v649 = vpop.f32.mrf.mxu0
        %v650 = vadd.f32 0.0, %v649
        %651 = vdwg.mxu0
        %652 = vmatpush.bf16.msra.mxu0 0
        %653 = vmatpush.bf16.msra.mxu0 0
        %654 = vmatpush.bf16.msra.mxu0 0
        %655 = vmatpush.bf16.msra.mxu0 0
        %656 = vmatpush.bf16.msra.mxu0 0
        %657 = vmatpush.bf16.msra.mxu0 %v493
        %658 = vmatpush.bf16.msra.mxu0 %v477
        %659 = vmatpush.bf16.msra.mxu0 %v461
        %660 = vmatmul.bf16.gmra.mxu0 %v552
        %v661 = vpop.f32.mrf.mxu0
        %v662 = vadd.f32 0.0, %v661
        %v663 = vpop.f32.mrf.mxu0
        %v664 = vadd.f32 0.0, %v663
        %665 = vdwg.mxu0
        %666 = vmatpush.bf16.msra.mxu0 0
        %667 = vmatpush.bf16.msra.mxu0 0
        %668 = vmatpush.bf16.msra.mxu0 0
        %669 = vmatpush.bf16.msra.mxu0 0
        %670 = vmatpush.bf16.msra.mxu0 0
        %671 = vmatpush.bf16.msra.mxu0 %v494
        %672 = vmatpush.bf16.msra.mxu0 %v478
        %673 = vmatpush.bf16.msra.mxu0 %v462
        %674 = vmatmul.bf16.gmra.mxu0 %v552
        %v675 = vpop.f32.mrf.mxu0
        %v676 = vadd.f32 0.0, %v675
        %v677 = vpop.f32.mrf.mxu0
        %v678 = vadd.f32 0.0, %v677
        %679 = vdwg.mxu0
        %680 = vmatpush.bf16.msra.mxu0 0
        %681 = vmatpush.bf16.msra.mxu0 0
        %682 = vmatpush.bf16.msra.mxu0 0
        %683 = vmatpush.bf16.msra.mxu0 0
        %684 = vmatpush.bf16.msra.mxu0 0
        %685 = vmatpush.bf16.msra.mxu0 %v495
        %686 = vmatpush.bf16.msra.mxu0 %v479
        %687 = vmatpush.bf16.msra.mxu0 %v463
        %688 = vmatmul.bf16.gmra.mxu0 %v552
        %v689 = vpop.f32.mrf.mxu0
        %v690 = vadd.f32 0.0, %v689
        %v691 = vpop.f32.mrf.mxu0
        %v692 = vadd.f32 0.0, %v691
        %693 = vdwg.mxu0
        %694 = vmatpush.bf16.msra.mxu0 0
        %695 = vmatpush.bf16.msra.mxu0 0
        %696 = vmatpush.bf16.msra.mxu0 0
        %697 = vmatpush.bf16.msra.mxu0 0
        %698 = vmatpush.bf16.msra.mxu0 0
        %699 = vmatpush.bf16.msra.mxu0 %v496
        %700 = vmatpush.bf16.msra.mxu0 %v480
        %701 = vmatpush.bf16.msra.mxu0 %v464
        %702 = vmatmul.bf16.gmra.mxu0 %v552
        %v703 = vpop.f32.mrf.mxu0
        %v704 = vadd.f32 0.0, %v703
        %v705 = vpop.f32.mrf.mxu0
        %v706 = vadd.f32 0.0, %v705
        %707 = vdwg.mxu0
        %708 = vmatpush.bf16.msra.mxu0 0
        %709 = vmatpush.bf16.msra.mxu0 0
        %710 = vmatpush.bf16.msra.mxu0 0
        %711 = vmatpush.bf16.msra.mxu0 0
        %712 = vmatpush.bf16.msra.mxu0 0
        %713 = vmatpush.bf16.msra.mxu0 %v497
        %714 = vmatpush.bf16.msra.mxu0 %v481
        %715 = vmatpush.bf16.msra.mxu0 %v465
        %716 = vmatmul.bf16.gmra.mxu0 %v552
        %v717 = vpop.f32.mrf.mxu0
        %v718 = vadd.f32 0.0, %v717
        %v719 = vpop.f32.mrf.mxu0
        %v720 = vadd.f32 0.0, %v719
        %721 = vdwg.mxu0
        %722 = vmatpush.bf16.msra.mxu0 0
        %723 = vmatpush.bf16.msra.mxu0 0
        %724 = vmatpush.bf16.msra.mxu0 0
        %725 = vmatpush.bf16.msra.mxu0 0
        %726 = vmatpush.bf16.msra.mxu0 0
        %727 = vmatpush.bf16.msra.mxu0 %v498
        %728 = vmatpush.bf16.msra.mxu0 %v482
        %729 = vmatpush.bf16.msra.mxu0 %v466
        %730 = vmatmul.bf16.gmra.mxu0 %v552
        %v731 = vpop.f32.mrf.mxu0
        %v732 = vadd.f32 0.0, %v731
        %v733 = vpop.f32.mrf.mxu0
        %v734 = vadd.f32 0.0, %v733
        %735 = vdwg.mxu0
        %736 = vmatpush.bf16.msra.mxu0 0
        %737 = vmatpush.bf16.msra.mxu0 0
        %738 = vmatpush.bf16.msra.mxu0 0
        %739 = vmatpush.bf16.msra.mxu0 0
        %740 = vmatpush.bf16.msra.mxu0 0
        %741 = vmatpush.bf16.msra.mxu0 %v499
        %742 = vmatpush.bf16.msra.mxu0 %v483
        %743 = vmatpush.bf16.msra.mxu0 %v467
        %744 = vmatmul.bf16.gmra.mxu0 %v552
        %v745 = vpop.f32.mrf.mxu0
        %v746 = vadd.f32 0.0, %v745
        %v747 = vpop.f32.mrf.mxu0
        %v748 = vadd.f32 0.0, %v747
        %749 = vdwg.mxu0
        %750 = vmatpush.bf16.msra.mxu0 0
        %751 = vmatpush.bf16.msra.mxu0 0
        %752 = vmatpush.bf16.msra.mxu0 0
        %753 = vmatpush.bf16.msra.mxu0 0
        %754 = vmatpush.bf16.msra.mxu0 0
        %755 = vmatpush.bf16.msra.mxu0 %v500
        %756 = vmatpush.bf16.msra.mxu0 %v484
        %757 = vmatpush.bf16.msra.mxu0 %v468
        %758 = vmatmul.bf16.gmra.mxu0 %v552
        %v759 = vpop.f32.mrf.mxu0
        %v760 = vadd.f32 0.0, %v759
        %v761 = vpop.f32.mrf.mxu0
        %v762 = vadd.f32 0.0, %v761
        %763 = vdwg.mxu0
        %764 = vmatpush.bf16.msra.mxu0 0
        %765 = vmatpush.bf16.msra.mxu0 0
        %766 = vmatpush.bf16.msra.mxu0 0
        %767 = vmatpush.bf16.msra.mxu0 0
        %768 = vmatpush.bf16.msra.mxu0 0
        %769 = vmatpush.bf16.msra.mxu0 %v501
        %770 = vmatpush.bf16.msra.mxu0 %v485
        %771 = vmatpush.bf16.msra.mxu0 %v469
        %772 = vmatmul.bf16.gmra.mxu0 %v552
        %v773 = vpop.f32.mrf.mxu0
        %v774 = vadd.f32 0.0, %v773
        %v775 = vpop.f32.mrf.mxu0
        %v776 = vadd.f32 0.0, %v775
        %777 = vdwg.mxu0
        %vm778 = vcmp.ge.f32.partialorder %v564, 0.0
        %vm779 = vcmp.ge.f32.partialorder %v578, 0.0
        %vm780 = vcmp.ge.f32.partialorder %v592, 0.0
        %vm781 = vcmp.ge.f32.partialorder %v606, 0.0
        %vm782 = vcmp.ge.f32.partialorder %v620, 0.0
        %vm783 = vcmp.ge.f32.partialorder %v634, 0.0
        %vm784 = vcmp.ge.f32.partialorder %v648, 0.0
        %vm785 = vcmp.ge.f32.partialorder %v662, 0.0
        %vm786 = vcmp.ge.f32.partialorder %v676, 0.0
        %vm787 = vcmp.ge.f32.partialorder %v690, 0.0
        %vm788 = vcmp.ge.f32.partialorder %v704, 0.0
        %vm789 = vcmp.ge.f32.partialorder %v718, 0.0
        %vm790 = vcmp.ge.f32.partialorder %v732, 0.0
        %vm791 = vcmp.ge.f32.partialorder %v746, 0.0
        %vm792 = vcmp.ge.f32.partialorder %v760, 0.0
        %vm793 = vcmp.ge.f32.partialorder %v774, 0.0
        %vm794 = vcmp.ge.f32.partialorder %v566, 0.0
        %vm795 = vcmp.ge.f32.partialorder %v580, 0.0
        %vm796 = vcmp.ge.f32.partialorder %v594, 0.0
        %vm797 = vcmp.ge.f32.partialorder %v608, 0.0
        %vm798 = vcmp.ge.f32.partialorder %v622, 0.0
        %vm799 = vcmp.ge.f32.partialorder %v636, 0.0
        %vm800 = vcmp.ge.f32.partialorder %v650, 0.0
        %vm801 = vcmp.ge.f32.partialorder %v664, 0.0
        %vm802 = vcmp.ge.f32.partialorder %v678, 0.0
        %vm803 = vcmp.ge.f32.partialorder %v692, 0.0
        %vm804 = vcmp.ge.f32.partialorder %v706, 0.0
        %vm805 = vcmp.ge.f32.partialorder %v720, 0.0
        %vm806 = vcmp.ge.f32.partialorder %v734, 0.0
        %vm807 = vcmp.ge.f32.partialorder %v748, 0.0
        %vm808 = vcmp.ge.f32.partialorder %v762, 0.0
        %vm809 = vcmp.ge.f32.partialorder %v776, 0.0
        %v810 = vmul.f32 %v564, 0.2
        %v811 = vmul.f32 %v578, 0.2
        %v812 = vmul.f32 %v592, 0.2
        %v813 = vmul.f32 %v606, 0.2
        %v814 = vmul.f32 %v620, 0.2
        %v815 = vmul.f32 %v634, 0.2
        %v816 = vmul.f32 %v648, 0.2
        %v817 = vmul.f32 %v662, 0.2
        %v818 = vmul.f32 %v676, 0.2
        %v819 = vmul.f32 %v690, 0.2
        %v820 = vmul.f32 %v704, 0.2
        %v821 = vmul.f32 %v718, 0.2
        %v822 = vmul.f32 %v732, 0.2
        %v823 = vmul.f32 %v746, 0.2
        %v824 = vmul.f32 %v760, 0.2
        %v825 = vmul.f32 %v774, 0.2
        %v826 = vmul.f32 %v566, 0.2
        %v827 = vmul.f32 %v580, 0.2
        %v828 = vmul.f32 %v594, 0.2
        %v829 = vmul.f32 %v608, 0.2
        %v830 = vmul.f32 %v622, 0.2
        %v831 = vmul.f32 %v636, 0.2
        %v832 = vmul.f32 %v650, 0.2
        %v833 = vmul.f32 %v664, 0.2
        %v834 = vmul.f32 %v678, 0.2
        %v835 = vmul.f32 %v692, 0.2
        %v836 = vmul.f32 %v706, 0.2
        %v837 = vmul.f32 %v720, 0.2
        %v838 = vmul.f32 %v734, 0.2
        %v839 = vmul.f32 %v748, 0.2
        %v840 = vmul.f32 %v762, 0.2
        %v841 = vmul.f32 %v776, 0.2
        %v842 = vsel %vm778, %v564, %v810
        %v843 = vsel %vm779, %v578, %v811
        %v844 = vsel %vm780, %v592, %v812
        %v845 = vsel %vm781, %v606, %v813
        %v846 = vsel %vm782, %v620, %v814
        %v847 = vsel %vm783, %v634, %v815
        %v848 = vsel %vm784, %v648, %v816
        %v849 = vsel %vm785, %v662, %v817
        %v850 = vsel %vm786, %v676, %v818
        %v851 = vsel %vm787, %v690, %v819
        %v852 = vsel %vm788, %v704, %v820
        %v853 = vsel %vm789, %v718, %v821
        %v854 = vsel %vm790, %v732, %v822
        %v855 = vsel %vm791, %v746, %v823
        %v856 = vsel %vm792, %v760, %v824
        %v857 = vsel %vm793, %v774, %v825
        %v858 = vsel %vm794, %v566, %v826
        %v859 = vsel %vm795, %v580, %v827
        %v860 = vsel %vm796, %v594, %v828
        %v861 = vsel %vm797, %v608, %v829
        %v862 = vsel %vm798, %v622, %v830
        %v863 = vsel %vm799, %v636, %v831
        %v864 = vsel %vm800, %v650, %v832
        %v865 = vsel %vm801, %v664, %v833
        %v866 = vsel %vm802, %v678, %v834
        %v867 = vsel %vm803, %v692, %v835
        %v868 = vsel %vm804, %v706, %v836
        %v869 = vsel %vm805, %v720, %v837
        %v870 = vsel %vm806, %v734, %v838
        %v871 = vsel %vm807, %v748, %v839
        %v872 = vsel %vm808, %v762, %v840
        %v873 = vsel %vm809, %v776, %v841
        %v874 = vpack.c.bf16 %v843, %v842
        %v875 = vpack.c.bf16 %v845, %v844
        %v876 = vpack.c.bf16 %v847, %v846
        %v877 = vpack.c.bf16 %v849, %v848
        %v878 = vpack.c.bf16 %v851, %v850
        %v879 = vpack.c.bf16 %v853, %v852
        %v880 = vpack.c.bf16 %v855, %v854
        %v881 = vpack.c.bf16 %v857, %v856
        %v882 = vpack.c.bf16 %v859, %v858
        %v883 = vpack.c.bf16 %v861, %v860
        %v884 = vpack.c.bf16 %v863, %v862
        %v885 = vpack.c.bf16 %v865, %v864
        %v886 = vpack.c.bf16 %v867, %v866
        %v887 = vpack.c.bf16 %v869, %v868
        %v888 = vpack.c.bf16 %v871, %v870
        %v889 = vpack.c.bf16 %v873, %v872
        %890 = vst [vmem:[%s251] sm:$0xff] %v874
        %891 = vst [vmem:[%s251 + $0x8] sm:$0xff] %v875
        %892 = vst [vmem:[%s251 + $0x10] sm:$0xff] %v876
        %893 = vst [vmem:[%s251 + $0x18] sm:$0xff] %v877
        %894 = vst [vmem:[%s251 + $0x20] sm:$0xff] %v878
        %895 = vst [vmem:[%s251 + $0x28] sm:$0xff] %v879
        %896 = vst [vmem:[%s251 + $0x30] sm:$0xff] %v880
        %897 = vst [vmem:[%s251 + $0x38] sm:$0xff] %v881
        %898 = vst [vmem:[%s251 + $0x40] sm:$0xff] %v882
        %899 = vst [vmem:[%s251 + $0x48] sm:$0xff] %v883
        %900 = vst [vmem:[%s251 + $0x50] sm:$0xff] %v884
        %901 = vst [vmem:[%s251 + $0x58] sm:$0xff] %v885
        %902 = vst [vmem:[%s251 + $0x60] sm:$0xff] %v886
        %903 = vst [vmem:[%s251 + $0x68] sm:$0xff] %v887
        %904 = vst [vmem:[%s251 + $0x70] sm:$0xff] %v888
        %905 = vst [vmem:[%s251 + $0x78] sm:$0xff] %v889
        %s906 = sand.u32 %s68, 1
        %s907 = sand.u32 %s68, 1
        %s908 = smul.addr %s907, 128
        %s909 = scalar_lea.vmem [#allocation3], %s908
        // Predicated region
        $region52: #{discriminator_forward.9} parent=46 // pred_check
          %p910 = pneg %p78
        $region53: #{discriminator_forward.9} parent=46 // pred_check_branch
          %912 = sbr.rel (%p910) target = $region55
        $region54: #{discriminator_forward.9} parent=46 // pred_region
          %s913 = smul.u32 16, %s13
          %s914 = smul.addr %s913, 4
          %s915 = scalar_lea.vmem %s2, %s914
          // Predicated region
          $region56: #{discriminator_forward.9} parent=54 // pred_check
            _
          $region57: #{discriminator_forward.9} parent=54 // pred_check_branch
            %917 = sbr.rel (0) target = $region59
          $region58: #{discriminator_forward.9} parent=54 // pred_region
            // Predicated region
            $region60: #{discriminator_forward.9} parent=58 // pred_check
              _
            $region61: #{discriminator_forward.9} parent=58 // pred_check_branch
              %919 = sbr.rel (0) target = $region63
            $region62: #{discriminator_forward.9} parent=58 // pred_region
              loop: start=0, step=1, limit=1
              $region64: #{discriminator_forward.9} parent=62 // loop_pre_header
                _
              $region65: #{discriminator_forward.9} parent=62 // loop_header
                %s921 = sphi 0, %s925
                %p922 = scmp.ge.s32.totalorder %s921, 1
                %s926 = sphi %s909, %s909
                %s927 = sphi %s915, %s915
              $region66: #{discriminator_forward.9} parent=62 // loop_header_branch
                %924 = sbr.rel (%p922) target = $region70
              $region67: #{discriminator_forward.9} parent=62 // loop_body
                %v928 = vld [vmem:[%s926] sm:$0xff]
                %929 = vst [vmem:[%s927] sm:$0xff] %v928
                %v930 = vld [vmem:[%s926 + $0x8] sm:$0xff]
                %931 = vst [vmem:[%s927 + $0x8] sm:$0xff] %v930
                %v932 = vld [vmem:[%s926 + $0x10] sm:$0xff]
                %933 = vst [vmem:[%s927 + $0x10] sm:$0xff] %v932
                %v934 = vld [vmem:[%s926 + $0x18] sm:$0xff]
                %935 = vst [vmem:[%s927 + $0x18] sm:$0xff] %v934
                %v936 = vld [vmem:[%s926 + $0x20] sm:$0xff]
                %937 = vst [vmem:[%s927 + $0x20] sm:$0xff] %v936
                %v938 = vld [vmem:[%s926 + $0x28] sm:$0xff]
                %939 = vst [vmem:[%s927 + $0x28] sm:$0xff] %v938
                %v940 = vld [vmem:[%s926 + $0x30] sm:$0xff]
                %941 = vst [vmem:[%s927 + $0x30] sm:$0xff] %v940
                %v942 = vld [vmem:[%s926 + $0x38] sm:$0xff]
                %943 = vst [vmem:[%s927 + $0x38] sm:$0xff] %v942
                %v944 = vld [vmem:[%s926 + $0x40] sm:$0xff]
                %945 = vst [vmem:[%s927 + $0x100] sm:$0xff] %v944
                %v946 = vld [vmem:[%s926 + $0x48] sm:$0xff]
                %947 = vst [vmem:[%s927 + $0x108] sm:$0xff] %v946
                %v948 = vld [vmem:[%s926 + $0x50] sm:$0xff]
                %949 = vst [vmem:[%s927 + $0x110] sm:$0xff] %v948
                %v950 = vld [vmem:[%s926 + $0x58] sm:$0xff]
                %951 = vst [vmem:[%s927 + $0x118] sm:$0xff] %v950
                %v952 = vld [vmem:[%s926 + $0x60] sm:$0xff]
                %953 = vst [vmem:[%s927 + $0x120] sm:$0xff] %v952
                %v954 = vld [vmem:[%s926 + $0x68] sm:$0xff]
                %955 = vst [vmem:[%s927 + $0x128] sm:$0xff] %v954
                %v956 = vld [vmem:[%s926 + $0x70] sm:$0xff]
                %957 = vst [vmem:[%s927 + $0x130] sm:$0xff] %v956
                %v958 = vld [vmem:[%s926 + $0x78] sm:$0xff]
                %959 = vst [vmem:[%s927 + $0x138] sm:$0xff] %v958
              $region68: #{discriminator_forward.9} parent=62 // loop_footer
                %s925 = sadd.s32 1, %s921
              $region69: #{discriminator_forward.9} parent=62 // loop_footer_branch
                %920 = sbr.rel target = $region65
              $region70: #{discriminator_forward.9} parent=62 // loop_exit
                _
            $region63: #{discriminator_forward.9} parent=58 // pred_fallthru
              _
            // Predicated region
            $region71: #{discriminator_forward.9} parent=58 // pred_check
              _
            $region72: #{discriminator_forward.9} parent=58 // pred_check_branch
              %961 = sbr.rel target = $region74
            $region73: #{discriminator_forward.9} parent=58 // pred_region
              _
            $region74: #{discriminator_forward.9} parent=58 // pred_fallthru
              _
          $region59: #{discriminator_forward.9} parent=54 // pred_fallthru
            _
          %962 = vnop
        $region55: #{discriminator_forward.9} parent=46 // pred_fallthru
          _
      $region47: #{discriminator_forward.9} parent=5 // pred_fallthru
        _
      %p963 = scmp.le.s32.totalorder 2, %s8
      // Predicated region
      $region75: #{discriminator_forward.9} parent=5 // pred_check
        %p964 = pneg %p963
      $region76: #{discriminator_forward.9} parent=5 // pred_check_branch
        %966 = sbr.rel (%p964) target = $region78
      $region77: #{discriminator_forward.9} parent=5 // pred_region
        %s967 = ssub.s32 %s8, 2
        // Predicated region
        $region79: #{discriminator_forward.9} parent=77 // pred_check
          %p968 = pneg %p84
        $region80: #{discriminator_forward.9} parent=77 // pred_check_branch
          %970 = sbr.rel (%p968) target = $region82
        $region81: #{discriminator_forward.9} parent=77 // pred_region
          %s971 = sand.u32 %s69, 1
          %s972 = sand.u32 %s69, 1
          %s973 = smul.addr %s972, 128
          %s974 = scalar_lea.vmem [#allocation3], %s973
        $region82: #{discriminator_forward.9} parent=77 // pred_fallthru
          _
      $region78: #{discriminator_forward.9} parent=5 // pred_fallthru
        _
    $region6: #{discriminator_forward.9} parent=1 // loop_footer
      %s12 = sadd.s32 1, %s8
    $region7: #{discriminator_forward.9} parent=1 // loop_footer_branch
      %7 = sbr.rel target = $region3
    $region8: #{discriminator_forward.9} parent=1 // loop_exit
      _

// kernel: discriminator_forward.10
$region0: #{discriminator_forward.10}
  #allocation0 [shape = 'u32[]', space=smem, size = 0x4, offset = 0x4, fixed_abs, tag = 'smem constant byte address 0x4 - core index']
  #allocation1 [shape = 'u32[72,128]{1,0:T(1,128)}', space=vmem, size = 0x9000, scoped, tag = 'internal scratch']
  %s0 = inlined_call_operand.vmem [shape: bf16[16,128], index: 0, kind: input, shape index: {}]
  %s1 = inlined_call_operand.vmem [shape: bf16[128,2048], index: 1, kind: input, shape index: {}]
  %s2 = inlined_call_operand.vmem [shape: bf16[16,2048], index: 2, kind: output, shape index: {}]
  %s3 = sld [smem:[#allocation0]]
  $region83: #{discriminator_forward.10} parent=0
    _
  %s5 = ssub.s32 1, %s3
  %s6 = scalar_select 0, %s5, %s3
  $region1: #{discriminator_forward.10} parent=0
    #allocation2 [shape = 'u8[524288]{0}', space=vmem, size = 0x80000, scoped, tag = 'input window, operand 1']
    #allocation3 [shape = 'u8[65536]{0}', space=vmem, size = 0x10000, scoped, tag = 'output window, operand 0']
    loop: start=0, step=1, limit=4
    $region2: #{discriminator_forward.10} parent=1 // loop_pre_header
      _
    $region3: #{discriminator_forward.10} parent=1 // loop_header
      %s8 = sphi 0, %s12
      %p9 = scmp.ge.s32.totalorder %s8, 4
      %s16 = sphi 0, %s16
      %s18 = sphi 0, %s16
      %s19 = sphi 0, %s18
      %s33 = sphi 0, %s19
      %s39 = sphi 0, %s41
      %s42 = sphi 0, %s39
      %s43 = sphi 0, %s42
      %s59 = sphi 0, %s43
      %s65 = sphi 0, %s67
      %s68 = sphi 0, %s65
      %s69 = sphi 0, %s68
      %s85 = sphi 0, %s69
    $region4: #{discriminator_forward.10} parent=1 // loop_header_branch
      %11 = sbr.rel (%p9) target = $region8
    $region5: #{discriminator_forward.10} parent=1 // loop_body
      %s13 = ssub.s32 %s8, 1
      %s14 = ssub.s32 %s8, 2
      %s15 = sadd.s32 %s8, 1
      %s17 = sadd.s32 %s16, 1
      %p20 = scmp.eq.s32.totalorder %s8, 1
      %p21 = scmp.ne.s32.totalorder %s16, %s18
      %p22 = scmp.eq.s32.totalorder %s8, 0
      %p23 = por %p21, %p22
      %p24 = scmp.ne.s32.totalorder %s16, %s18
      %p25 = scmp.eq.s32.totalorder %s13, 1
      %p26 = por %p24, %p25
      %p27 = scmp.ne.s32.totalorder %s18, %s19
      %p28 = scmp.eq.s32.totalorder %s13, 0
      %p29 = por %p27, %p28
      %p30 = scmp.ne.s32.totalorder %s18, %s19
      %p31 = scmp.eq.s32.totalorder %s14, 1
      %p32 = por %p30, %p31
      %p34 = scmp.ne.s32.totalorder %s19, %s33
      %p35 = scmp.eq.s32.totalorder %s14, 0
      %p36 = por %p34, %p35
      %s37 = ssub.s32 %s8, %s15
      %p38 = scmp.eq.s32.totalorder %s37, 0
      %s40 = sadd.s32 %s39, 1
      %s41 = scalar_select %p38, %s39, %s40
      %p44 = pneg %p38
      %p45 = scmp.eq.s32.totalorder %s8, 1
      %p46 = por %p44, %p45
      %p47 = scmp.ne.s32.totalorder %s39, %s42
      %p48 = scmp.eq.s32.totalorder %s8, 0
      %p49 = por %p47, %p48
      %p50 = scmp.ne.s32.totalorder %s39, %s42
      %p51 = scmp.eq.s32.totalorder %s13, 1
      %p52 = por %p50, %p51
      %p53 = scmp.ne.s32.totalorder %s42, %s43
      %p54 = scmp.eq.s32.totalorder %s13, 0
      %p55 = por %p53, %p54
      %p56 = scmp.ne.s32.totalorder %s42, %s43
      %p57 = scmp.eq.s32.totalorder %s14, 1
      %p58 = por %p56, %p57
      %p60 = scmp.ne.s32.totalorder %s43, %s59
      %p61 = scmp.eq.s32.totalorder %s14, 0
      %p62 = por %p60, %p61
      %s63 = ssub.s32 %s8, %s15
      %p64 = scmp.eq.s32.totalorder %s63, 0
      %s66 = sadd.s32 %s65, 1
      %s67 = scalar_select %p64, %s65, %s66
      %p70 = pneg %p64
      %p71 = scmp.eq.s32.totalorder %s8, 1
      %p72 = por %p70, %p71
      %p73 = scmp.ne.s32.totalorder %s65, %s68
      %p74 = scmp.eq.s32.totalorder %s8, 0
      %p75 = por %p73, %p74
      %p76 = scmp.ne.s32.totalorder %s65, %s68
      %p77 = scmp.eq.s32.totalorder %s13, 1
      %p78 = por %p76, %p77
      %p79 = scmp.ne.s32.totalorder %s68, %s69
      %p80 = scmp.eq.s32.totalorder %s13, 0
      %p81 = por %p79, %p80
      %p82 = scmp.ne.s32.totalorder %s68, %s69
      %p83 = scmp.eq.s32.totalorder %s14, 1
      %p84 = por %p82, %p83
      %p86 = scmp.ne.s32.totalorder %s69, %s85
      %p87 = scmp.eq.s32.totalorder %s14, 0
      %p88 = por %p86, %p87
      %p89 = scmp.le.s32.totalorder 1, %s8
      %p90 = scmp.lt.s32.totalorder %s8, 3
      %p91 = pnand %p89, %p90
      %p92 = pneg %p91
      // Predicated region
      $region9: #{discriminator_forward.10} parent=5 // pred_check
        _
      $region10: #{discriminator_forward.10} parent=5 // pred_check_branch
        %94 = sbr.rel (%p91) target = $region12
      $region11: #{discriminator_forward.10} parent=5 // pred_region
        %s95 = ssub.s32 %s8, 1
        // Predicated region
        $region13: #{discriminator_forward.10} parent=11 // pred_check
          %p96 = pneg %p29
        $region14: #{discriminator_forward.10} parent=11 // pred_check_branch
          %98 = sbr.rel (%p96) target = $region16
        $region15: #{discriminator_forward.10} parent=11 // pred_region
          _
        $region16: #{discriminator_forward.10} parent=11 // pred_fallthru
          _
      $region12: #{discriminator_forward.10} parent=5 // pred_fallthru
        _
      %p99 = scmp.lt.s32.totalorder %s8, 2
      // Predicated region
      $region17: #{discriminator_forward.10} parent=5 // pred_check
        %p100 = pneg %p99
      $region18: #{discriminator_forward.10} parent=5 // pred_check_branch
        %102 = sbr.rel (%p100) target = $region20
      $region19: #{discriminator_forward.10} parent=5 // pred_region
        // Predicated region
        $region21: #{discriminator_forward.10} parent=19 // pred_check
          %p103 = pneg %p49
        $region22: #{discriminator_forward.10} parent=19 // pred_check_branch
          %105 = sbr.rel (%p103) target = $region24
        $region23: #{discriminator_forward.10} parent=19 // pred_region
          %s106 = sand.u32 %s39, 1
          %s107 = sand.u32 %s39, 1
          %s108 = smul.addr %s107, 512
          %s109 = scalar_lea.vmem [#allocation2], %s108
          %s110 = smul.u32 8, %s8
          %s111 = smul.addr %s110, 4
          %s112 = scalar_lea.vmem %s1, %s111
          // Predicated region
          $region25: #{discriminator_forward.10} parent=23 // pred_check
            _
          $region26: #{discriminator_forward.10} parent=23 // pred_check_branch
            %114 = sbr.rel (0) target = $region28
          $region27: #{discriminator_forward.10} parent=23 // pred_region
            // Predicated region
            $region29: #{discriminator_forward.10} parent=27 // pred_check
              _
            $region30: #{discriminator_forward.10} parent=27 // pred_check_branch
              %116 = sbr.rel (0) target = $region32
            $region31: #{discriminator_forward.10} parent=27 // pred_region
              loop: start=0, step=1, limit=1
              $region33: #{discriminator_forward.10} parent=31 // loop_pre_header
                _
              $region34: #{discriminator_forward.10} parent=31 // loop_header
                %s118 = sphi 0, %s122
                %p119 = scmp.ge.s32.totalorder %s118, 1
                %s123 = sphi %s112, %s112
                %s124 = sphi %s109, %s109
              $region35: #{discriminator_forward.10} parent=31 // loop_header_branch
                %121 = sbr.rel (%p119) target = $region39
              $region36: #{discriminator_forward.10} parent=31 // loop_body
                %v125 = vld [vmem:[%s123] sm:$0xff]
                %126 = vst [vmem:[%s124] sm:$0xff] %v125
                %v127 = vld [vmem:[%s123 + $0x8] sm:$0xff]
                %128 = vst [vmem:[%s124 + $0x8] sm:$0xff] %v127
                %v129 = vld [vmem:[%s123 + $0x10] sm:$0xff]
                %130 = vst [vmem:[%s124 + $0x10] sm:$0xff] %v129
                %v131 = vld [vmem:[%s123 + $0x18] sm:$0xff]
                %132 = vst [vmem:[%s124 + $0x18] sm:$0xff] %v131
                %v133 = vld [vmem:[%s123 + $0x40] sm:$0xff]
                %134 = vst [vmem:[%s124 + $0x20] sm:$0xff] %v133
                %v135 = vld [vmem:[%s123 + $0x48] sm:$0xff]
                %136 = vst [vmem:[%s124 + $0x28] sm:$0xff] %v135
                %v137 = vld [vmem:[%s123 + $0x50] sm:$0xff]
                %138 = vst [vmem:[%s124 + $0x30] sm:$0xff] %v137
                %v139 = vld [vmem:[%s123 + $0x58] sm:$0xff]
                %140 = vst [vmem:[%s124 + $0x38] sm:$0xff] %v139
                %v141 = vld [vmem:[%s123 + $0x80] sm:$0xff]
                %142 = vst [vmem:[%s124 + $0x40] sm:$0xff] %v141
                %v143 = vld [vmem:[%s123 + $0x88] sm:$0xff]
                %144 = vst [vmem:[%s124 + $0x48] sm:$0xff] %v143
                %v145 = vld [vmem:[%s123 + $0x90] sm:$0xff]
                %146 = vst [vmem:[%s124 + $0x50] sm:$0xff] %v145
                %v147 = vld [vmem:[%s123 + $0x98] sm:$0xff]
                %148 = vst [vmem:[%s124 + $0x58] sm:$0xff] %v147
                %v149 = vld [vmem:[%s123 + $0xc0] sm:$0xff]
                %150 = vst [vmem:[%s124 + $0x60] sm:$0xff] %v149
                %v151 = vld [vmem:[%s123 + $0xc8] sm:$0xff]
                %152 = vst [vmem:[%s124 + $0x68] sm:$0xff] %v151
                %v153 = vld [vmem:[%s123 + $0xd0] sm:$0xff]
                %154 = vst [vmem:[%s124 + $0x70] sm:$0xff] %v153
                %v155 = vld [vmem:[%s123 + $0xd8] sm:$0xff]
                %156 = vst [vmem:[%s124 + $0x78] sm:$0xff] %v155
                %v157 = vld [vmem:[%s123 + $0x100] sm:$0xff]
                %158 = vst [vmem:[%s124 + $0x80] sm:$0xff] %v157
                %v159 = vld [vmem:[%s123 + $0x108] sm:$0xff]
                %160 = vst [vmem:[%s124 + $0x88] sm:$0xff] %v159
                %v161 = vld [vmem:[%s123 + $0x110] sm:$0xff]
                %162 = vst [vmem:[%s124 + $0x90] sm:$0xff] %v161
                %v163 = vld [vmem:[%s123 + $0x118] sm:$0xff]
                %164 = vst [vmem:[%s124 + $0x98] sm:$0xff] %v163
                %v165 = vld [vmem:[%s123 + $0x140] sm:$0xff]
                %166 = vst [vmem:[%s124 + $0xa0] sm:$0xff] %v165
                %v167 = vld [vmem:[%s123 + $0x148] sm:$0xff]
                %168 = vst [vmem:[%s124 + $0xa8] sm:$0xff] %v167
                %v169 = vld [vmem:[%s123 + $0x150] sm:$0xff]
                %170 = vst [vmem:[%s124 + $0xb0] sm:$0xff] %v169
                %v171 = vld [vmem:[%s123 + $0x158] sm:$0xff]
                %172 = vst [vmem:[%s124 + $0xb8] sm:$0xff] %v171
                %v173 = vld [vmem:[%s123 + $0x180] sm:$0xff]
                %174 = vst [vmem:[%s124 + $0xc0] sm:$0xff] %v173
                %v175 = vld [vmem:[%s123 + $0x188] sm:$0xff]
                %176 = vst [vmem:[%s124 + $0xc8] sm:$0xff] %v175
                %v177 = vld [vmem:[%s123 + $0x190] sm:$0xff]
                %178 = vst [vmem:[%s124 + $0xd0] sm:$0xff] %v177
                %v179 = vld [vmem:[%s123 + $0x198] sm:$0xff]
                %180 = vst [vmem:[%s124 + $0xd8] sm:$0xff] %v179
                %v181 = vld [vmem:[%s123 + $0x1c0] sm:$0xff]
                %182 = vst [vmem:[%s124 + $0xe0] sm:$0xff] %v181
                %v183 = vld [vmem:[%s123 + $0x1c8] sm:$0xff]
                %184 = vst [vmem:[%s124 + $0xe8] sm:$0xff] %v183
                %v185 = vld [vmem:[%s123 + $0x1d0] sm:$0xff]
                %186 = vst [vmem:[%s124 + $0xf0] sm:$0xff] %v185
                %v187 = vld [vmem:[%s123 + $0x1d8] sm:$0xff]
                %188 = vst [vmem:[%s124 + $0xf8] sm:$0xff] %v187
                %v189 = vld [vmem:[%s123 + $0x200] sm:$0xff]
                %190 = vst [vmem:[%s124 + $0x100] sm:$0xff] %v189
                %v191 = vld [vmem:[%s123 + $0x208] sm:$0xff]
                %192 = vst [vmem:[%s124 + $0x108] sm:$0xff] %v191
                %v193 = vld [vmem:[%s123 + $0x210] sm:$0xff]
                %194 = vst [vmem:[%s124 + $0x110] sm:$0xff] %v193
                %v195 = vld [vmem:[%s123 + $0x218] sm:$0xff]
                %196 = vst [vmem:[%s124 + $0x118] sm:$0xff] %v195
                %v197 = vld [vmem:[%s123 + $0x240] sm:$0xff]
                %198 = vst [vmem:[%s124 + $0x120] sm:$0xff] %v197
                %v199 = vld [vmem:[%s123 + $0x248] sm:$0xff]
                %200 = vst [vmem:[%s124 + $0x128] sm:$0xff] %v199
                %v201 = vld [vmem:[%s123 + $0x250] sm:$0xff]
                %202 = vst [vmem:[%s124 + $0x130] sm:$0xff] %v201
                %v203 = vld [vmem:[%s123 + $0x258] sm:$0xff]
                %204 = vst [vmem:[%s124 + $0x138] sm:$0xff] %v203
                %v205 = vld [vmem:[%s123 + $0x280] sm:$0xff]
                %206 = vst [vmem:[%s124 + $0x140] sm:$0xff] %v205
                %v207 = vld [vmem:[%s123 + $0x288] sm:$0xff]
                %208 = vst [vmem:[%s124 + $0x148] sm:$0xff] %v207
                %v209 = vld [vmem:[%s123 + $0x290] sm:$0xff]
                %210 = vst [vmem:[%s124 + $0x150] sm:$0xff] %v209
                %v211 = vld [vmem:[%s123 + $0x298] sm:$0xff]
                %212 = vst [vmem:[%s124 + $0x158] sm:$0xff] %v211
                %v213 = vld [vmem:[%s123 + $0x2c0] sm:$0xff]
                %214 = vst [vmem:[%s124 + $0x160] sm:$0xff] %v213
                %v215 = vld [vmem:[%s123 + $0x2c8] sm:$0xff]
                %216 = vst [vmem:[%s124 + $0x168] sm:$0xff] %v215
                %v217 = vld [vmem:[%s123 + $0x2d0] sm:$0xff]
                %218 = vst [vmem:[%s124 + $0x170] sm:$0xff] %v217
                %v219 = vld [vmem:[%s123 + $0x2d8] sm:$0xff]
                %220 = vst [vmem:[%s124 + $0x178] sm:$0xff] %v219
                %v221 = vld [vmem:[%s123 + $0x300] sm:$0xff]
                %222 = vst [vmem:[%s124 + $0x180] sm:$0xff] %v221
                %v223 = vld [vmem:[%s123 + $0x308] sm:$0xff]
                %224 = vst [vmem:[%s124 + $0x188] sm:$0xff] %v223
                %v225 = vld [vmem:[%s123 + $0x310] sm:$0xff]
                %226 = vst [vmem:[%s124 + $0x190] sm:$0xff] %v225
                %v227 = vld [vmem:[%s123 + $0x318] sm:$0xff]
                %228 = vst [vmem:[%s124 + $0x198] sm:$0xff] %v227
                %v229 = vld [vmem:[%s123 + $0x340] sm:$0xff]
                %230 = vst [vmem:[%s124 + $0x1a0] sm:$0xff] %v229
                %v231 = vld [vmem:[%s123 + $0x348] sm:$0xff]
                %232 = vst [vmem:[%s124 + $0x1a8] sm:$0xff] %v231
                %v233 = vld [vmem:[%s123 + $0x350] sm:$0xff]
                %234 = vst [vmem:[%s124 + $0x1b0] sm:$0xff] %v233
                %v235 = vld [vmem:[%s123 + $0x358] sm:$0xff]
                %236 = vst [vmem:[%s124 + $0x1b8] sm:$0xff] %v235
                %v237 = vld [vmem:[%s123 + $0x380] sm:$0xff]
                %238 = vst [vmem:[%s124 + $0x1c0] sm:$0xff] %v237
                %v239 = vld [vmem:[%s123 + $0x388] sm:$0xff]
                %240 = vst [vmem:[%s124 + $0x1c8] sm:$0xff] %v239
                %v241 = vld [vmem:[%s123 + $0x390] sm:$0xff]
                %242 = vst [vmem:[%s124 + $0x1d0] sm:$0xff] %v241
                %v243 = vld [vmem:[%s123 + $0x398] sm:$0xff]
                %244 = vst [vmem:[%s124 + $0x1d8] sm:$0xff] %v243
                %v245 = vld [vmem:[%s123 + $0x3c0] sm:$0xff]
                %246 = vst [vmem:[%s124 + $0x1e0] sm:$0xff] %v245
                %v247 = vld [vmem:[%s123 + $0x3c8] sm:$0xff]
                %248 = vst [vmem:[%s124 + $0x1e8] sm:$0xff] %v247
                %v249 = vld [vmem:[%s123 + $0x3d0] sm:$0xff]
                %250 = vst [vmem:[%s124 + $0x1f0] sm:$0xff] %v249
                %v251 = vld [vmem:[%s123 + $0x3d8] sm:$0xff]
                %252 = vst [vmem:[%s124 + $0x1f8] sm:$0xff] %v251
              $region37: #{discriminator_forward.10} parent=31 // loop_footer
                %s122 = sadd.s32 1, %s118
              $region38: #{discriminator_forward.10} parent=31 // loop_footer_branch
                %117 = sbr.rel target = $region34
              $region39: #{discriminator_forward.10} parent=31 // loop_exit
                _
            $region32: #{discriminator_forward.10} parent=27 // pred_fallthru
              _
            // Predicated region
            $region40: #{discriminator_forward.10} parent=27 // pred_check
              _
            $region41: #{discriminator_forward.10} parent=27 // pred_check_branch
              %254 = sbr.rel target = $region43
            $region42: #{discriminator_forward.10} parent=27 // pred_region
              _
            $region43: #{discriminator_forward.10} parent=27 // pred_fallthru
              _
          $region28: #{discriminator_forward.10} parent=23 // pred_fallthru
            _
          %255 = vnop
        $region24: #{discriminator_forward.10} parent=19 // pred_fallthru
          _
      $region20: #{discriminator_forward.10} parent=5 // pred_fallthru
        _
      %p256 = scmp.le.s32.totalorder 1, %s8
      %p257 = scmp.lt.s32.totalorder %s8, 3
      %p258 = pnand %p256, %p257
      %p259 = pneg %p258
      // Predicated region
      $region44: #{discriminator_forward.10} parent=5 // pred_check
        _
      $region45: #{discriminator_forward.10} parent=5 // pred_check_branch
        %261 = sbr.rel (%p258) target = $region47
      $region46: #{discriminator_forward.10} parent=5 // pred_region
        %s262 = ssub.s32 %s8, 1
        %s263 = sand.u32 %s42, 1
        %s264 = sand.u32 %s42, 1
        %s265 = smul.addr %s264, 512
        %s266 = scalar_lea.vmem [#allocation2], %s265
        // Predicated region
        $region48: #{discriminator_forward.10} parent=46 // pred_check
          %p267 = pneg %p55
        $region49: #{discriminator_forward.10} parent=46 // pred_check_branch
          %269 = sbr.rel (%p267) target = $region51
        $region50: #{discriminator_forward.10} parent=46 // pred_region
          _
        $region51: #{discriminator_forward.10} parent=46 // pred_fallthru
          _
        %p270 = pneg %p29
        %p271 = pneg %p26
        %s272 = sand.u32 %s42, 1
        %s273 = sand.u32 %s42, 1
        %s274 = smul.addr %s273, 512
        %s275 = scalar_lea.vmem [#allocation2], %s274
        %p276 = pneg %p55
        %p277 = pneg %p52
        %p278 = pneg %p81
        %p279 = pneg %p78
        %s280 = sand.u32 %s68, 1
        %s281 = sand.u32 %s68, 1
        %s282 = smul.addr %s281, 64
        %s283 = scalar_lea.vmem [#allocation3], %s282
        %s284 = smul.u32 8, %s13
        %s285 = smul.u32 8, %s13
        %v286 = vld [vmem:[%s0] sm:$0xf]
        %v287 = vld [vmem:[%s0 + $0x4] sm:$0xf]
        %v288 = vld [vmem:[%s266] sm:$0xff]
        %v289 = vld [vmem:[%s266 + $0x8] sm:$0xff]
        %v290 = vld [vmem:[%s266 + $0x10] sm:$0xff]
        %v291 = vld [vmem:[%s266 + $0x18] sm:$0xff]
        %v292 = vld [vmem:[%s266 + $0x20] sm:$0xff]
        %v293 = vld [vmem:[%s266 + $0x28] sm:$0xff]
        %v294 = vld [vmem:[%s266 + $0x30] sm:$0xff]
        %v295 = vld [vmem:[%s266 + $0x38] sm:$0xff]
        %v296 = vld [vmem:[%s266 + $0x40] sm:$0xff]
        %v297 = vld [vmem:[%s266 + $0x48] sm:$0xff]
        %v298 = vld [vmem:[%s266 + $0x50] sm:$0xff]
        %v299 = vld [vmem:[%s266 + $0x58] sm:$0xff]
        %v300 = vld [vmem:[%s266 + $0x60] sm:$0xff]
        %v301 = vld [vmem:[%s266 + $0x68] sm:$0xff]
        %v302 = vld [vmem:[%s266 + $0x70] sm:$0xff]
        %v303 = vld [vmem:[%s266 + $0x78] sm:$0xff]
        %v304 = vld [vmem:[%s266 + $0x80] sm:$0xff]
        %v305 = vld [vmem:[%s266 + $0x88] sm:$0xff]
        %v306 = vld [vmem:[%s266 + $0x90] sm:$0xff]
        %v307 = vld [vmem:[%s266 + $0x98] sm:$0xff]
        %v308 = vld [vmem:[%s266 + $0xa0] sm:$0xff]
        %v309 = vld [vmem:[%s266 + $0xa8] sm:$0xff]
        %v310 = vld [vmem:[%s266 + $0xb0] sm:$0xff]
        %v311 = vld [vmem:[%s266 + $0xb8] sm:$0xff]
        %v312 = vld [vmem:[%s266 + $0xc0] sm:$0xff]
        %v313 = vld [vmem:[%s266 + $0xc8] sm:$0xff]
        %v314 = vld [vmem:[%s266 + $0xd0] sm:$0xff]
        %v315 = vld [vmem:[%s266 + $0xd8] sm:$0xff]
        %v316 = vld [vmem:[%s266 + $0xe0] sm:$0xff]
        %v317 = vld [vmem:[%s266 + $0xe8] sm:$0xff]
        %v318 = vld [vmem:[%s266 + $0xf0] sm:$0xff]
        %v319 = vld [vmem:[%s266 + $0xf8] sm:$0xff]
        %v320 = vld [vmem:[%s266 + $0x100] sm:$0xff]
        %v321 = vld [vmem:[%s266 + $0x108] sm:$0xff]
        %v322 = vld [vmem:[%s266 + $0x110] sm:$0xff]
        %v323 = vld [vmem:[%s266 + $0x118] sm:$0xff]
        %v324 = vld [vmem:[%s266 + $0x120] sm:$0xff]
        %v325 = vld [vmem:[%s266 + $0x128] sm:$0xff]
        %v326 = vld [vmem:[%s266 + $0x130] sm:$0xff]
        %v327 = vld [vmem:[%s266 + $0x138] sm:$0xff]
        %v328 = vld [vmem:[%s266 + $0x140] sm:$0xff]
        %v329 = vld [vmem:[%s266 + $0x148] sm:$0xff]
        %v330 = vld [vmem:[%s266 + $0x150] sm:$0xff]
        %v331 = vld [vmem:[%s266 + $0x158] sm:$0xff]
        %v332 = vld [vmem:[%s266 + $0x160] sm:$0xff]
        %v333 = vld [vmem:[%s266 + $0x168] sm:$0xff]
        %v334 = vld [vmem:[%s266 + $0x170] sm:$0xff]
        %v335 = vld [vmem:[%s266 + $0x178] sm:$0xff]
        %v336 = vld [vmem:[%s266 + $0x180] sm:$0xff]
        %v337 = vld [vmem:[%s266 + $0x188] sm:$0xff]
        %v338 = vld [vmem:[%s266 + $0x190] sm:$0xff]
        %v339 = vld [vmem:[%s266 + $0x198] sm:$0xff]
        %v340 = vld [vmem:[%s266 + $0x1a0] sm:$0xff]
        %v341 = vld [vmem:[%s266 + $0x1a8] sm:$0xff]
        %v342 = vld [vmem:[%s266 + $0x1b0] sm:$0xff]
        %v343 = vld [vmem:[%s266 + $0x1b8] sm:$0xff]
        %v344 = vld [vmem:[%s266 + $0x1c0] sm:$0xff]
        %v345 = vld [vmem:[%s266 + $0x1c8] sm:$0xff]
        %v346 = vld [vmem:[%s266 + $0x1d0] sm:$0xff]
        %v347 = vld [vmem:[%s266 + $0x1d8] sm:$0xff]
        %v348 = vld [vmem:[%s266 + $0x1e0] sm:$0xff]
        %v349 = vld [vmem:[%s266 + $0x1e8] sm:$0xff]
        %v350 = vld [vmem:[%s266 + $0x1f0] sm:$0xff]
        %v351 = vld [vmem:[%s266 + $0x1f8] sm:$0xff]
        %v354 = vunpack.c.l.b16 %v286
        %v355 = vunpack.c.l.b16 %v287
        %v356 = vpack.c.b16 %v355, %v354
        %v422 = vunpack.c.l.b16 %v288
        %v423 = vunpack.c.h.b16 %v288
        %v424 = vunpack.c.l.b16 %v289
        %v425 = vunpack.c.h.b16 %v289
        %v426 = vunpack.c.l.b16 %v290
        %v427 = vunpack.c.h.b16 %v290
        %v428 = vunpack.c.l.b16 %v291
        %v429 = vunpack.c.h.b16 %v291
        %v430 = vunpack.c.l.b16 %v292
        %v431 = vunpack.c.h.b16 %v292
        %v432 = vunpack.c.l.b16 %v293
        %v433 = vunpack.c.h.b16 %v293
        %v434 = vunpack.c.l.b16 %v294
        %v435 = vunpack.c.h.b16 %v294
        %v436 = vunpack.c.l.b16 %v295
        %v437 = vunpack.c.h.b16 %v295
        %v438 = vunpack.c.l.b16 %v296
        %v439 = vunpack.c.h.b16 %v296
        %v440 = vunpack.c.l.b16 %v297
        %v441 = vunpack.c.h.b16 %v297
        %v442 = vunpack.c.l.b16 %v298
        %v443 = vunpack.c.h.b16 %v298
        %v444 = vunpack.c.l.b16 %v299
        %v445 = vunpack.c.h.b16 %v299
        %v446 = vunpack.c.l.b16 %v300
        %v447 = vunpack.c.h.b16 %v300
        %v448 = vunpack.c.l.b16 %v301
        %v449 = vunpack.c.h.b16 %v301
        %v450 = vunpack.c.l.b16 %v302
        %v451 = vunpack.c.h.b16 %v302
        %v452 = vunpack.c.l.b16 %v303
        %v453 = vunpack.c.h.b16 %v303
        %v454 = vunpack.c.l.b16 %v304
        %v455 = vunpack.c.h.b16 %v304
        %v456 = vunpack.c.l.b16 %v305
        %v457 = vunpack.c.h.b16 %v305
        %v458 = vunpack.c.l.b16 %v306
        %v459 = vunpack.c.h.b16 %v306
        %v460 = vunpack.c.l.b16 %v307
        %v461 = vunpack.c.h.b16 %v307
        %v462 = vunpack.c.l.b16 %v308
        %v463 = vunpack.c.h.b16 %v308
        %v464 = vunpack.c.l.b16 %v309
        %v465 = vunpack.c.h.b16 %v309
        %v466 = vunpack.c.l.b16 %v310
        %v467 = vunpack.c.h.b16 %v310
        %v468 = vunpack.c.l.b16 %v311
        %v469 = vunpack.c.h.b16 %v311
        %v470 = vunpack.c.l.b16 %v312
        %v471 = vunpack.c.h.b16 %v312
        %v472 = vunpack.c.l.b16 %v313
        %v473 = vunpack.c.h.b16 %v313
        %v474 = vunpack.c.l.b16 %v314
        %v475 = vunpack.c.h.b16 %v314
        %v476 = vunpack.c.l.b16 %v315
        %v477 = vunpack.c.h.b16 %v315
        %v478 = vunpack.c.l.b16 %v316
        %v479 = vunpack.c.h.b16 %v316
        %v480 = vunpack.c.l.b16 %v317
        %v481 = vunpack.c.h.b16 %v317
        %v482 = vunpack.c.l.b16 %v318
        %v483 = vunpack.c.h.b16 %v318
        %v484 = vunpack.c.l.b16 %v319
        %v485 = vunpack.c.h.b16 %v319
        %v486 = vunpack.c.l.b16 %v320
        %v487 = vunpack.c.h.b16 %v320
        %v488 = vunpack.c.l.b16 %v321
        %v489 = vunpack.c.h.b16 %v321
        %v490 = vunpack.c.l.b16 %v322
        %v491 = vunpack.c.h.b16 %v322
        %v492 = vunpack.c.l.b16 %v323
        %v493 = vunpack.c.h.b16 %v323
        %v494 = vunpack.c.l.b16 %v324
        %v495 = vunpack.c.h.b16 %v324
        %v496 = vunpack.c.l.b16 %v325
        %v497 = vunpack.c.h.b16 %v325
        %v498 = vunpack.c.l.b16 %v326
        %v499 = vunpack.c.h.b16 %v326
        %v500 = vunpack.c.l.b16 %v327
        %v501 = vunpack.c.h.b16 %v327
        %v502 = vunpack.c.l.b16 %v328
        %v503 = vunpack.c.h.b16 %v328
        %v504 = vunpack.c.l.b16 %v329
        %v505 = vunpack.c.h.b16 %v329
        %v506 = vunpack.c.l.b16 %v330
        %v507 = vunpack.c.h.b16 %v330
        %v508 = vunpack.c.l.b16 %v331
        %v509 = vunpack.c.h.b16 %v331
        %v510 = vunpack.c.l.b16 %v332
        %v511 = vunpack.c.h.b16 %v332
        %v512 = vunpack.c.l.b16 %v333
        %v513 = vunpack.c.h.b16 %v333
        %v514 = vunpack.c.l.b16 %v334
        %v515 = vunpack.c.h.b16 %v334
        %v516 = vunpack.c.l.b16 %v335
        %v517 = vunpack.c.h.b16 %v335
        %v518 = vunpack.c.l.b16 %v336
        %v519 = vunpack.c.h.b16 %v336
        %v520 = vunpack.c.l.b16 %v337
        %v521 = vunpack.c.h.b16 %v337
        %v522 = vunpack.c.l.b16 %v338
        %v523 = vunpack.c.h.b16 %v338
        %v524 = vunpack.c.l.b16 %v339
        %v525 = vunpack.c.h.b16 %v339
        %v526 = vunpack.c.l.b16 %v340
        %v527 = vunpack.c.h.b16 %v340
        %v528 = vunpack.c.l.b16 %v341
        %v529 = vunpack.c.h.b16 %v341
        %v530 = vunpack.c.l.b16 %v342
        %v531 = vunpack.c.h.b16 %v342
        %v532 = vunpack.c.l.b16 %v343
        %v533 = vunpack.c.h.b16 %v343
        %v534 = vunpack.c.l.b16 %v344
        %v535 = vunpack.c.h.b16 %v344
        %v536 = vunpack.c.l.b16 %v345
        %v537 = vunpack.c.h.b16 %v345
        %v538 = vunpack.c.l.b16 %v346
        %v539 = vunpack.c.h.b16 %v346
        %v540 = vunpack.c.l.b16 %v347
        %v541 = vunpack.c.h.b16 %v347
        %v542 = vunpack.c.l.b16 %v348
        %v543 = vunpack.c.h.b16 %v348
        %v544 = vunpack.c.l.b16 %v349
        %v545 = vunpack.c.h.b16 %v349
        %v546 = vunpack.c.l.b16 %v350
        %v547 = vunpack.c.h.b16 %v350
        %v548 = vunpack.c.l.b16 %v351
        %v549 = vunpack.c.h.b16 %v351
        %v550 = vpack.c.b16 %v430, %v422
        %v551 = vpack.c.b16 %v431, %v423
        %v552 = vpack.c.b16 %v432, %v424
        %v553 = vpack.c.b16 %v433, %v425
        %v554 = vpack.c.b16 %v434, %v426
        %v555 = vpack.c.b16 %v435, %v427
        %v556 = vpack.c.b16 %v436, %v428
        %v557 = vpack.c.b16 %v437, %v429
        %v558 = vpack.c.b16 %v446, %v438
        %v559 = vpack.c.b16 %v447, %v439
        %v560 = vpack.c.b16 %v448, %v440
        %v561 = vpack.c.b16 %v449, %v441
        %v562 = vpack.c.b16 %v450, %v442
        %v563 = vpack.c.b16 %v451, %v443
        %v564 = vpack.c.b16 %v452, %v444
        %v565 = vpack.c.b16 %v453, %v445
        %v566 = vpack.c.b16 %v462, %v454
        %v567 = vpack.c.b16 %v463, %v455
        %v568 = vpack.c.b16 %v464, %v456
        %v569 = vpack.c.b16 %v465, %v457
        %v570 = vpack.c.b16 %v466, %v458
        %v571 = vpack.c.b16 %v467, %v459
        %v572 = vpack.c.b16 %v468, %v460
        %v573 = vpack.c.b16 %v469, %v461
        %v574 = vpack.c.b16 %v478, %v470
        %v575 = vpack.c.b16 %v479, %v471
        %v576 = vpack.c.b16 %v480, %v472
        %v577 = vpack.c.b16 %v481, %v473
        %v578 = vpack.c.b16 %v482, %v474
        %v579 = vpack.c.b16 %v483, %v475
        %v580 = vpack.c.b16 %v484, %v476
        %v581 = vpack.c.b16 %v485, %v477
        %v582 = vpack.c.b16 %v494, %v486
        %v583 = vpack.c.b16 %v495, %v487
        %v584 = vpack.c.b16 %v496, %v488
        %v585 = vpack.c.b16 %v497, %v489
        %v586 = vpack.c.b16 %v498, %v490
        %v587 = vpack.c.b16 %v499, %v491
        %v588 = vpack.c.b16 %v500, %v492
        %v589 = vpack.c.b16 %v501, %v493
        %v590 = vpack.c.b16 %v510, %v502
        %v591 = vpack.c.b16 %v511, %v503
        %v592 = vpack.c.b16 %v512, %v504
        %v593 = vpack.c.b16 %v513, %v505
        %v594 = vpack.c.b16 %v514, %v506
        %v595 = vpack.c.b16 %v515, %v507
        %v596 = vpack.c.b16 %v516, %v508
        %v597 = vpack.c.b16 %v517, %v509
        %v598 = vpack.c.b16 %v526, %v518
        %v599 = vpack.c.b16 %v527, %v519
        %v600 = vpack.c.b16 %v528, %v520
        %v601 = vpack.c.b16 %v529, %v521
        %v602 = vpack.c.b16 %v530, %v522
        %v603 = vpack.c.b16 %v531, %v523
        %v604 = vpack.c.b16 %v532, %v524
        %v605 = vpack.c.b16 %v533, %v525
        %v606 = vpack.c.b16 %v542, %v534
        %v607 = vpack.c.b16 %v543, %v535
        %v608 = vpack.c.b16 %v544, %v536
        %v609 = vpack.c.b16 %v545, %v537
        %v610 = vpack.c.b16 %v546, %v538
        %v611 = vpack.c.b16 %v547, %v539
        %v612 = vpack.c.b16 %v548, %v540
        %v613 = vpack.c.b16 %v549, %v541
        %678 = vmatpush.bf16.msra.mxu0 %v606
        %679 = vmatpush.bf16.msra.mxu0 %v598
        %680 = vmatpush.bf16.msra.mxu0 %v590
        %681 = vmatpush.bf16.msra.mxu0 %v582
        %682 = vmatpush.bf16.msra.mxu0 %v574
        %683 = vmatpush.bf16.msra.mxu0 %v566
        %684 = vmatpush.bf16.msra.mxu0 %v558
        %685 = vmatpush.bf16.msra.mxu0 %v550
        %686 = vmatmul.bf16.gmra.mxu0 %v356
        %v687 = vpop.f32.mrf.mxu0
        %v688 = vadd.f32 0.0, %v687
        %v689 = vpop.f32.mrf.mxu0
        %v690 = vadd.f32 0.0, %v689
        %691 = vdwg.mxu0
        %692 = vmatpush.bf16.msra.mxu0 %v607
        %693 = vmatpush.bf16.msra.mxu0 %v599
        %694 = vmatpush.bf16.msra.mxu0 %v591
        %695 = vmatpush.bf16.msra.mxu0 %v583
        %696 = vmatpush.bf16.msra.mxu0 %v575
        %697 = vmatpush.bf16.msra.mxu0 %v567
        %698 = vmatpush.bf16.msra.mxu0 %v559
        %699 = vmatpush.bf16.msra.mxu0 %v551
        %700 = vmatmul.bf16.gmra.mxu0 %v356
        %v701 = vpop.f32.mrf.mxu0
        %v702 = vadd.f32 0.0, %v701
        %v703 = vpop.f32.mrf.mxu0
        %v704 = vadd.f32 0.0, %v703
        %705 = vdwg.mxu0
        %706 = vmatpush.bf16.msra.mxu0 %v608
        %707 = vmatpush.bf16.msra.mxu0 %v600
        %708 = vmatpush.bf16.msra.mxu0 %v592
        %709 = vmatpush.bf16.msra.mxu0 %v584
        %710 = vmatpush.bf16.msra.mxu0 %v576
        %711 = vmatpush.bf16.msra.mxu0 %v568
        %712 = vmatpush.bf16.msra.mxu0 %v560
        %713 = vmatpush.bf16.msra.mxu0 %v552
        %714 = vmatmul.bf16.gmra.mxu0 %v356
        %v715 = vpop.f32.mrf.mxu0
        %v716 = vadd.f32 0.0, %v715
        %v717 = vpop.f32.mrf.mxu0
        %v718 = vadd.f32 0.0, %v717
        %719 = vdwg.mxu0
        %720 = vmatpush.bf16.msra.mxu0 %v609
        %721 = vmatpush.bf16.msra.mxu0 %v601
        %722 = vmatpush.bf16.msra.mxu0 %v593
        %723 = vmatpush.bf16.msra.mxu0 %v585
        %724 = vmatpush.bf16.msra.mxu0 %v577
        %725 = vmatpush.bf16.msra.mxu0 %v569
        %726 = vmatpush.bf16.msra.mxu0 %v561
        %727 = vmatpush.bf16.msra.mxu0 %v553
        %728 = vmatmul.bf16.gmra.mxu0 %v356
        %v729 = vpop.f32.mrf.mxu0
        %v730 = vadd.f32 0.0, %v729
        %v731 = vpop.f32.mrf.mxu0
        %v732 = vadd.f32 0.0, %v731
        %733 = vdwg.mxu0
        %734 = vmatpush.bf16.msra.mxu0 %v610
        %735 = vmatpush.bf16.msra.mxu0 %v602
        %736 = vmatpush.bf16.msra.mxu0 %v594
        %737 = vmatpush.bf16.msra.mxu0 %v586
        %738 = vmatpush.bf16.msra.mxu0 %v578
        %739 = vmatpush.bf16.msra.mxu0 %v570
        %740 = vmatpush.bf16.msra.mxu0 %v562
        %741 = vmatpush.bf16.msra.mxu0 %v554
        %742 = vmatmul.bf16.gmra.mxu0 %v356
        %v743 = vpop.f32.mrf.mxu0
        %v744 = vadd.f32 0.0, %v743
        %v745 = vpop.f32.mrf.mxu0
        %v746 = vadd.f32 0.0, %v745
        %747 = vdwg.mxu0
        %748 = vmatpush.bf16.msra.mxu0 %v611
        %749 = vmatpush.bf16.msra.mxu0 %v603
        %750 = vmatpush.bf16.msra.mxu0 %v595
        %751 = vmatpush.bf16.msra.mxu0 %v587
        %752 = vmatpush.bf16.msra.mxu0 %v579
        %753 = vmatpush.bf16.msra.mxu0 %v571
        %754 = vmatpush.bf16.msra.mxu0 %v563
        %755 = vmatpush.bf16.msra.mxu0 %v555
        %756 = vmatmul.bf16.gmra.mxu0 %v356
        %v757 = vpop.f32.mrf.mxu0
        %v758 = vadd.f32 0.0, %v757
        %v759 = vpop.f32.mrf.mxu0
        %v760 = vadd.f32 0.0, %v759
        %761 = vdwg.mxu0
        %762 = vmatpush.bf16.msra.mxu0 %v612
        %763 = vmatpush.bf16.msra.mxu0 %v604
        %764 = vmatpush.bf16.msra.mxu0 %v596
        %765 = vmatpush.bf16.msra.mxu0 %v588
        %766 = vmatpush.bf16.msra.mxu0 %v580
        %767 = vmatpush.bf16.msra.mxu0 %v572
        %768 = vmatpush.bf16.msra.mxu0 %v564
        %769 = vmatpush.bf16.msra.mxu0 %v556
        %770 = vmatmul.bf16.gmra.mxu0 %v356
        %v771 = vpop.f32.mrf.mxu0
        %v772 = vadd.f32 0.0, %v771
        %v773 = vpop.f32.mrf.mxu0
        %v774 = vadd.f32 0.0, %v773
        %775 = vdwg.mxu0
        %776 = vmatpush.bf16.msra.mxu0 %v613
        %777 = vmatpush.bf16.msra.mxu0 %v605
        %778 = vmatpush.bf16.msra.mxu0 %v597
        %779 = vmatpush.bf16.msra.mxu0 %v589
        %780 = vmatpush.bf16.msra.mxu0 %v581
        %781 = vmatpush.bf16.msra.mxu0 %v573
        %782 = vmatpush.bf16.msra.mxu0 %v565
        %783 = vmatpush.bf16.msra.mxu0 %v557
        %784 = vmatmul.bf16.gmra.mxu0 %v356
        %v785 = vpop.f32.mrf.mxu0
        %v786 = vadd.f32 0.0, %v785
        %v787 = vpop.f32.mrf.mxu0
        %v788 = vadd.f32 0.0, %v787
        %789 = vdwg.mxu0
        %vm790 = vcmp.ge.f32.partialorder %v688, 0.0
        %vm791 = vcmp.ge.f32.partialorder %v702, 0.0
        %vm792 = vcmp.ge.f32.partialorder %v716, 0.0
        %vm793 = vcmp.ge.f32.partialorder %v730, 0.0
        %vm794 = vcmp.ge.f32.partialorder %v744, 0.0
        %vm795 = vcmp.ge.f32.partialorder %v758, 0.0
        %vm796 = vcmp.ge.f32.partialorder %v772, 0.0
        %vm797 = vcmp.ge.f32.partialorder %v786, 0.0
        %vm798 = vcmp.ge.f32.partialorder %v690, 0.0
        %vm799 = vcmp.ge.f32.partialorder %v704, 0.0
        %vm800 = vcmp.ge.f32.partialorder %v718, 0.0
        %vm801 = vcmp.ge.f32.partialorder %v732, 0.0
        %vm802 = vcmp.ge.f32.partialorder %v746, 0.0
        %vm803 = vcmp.ge.f32.partialorder %v760, 0.0
        %vm804 = vcmp.ge.f32.partialorder %v774, 0.0
        %vm805 = vcmp.ge.f32.partialorder %v788, 0.0
        %v806 = vmul.f32 %v688, 0.2
        %v807 = vmul.f32 %v702, 0.2
        %v808 = vmul.f32 %v716, 0.2
        %v809 = vmul.f32 %v730, 0.2
        %v810 = vmul.f32 %v744, 0.2
        %v811 = vmul.f32 %v758, 0.2
        %v812 = vmul.f32 %v772, 0.2
        %v813 = vmul.f32 %v786, 0.2
        %v814 = vmul.f32 %v690, 0.2
        %v815 = vmul.f32 %v704, 0.2
        %v816 = vmul.f32 %v718, 0.2
        %v817 = vmul.f32 %v732, 0.2
        %v818 = vmul.f32 %v746, 0.2
        %v819 = vmul.f32 %v760, 0.2
        %v820 = vmul.f32 %v774, 0.2
        %v821 = vmul.f32 %v788, 0.2
        %v822 = vsel %vm790, %v688, %v806
        %v823 = vsel %vm791, %v702, %v807
        %v824 = vsel %vm792, %v716, %v808
        %v825 = vsel %vm793, %v730, %v809
        %v826 = vsel %vm794, %v744, %v810
        %v827 = vsel %vm795, %v758, %v811
        %v828 = vsel %vm796, %v772, %v812
        %v829 = vsel %vm797, %v786, %v813
        %v830 = vsel %vm798, %v690, %v814
        %v831 = vsel %vm799, %v704, %v815
        %v832 = vsel %vm800, %v718, %v816
        %v833 = vsel %vm801, %v732, %v817
        %v834 = vsel %vm802, %v746, %v818
        %v835 = vsel %vm803, %v760, %v819
        %v836 = vsel %vm804, %v774, %v820
        %v837 = vsel %vm805, %v788, %v821
        %v838 = vpack.c.bf16 %v823, %v822
        %v839 = vpack.c.bf16 %v825, %v824
        %v840 = vpack.c.bf16 %v827, %v826
        %v841 = vpack.c.bf16 %v829, %v828
        %v842 = vpack.c.bf16 %v831, %v830
        %v843 = vpack.c.bf16 %v833, %v832
        %v844 = vpack.c.bf16 %v835, %v834
        %v845 = vpack.c.bf16 %v837, %v836
        %846 = vst [vmem:[%s283] sm:$0xff] %v838
        %847 = vst [vmem:[%s283 + $0x8] sm:$0xff] %v839
        %848 = vst [vmem:[%s283 + $0x10] sm:$0xff] %v840
        %849 = vst [vmem:[%s283 + $0x18] sm:$0xff] %v841
        %850 = vst [vmem:[%s283 + $0x20] sm:$0xff] %v842
        %851 = vst [vmem:[%s283 + $0x28] sm:$0xff] %v843
        %852 = vst [vmem:[%s283 + $0x30] sm:$0xff] %v844
        %853 = vst [vmem:[%s283 + $0x38] sm:$0xff] %v845
        %s854 = sand.u32 %s68, 1
        %s855 = sand.u32 %s68, 1
        %s856 = smul.addr %s855, 64
        %s857 = scalar_lea.vmem [#allocation3], %s856
        // Predicated region
        $region52: #{discriminator_forward.10} parent=46 // pred_check
          %p858 = pneg %p78
        $region53: #{discriminator_forward.10} parent=46 // pred_check_branch
          %860 = sbr.rel (%p858) target = $region55
        $region54: #{discriminator_forward.10} parent=46 // pred_region
          %s861 = smul.u32 8, %s13
          %s862 = smul.addr %s861, 4
          %s863 = scalar_lea.vmem %s2, %s862
          // Predicated region
          $region56: #{discriminator_forward.10} parent=54 // pred_check
            _
          $region57: #{discriminator_forward.10} parent=54 // pred_check_branch
            %865 = sbr.rel (0) target = $region59
          $region58: #{discriminator_forward.10} parent=54 // pred_region
            // Predicated region
            $region60: #{discriminator_forward.10} parent=58 // pred_check
              _
            $region61: #{discriminator_forward.10} parent=58 // pred_check_branch
              %867 = sbr.rel (0) target = $region63
            $region62: #{discriminator_forward.10} parent=58 // pred_region
              loop: start=0, step=1, limit=1
              $region64: #{discriminator_forward.10} parent=62 // loop_pre_header
                _
              $region65: #{discriminator_forward.10} parent=62 // loop_header
                %s869 = sphi 0, %s873
                %p870 = scmp.ge.s32.totalorder %s869, 1
                %s874 = sphi %s857, %s857
                %s875 = sphi %s863, %s863
              $region66: #{discriminator_forward.10} parent=62 // loop_header_branch
                %872 = sbr.rel (%p870) target = $region70
              $region67: #{discriminator_forward.10} parent=62 // loop_body
                %v876 = vld [vmem:[%s874] sm:$0xff]
                %877 = vst [vmem:[%s875] sm:$0xff] %v876
                %v878 = vld [vmem:[%s874 + $0x8] sm:$0xff]
                %879 = vst [vmem:[%s875 + $0x8] sm:$0xff] %v878
                %v880 = vld [vmem:[%s874 + $0x10] sm:$0xff]
                %881 = vst [vmem:[%s875 + $0x10] sm:$0xff] %v880
                %v882 = vld [vmem:[%s874 + $0x18] sm:$0xff]
                %883 = vst [vmem:[%s875 + $0x18] sm:$0xff] %v882
                %v884 = vld [vmem:[%s874 + $0x20] sm:$0xff]
                %885 = vst [vmem:[%s875 + $0x40] sm:$0xff] %v884
                %v886 = vld [vmem:[%s874 + $0x28] sm:$0xff]
                %887 = vst [vmem:[%s875 + $0x48] sm:$0xff] %v886
                %v888 = vld [vmem:[%s874 + $0x30] sm:$0xff]
                %889 = vst [vmem:[%s875 + $0x50] sm:$0xff] %v888
                %v890 = vld [vmem:[%s874 + $0x38] sm:$0xff]
                %891 = vst [vmem:[%s875 + $0x58] sm:$0xff] %v890
              $region68: #{discriminator_forward.10} parent=62 // loop_footer
                %s873 = sadd.s32 1, %s869
              $region69: #{discriminator_forward.10} parent=62 // loop_footer_branch
                %868 = sbr.rel target = $region65
              $region70: #{discriminator_forward.10} parent=62 // loop_exit
                _
            $region63: #{discriminator_forward.10} parent=58 // pred_fallthru
              _
            // Predicated region
            $region71: #{discriminator_forward.10} parent=58 // pred_check
              _
            $region72: #{discriminator_forward.10} parent=58 // pred_check_branch
              %893 = sbr.rel target = $region74
            $region73: #{discriminator_forward.10} parent=58 // pred_region
              _
            $region74: #{discriminator_forward.10} parent=58 // pred_fallthru
              _
          $region59: #{discriminator_forward.10} parent=54 // pred_fallthru
            _
          %894 = vnop
        $region55: #{discriminator_forward.10} parent=46 // pred_fallthru
          _
      $region47: #{discriminator_forward.10} parent=5 // pred_fallthru
        _
      %p895 = scmp.le.s32.totalorder 2, %s8
      // Predicated region
      $region75: #{discriminator_forward.10} parent=5 // pred_check
        %p896 = pneg %p895
      $region76: #{discriminator_forward.10} parent=5 // pred_check_branch
        %898 = sbr.rel (%p896) target = $region78
      $region77: #{discriminator_forward.10} parent=5 // pred_region
        %s899 = ssub.s32 %s8, 2
        // Predicated region
        $region79: #{discriminator_forward.10} parent=77 // pred_check
          %p900 = pneg %p84
        $region80: #{discriminator_forward.10} parent=77 // pred_check_branch
          %902 = sbr.rel (%p900) target = $region82
        $region81: #{discriminator_forward.10} parent=77 // pred_region
          %s903 = sand.u32 %s69, 1
          %s904 = sand.u32 %s69, 1
          %s905 = smul.addr %s904, 64
          %s906 = scalar_lea.vmem [#allocation3], %s905
        $region82: #{discriminator_forward.10} parent=77 // pred_fallthru
          _
      $region78: #{discriminator_forward.10} parent=5 // pred_fallthru
        _
    $region6: #{discriminator_forward.10} parent=1 // loop_footer
      %s12 = sadd.s32 1, %s8
    $region7: #{discriminator_forward.10} parent=1 // loop_footer_branch
      %7 = sbr.rel target = $region3
    $region8: #{discriminator_forward.10} parent=1 // loop_exit
      _

// kernel: discriminator_forward.11
$region0: #{discriminator_forward.11}
  #allocation0 [shape = 'u32[]', space=smem, size = 0x4, offset = 0x4, fixed_abs, tag = 'smem constant byte address 0x4 - core index']
  #allocation1 [shape = 'u32[72,128]{1,0:T(1,128)}', space=vmem, size = 0x9000, scoped, tag = 'internal scratch']
  %s0 = inlined_call_operand.vmem [shape: bf16[512,128], index: 0, kind: input, shape index: {}]
  %s1 = inlined_call_operand.vmem [shape: bf16[128,128], index: 1, kind: input, shape index: {}]
  %s2 = inlined_call_operand.vmem [shape: bf16[512,128], index: 2, kind: output, shape index: {0}]
  %s3 = inlined_call_operand.vmem [shape: f32[1,128], index: 3, kind: output, shape index: {1}]
  %s4 = inlined_call_operand.vmem [shape: f32[1,128], index: 4, kind: output, shape index: {2}]
  %5 = xla_tuple %s2, %s3, %s4
  %s6 = sld [smem:[#allocation0]]
  $region38: #{discriminator_forward.11} parent=0
    _
  %s8 = ssub.s32 1, %s6
  %s9 = scalar_select 0, %s8, %s6
  // Predicated region
  $region2: #{discriminator_forward.11} parent=0 // pred_check
    _
  $region3: #{discriminator_forward.11} parent=0 // pred_check_branch
    %11 = sbr.rel (0) target = $region5
  $region4: #{discriminator_forward.11} parent=0 // pred_region
    _
  $region5: #{discriminator_forward.11} parent=0 // pred_fallthru
    _
  // Predicated region
  $region6: #{discriminator_forward.11} parent=0 // pred_check
    _
  $region7: #{discriminator_forward.11} parent=0 // pred_check_branch
    %13 = sbr.rel (0) target = $region9
  $region8: #{discriminator_forward.11} parent=0 // pred_region
    _
  $region9: #{discriminator_forward.11} parent=0 // pred_fallthru
    _
  %p14 = scmp.eq.s32.totalorder 0, 0
  // Predicated region
  $region10: #{discriminator_forward.11} parent=0 // pred_check
    %p15 = pneg %p14
  $region11: #{discriminator_forward.11} parent=0 // pred_check_branch
    %17 = sbr.rel (%p15) target = $region13
  $region12: #{discriminator_forward.11} parent=0 // pred_region
    %18 = vst [vmem:[%s3] sm:$0x1] 0.0
    %19 = vst [vmem:[%s4] sm:$0x1] 0.0
  $region13: #{discriminator_forward.11} parent=0 // pred_fallthru
    _
  %v20 = vld [vmem:[%s0] sm:$0xf]
  %v21 = vld [vmem:[%s0 + $0x4] sm:$0xf]
  %v22 = vld [vmem:[%s0 + $0x8] sm:$0xf]
  %v23 = vld [vmem:[%s0 + $0xc] sm:$0xf]
  %v24 = vld [vmem:[%s0 + $0x10] sm:$0xf]
  %v25 = vld [vmem:[%s0 + $0x14] sm:$0xf]
  %v26 = vld [vmem:[%s0 + $0x18] sm:$0xf]
  %v27 = vld [vmem:[%s0 + $0x1c] sm:$0xf]
  %v28 = vld [vmem:[%s0 + $0x20] sm:$0xf]
  %v29 = vld [vmem:[%s0 + $0x24] sm:$0xf]
  %v30 = vld [vmem:[%s0 + $0x28] sm:$0xf]
  %v31 = vld [vmem:[%s0 + $0x2c] sm:$0xf]
  %v32 = vld [vmem:[%s0 + $0x30] sm:$0xf]
  %v33 = vld [vmem:[%s0 + $0x34] sm:$0xf]
  %v34 = vld [vmem:[%s0 + $0x38] sm:$0xf]
  %v35 = vld [vmem:[%s0 + $0x3c] sm:$0xf]
  %v36 = vld [vmem:[%s0 + $0x40] sm:$0xf]
  %v37 = vld [vmem:[%s0 + $0x44] sm:$0xf]
  %v38 = vld [vmem:[%s0 + $0x48] sm:$0xf]
  %v39 = vld [vmem:[%s0 + $0x4c] sm:$0xf]
  %v40 = vld [vmem:[%s0 + $0x50] sm:$0xf]
  %v41 = vld [vmem:[%s0 + $0x54] sm:$0xf]
  %v42 = vld [vmem:[%s0 + $0x58] sm:$0xf]
  %v43 = vld [vmem:[%s0 + $0x5c] sm:$0xf]
  %v44 = vld [vmem:[%s0 + $0x60] sm:$0xf]
  %v45 = vld [vmem:[%s0 + $0x64] sm:$0xf]
  %v46 = vld [vmem:[%s0 + $0x68] sm:$0xf]
  %v47 = vld [vmem:[%s0 + $0x6c] sm:$0xf]
  %v48 = vld [vmem:[%s0 + $0x70] sm:$0xf]
  %v49 = vld [vmem:[%s0 + $0x74] sm:$0xf]
  %v50 = vld [vmem:[%s0 + $0x78] sm:$0xf]
  %v51 = vld [vmem:[%s0 + $0x7c] sm:$0xf]
  %v52 = vld [vmem:[%s0 + $0x80] sm:$0xf]
  %v53 = vld [vmem:[%s0 + $0x84] sm:$0xf]
  %v54 = vld [vmem:[%s0 + $0x88] sm:$0xf]
  %v55 = vld [vmem:[%s0 + $0x8c] sm:$0xf]
  %v56 = vld [vmem:[%s0 + $0x90] sm:$0xf]
  %v57 = vld [vmem:[%s0 + $0x94] sm:$0xf]
  %v58 = vld [vmem:[%s0 + $0x98] sm:$0xf]
  %v59 = vld [vmem:[%s0 + $0x9c] sm:$0xf]
  %v60 = vld [vmem:[%s0 + $0xa0] sm:$0xf]
  %v61 = vld [vmem:[%s0 + $0xa4] sm:$0xf]
  %v62 = vld [vmem:[%s0 + $0xa8] sm:$0xf]
  %v63 = vld [vmem:[%s0 + $0xac] sm:$0xf]
  %v64 = vld [vmem:[%s0 + $0xb0] sm:$0xf]
  %v65 = vld [vmem:[%s0 + $0xb4] sm:$0xf]
  %v66 = vld [vmem:[%s0 + $0xb8] sm:$0xf]
  %v67 = vld [vmem:[%s0 + $0xbc] sm:$0xf]
  %v68 = vld [vmem:[%s0 + $0xc0] sm:$0xf]
  %v69 = vld [vmem:[%s0 + $0xc4] sm:$0xf]
  %v70 = vld [vmem:[%s0 + $0xc8] sm:$0xf]
  %v71 = vld [vmem:[%s0 + $0xcc] sm:$0xf]
  %v72 = vld [vmem:[%s0 + $0xd0] sm:$0xf]
  %v73 = vld [vmem:[%s0 + $0xd4] sm:$0xf]
  %v74 = vld [vmem:[%s0 + $0xd8] sm:$0xf]
  %v75 = vld [vmem:[%s0 + $0xdc] sm:$0xf]
  %v76 = vld [vmem:[%s0 + $0xe0] sm:$0xf]
  %v77 = vld [vmem:[%s0 + $0xe4] sm:$0xf]
  %v78 = vld [vmem:[%s0 + $0xe8] sm:$0xf]
  %v79 = vld [vmem:[%s0 + $0xec] sm:$0xf]
  %v80 = vld [vmem:[%s0 + $0xf0] sm:$0xf]
  %v81 = vld [vmem:[%s0 + $0xf4] sm:$0xf]
  %v82 = vld [vmem:[%s0 + $0xf8] sm:$0xf]
  %v83 = vld [vmem:[%s0 + $0xfc] sm:$0xf]
  %v84 = vld [vmem:[%s1] sm:$0xf]
  %v85 = vld [vmem:[%s1 + $0x4] sm:$0xf]
  %v86 = vld [vmem:[%s1 + $0x8] sm:$0xf]
  %v87 = vld [vmem:[%s1 + $0xc] sm:$0xf]
  %v88 = vld [vmem:[%s1 + $0x10] sm:$0xf]
  %v89 = vld [vmem:[%s1 + $0x14] sm:$0xf]
  %v90 = vld [vmem:[%s1 + $0x18] sm:$0xf]
  %v91 = vld [vmem:[%s1 + $0x1c] sm:$0xf]
  %v92 = vld [vmem:[%s1 + $0x20] sm:$0xf]
  %v93 = vld [vmem:[%s1 + $0x24] sm:$0xf]
  %v94 = vld [vmem:[%s1 + $0x28] sm:$0xf]
  %v95 = vld [vmem:[%s1 + $0x2c] sm:$0xf]
  %v96 = vld [vmem:[%s1 + $0x30] sm:$0xf]
  %v97 = vld [vmem:[%s1 + $0x34] sm:$0xf]
  %v98 = vld [vmem:[%s1 + $0x38] sm:$0xf]
  %v99 = vld [vmem:[%s1 + $0x3c] sm:$0xf]
  %v164 = vunpack.c.l.b16 %v20
  %v165 = vunpack.c.l.b16 %v21
  %v166 = vunpack.c.l.b16 %v22
  %v167 = vunpack.c.l.b16 %v23
  %v168 = vunpack.c.l.b16 %v24
  %v169 = vunpack.c.l.b16 %v25
  %v170 = vunpack.c.l.b16 %v26
  %v171 = vunpack.c.l.b16 %v27
  %v172 = vunpack.c.l.b16 %v28
  %v173 = vunpack.c.l.b16 %v29
  %v174 = vunpack.c.l.b16 %v30
  %v175 = vunpack.c.l.b16 %v31
  %v176 = vunpack.c.l.b16 %v32
  %v177 = vunpack.c.l.b16 %v33
  %v178 = vunpack.c.l.b16 %v34
  %v179 = vunpack.c.l.b16 %v35
  %v180 = vunpack.c.l.b16 %v36
  %v181 = vunpack.c.l.b16 %v37
  %v182 = vunpack.c.l.b16 %v38
  %v183 = vunpack.c.l.b16 %v39
  %v184 = vunpack.c.l.b16 %v40
  %v185 = vunpack.c.l.b16 %v41
  %v186 = vunpack.c.l.b16 %v42
  %v187 = vunpack.c.l.b16 %v43
  %v188 = vunpack.c.l.b16 %v44
  %v189 = vunpack.c.l.b16 %v45
  %v190 = vunpack.c.l.b16 %v46
  %v191 = vunpack.c.l.b16 %v47
  %v192 = vunpack.c.l.b16 %v48
  %v193 = vunpack.c.l.b16 %v49
  %v194 = vunpack.c.l.b16 %v50
  %v195 = vunpack.c.l.b16 %v51
  %v196 = vunpack.c.l.b16 %v52
  %v197 = vunpack.c.l.b16 %v53
  %v198 = vunpack.c.l.b16 %v54
  %v199 = vunpack.c.l.b16 %v55
  %v200 = vunpack.c.l.b16 %v56
  %v201 = vunpack.c.l.b16 %v57
  %v202 = vunpack.c.l.b16 %v58
  %v203 = vunpack.c.l.b16 %v59
  %v204 = vunpack.c.l.b16 %v60
  %v205 = vunpack.c.l.b16 %v61
  %v206 = vunpack.c.l.b16 %v62
  %v207 = vunpack.c.l.b16 %v63
  %v208 = vunpack.c.l.b16 %v64
  %v209 = vunpack.c.l.b16 %v65
  %v210 = vunpack.c.l.b16 %v66
  %v211 = vunpack.c.l.b16 %v67
  %v212 = vunpack.c.l.b16 %v68
  %v213 = vunpack.c.l.b16 %v69
  %v214 = vunpack.c.l.b16 %v70
  %v215 = vunpack.c.l.b16 %v71
  %v216 = vunpack.c.l.b16 %v72
  %v217 = vunpack.c.l.b16 %v73
  %v218 = vunpack.c.l.b16 %v74
  %v219 = vunpack.c.l.b16 %v75
  %v220 = vunpack.c.l.b16 %v76
  %v221 = vunpack.c.l.b16 %v77
  %v222 = vunpack.c.l.b16 %v78
  %v223 = vunpack.c.l.b16 %v79
  %v224 = vunpack.c.l.b16 %v80
  %v225 = vunpack.c.l.b16 %v81
  %v226 = vunpack.c.l.b16 %v82
  %v227 = vunpack.c.l.b16 %v83
  %v228 = vpack.c.b16 %v165, %v164
  %v229 = vpack.c.b16 %v167, %v166
  %v230 = vpack.c.b16 %v169, %v168
  %v231 = vpack.c.b16 %v171, %v170
  %v232 = vpack.c.b16 %v173, %v172
  %v233 = vpack.c.b16 %v175, %v174
  %v234 = vpack.c.b16 %v177, %v176
  %v235 = vpack.c.b16 %v179, %v178
  %v236 = vpack.c.b16 %v181, %v180
  %v237 = vpack.c.b16 %v183, %v182
  %v238 = vpack.c.b16 %v185, %v184
  %v239 = vpack.c.b16 %v187, %v186
  %v240 = vpack.c.b16 %v189, %v188
  %v241 = vpack.c.b16 %v191, %v190
  %v242 = vpack.c.b16 %v193, %v192
  %v243 = vpack.c.b16 %v195, %v194
  %v244 = vpack.c.b16 %v197, %v196
  %v245 = vpack.c.b16 %v199, %v198
  %v246 = vpack.c.b16 %v201, %v200
  %v247 = vpack.c.b16 %v203, %v202
  %v248 = vpack.c.b16 %v205, %v204
  %v249 = vpack.c.b16 %v207, %v206
  %v250 = vpack.c.b16 %v209, %v208
  %v251 = vpack.c.b16 %v211, %v210
  %v252 = vpack.c.b16 %v213, %v212
  %v253 = vpack.c.b16 %v215, %v214
  %v254 = vpack.c.b16 %v217, %v216
  %v255 = vpack.c.b16 %v219, %v218
  %v256 = vpack.c.b16 %v221, %v220
  %v257 = vpack.c.b16 %v223, %v222
  %v258 = vpack.c.b16 %v225, %v224
  %v259 = vpack.c.b16 %v227, %v226
  %v308 = vunpack.c.l.b16 %v84
  %v309 = vunpack.c.l.b16 %v85
  %v310 = vunpack.c.l.b16 %v86
  %v311 = vunpack.c.l.b16 %v87
  %v312 = vunpack.c.l.b16 %v88
  %v313 = vunpack.c.l.b16 %v89
  %v314 = vunpack.c.l.b16 %v90
  %v315 = vunpack.c.l.b16 %v91
  %v316 = vunpack.c.l.b16 %v92
  %v317 = vunpack.c.l.b16 %v93
  %v318 = vunpack.c.l.b16 %v94
  %v319 = vunpack.c.l.b16 %v95
  %v320 = vunpack.c.l.b16 %v96
  %v321 = vunpack.c.l.b16 %v97
  %v322 = vunpack.c.l.b16 %v98
  %v323 = vunpack.c.l.b16 %v99
  %v324 = vpack.c.b16 %v309, %v308
  %v325 = vpack.c.b16 %v311, %v310
  %v326 = vpack.c.b16 %v313, %v312
  %v327 = vpack.c.b16 %v315, %v314
  %v328 = vpack.c.b16 %v317, %v316
  %v329 = vpack.c.b16 %v319, %v318
  %v330 = vpack.c.b16 %v321, %v320
  %v331 = vpack.c.b16 %v323, %v322
  %340 = vmatpush.bf16.msra.mxu0 %v331
  %341 = vmatpush.bf16.msra.mxu0 %v330
  %342 = vmatpush.bf16.msra.mxu0 %v329
  %343 = vmatpush.bf16.msra.mxu0 %v328
  %344 = vmatpush.bf16.msra.mxu0 %v327
  %345 = vmatpush.bf16.msra.mxu0 %v326
  %346 = vmatpush.bf16.msra.mxu0 %v325
  %347 = vmatpush.bf16.msra.mxu0 %v324
  %348 = vmatmul.bf16.gmra.mxu0 %v228
  %v349 = vpop.f32.mrf.mxu0
  %v350 = vadd.f32 0.0, %v349
  %v351 = vpop.f32.mrf.mxu0
  %v352 = vadd.f32 0.0, %v351
  %353 = vmatmul.bf16.gmra.mxu0 %v229
  %v354 = vpop.f32.mrf.mxu0
  %v355 = vadd.f32 0.0, %v354
  %v356 = vpop.f32.mrf.mxu0
  %v357 = vadd.f32 0.0, %v356
  %358 = vmatmul.bf16.gmra.mxu0 %v230
  %v359 = vpop.f32.mrf.mxu0
  %v360 = vadd.f32 0.0, %v359
  %v361 = vpop.f32.mrf.mxu0
  %v362 = vadd.f32 0.0, %v361
  %363 = vmatmul.bf16.gmra.mxu0 %v231
  %v364 = vpop.f32.mrf.mxu0
  %v365 = vadd.f32 0.0, %v364
  %v366 = vpop.f32.mrf.mxu0
  %v367 = vadd.f32 0.0, %v366
  %368 = vmatmul.bf16.gmra.mxu0 %v232
  %v369 = vpop.f32.mrf.mxu0
  %v370 = vadd.f32 0.0, %v369
  %v371 = vpop.f32.mrf.mxu0
  %v372 = vadd.f32 0.0, %v371
  %373 = vmatmul.bf16.gmra.mxu0 %v233
  %v374 = vpop.f32.mrf.mxu0
  %v375 = vadd.f32 0.0, %v374
  %v376 = vpop.f32.mrf.mxu0
  %v377 = vadd.f32 0.0, %v376
  %378 = vmatmul.bf16.gmra.mxu0 %v234
  %v379 = vpop.f32.mrf.mxu0
  %v380 = vadd.f32 0.0, %v379
  %v381 = vpop.f32.mrf.mxu0
  %v382 = vadd.f32 0.0, %v381
  %383 = vmatmul.bf16.gmra.mxu0 %v235
  %v384 = vpop.f32.mrf.mxu0
  %v385 = vadd.f32 0.0, %v384
  %v386 = vpop.f32.mrf.mxu0
  %v387 = vadd.f32 0.0, %v386
  %388 = vmatmul.bf16.gmra.mxu0 %v236
  %v389 = vpop.f32.mrf.mxu0
  %v390 = vadd.f32 0.0, %v389
  %v391 = vpop.f32.mrf.mxu0
  %v392 = vadd.f32 0.0, %v391
  %393 = vmatmul.bf16.gmra.mxu0 %v237
  %v394 = vpop.f32.mrf.mxu0
  %v395 = vadd.f32 0.0, %v394
  %v396 = vpop.f32.mrf.mxu0
  %v397 = vadd.f32 0.0, %v396
  %398 = vmatmul.bf16.gmra.mxu0 %v238
  %v399 = vpop.f32.mrf.mxu0
  %v400 = vadd.f32 0.0, %v399
  %v401 = vpop.f32.mrf.mxu0
  %v402 = vadd.f32 0.0, %v401
  %403 = vmatmul.bf16.gmra.mxu0 %v239
  %v404 = vpop.f32.mrf.mxu0
  %v405 = vadd.f32 0.0, %v404
  %v406 = vpop.f32.mrf.mxu0
  %v407 = vadd.f32 0.0, %v406
  %408 = vmatmul.bf16.gmra.mxu0 %v240
  %v409 = vpop.f32.mrf.mxu0
  %v410 = vadd.f32 0.0, %v409
  %v411 = vpop.f32.mrf.mxu0
  %v412 = vadd.f32 0.0, %v411
  %413 = vmatmul.bf16.gmra.mxu0 %v241
  %v414 = vpop.f32.mrf.mxu0
  %v415 = vadd.f32 0.0, %v414
  %v416 = vpop.f32.mrf.mxu0
  %v417 = vadd.f32 0.0, %v416
  %418 = vmatmul.bf16.gmra.mxu0 %v242
  %v419 = vpop.f32.mrf.mxu0
  %v420 = vadd.f32 0.0, %v419
  %v421 = vpop.f32.mrf.mxu0
  %v422 = vadd.f32 0.0, %v421
  %423 = vmatmul.bf16.gmra.mxu0 %v243
  %v424 = vpop.f32.mrf.mxu0
  %v425 = vadd.f32 0.0, %v424
  %v426 = vpop.f32.mrf.mxu0
  %v427 = vadd.f32 0.0, %v426
  %428 = vmatmul.bf16.gmra.mxu0 %v244
  %v429 = vpop.f32.mrf.mxu0
  %v430 = vadd.f32 0.0, %v429
  %v431 = vpop.f32.mrf.mxu0
  %v432 = vadd.f32 0.0, %v431
  %433 = vmatmul.bf16.gmra.mxu0 %v245
  %v434 = vpop.f32.mrf.mxu0
  %v435 = vadd.f32 0.0, %v434
  %v436 = vpop.f32.mrf.mxu0
  %v437 = vadd.f32 0.0, %v436
  %438 = vmatmul.bf16.gmra.mxu0 %v246
  %v439 = vpop.f32.mrf.mxu0
  %v440 = vadd.f32 0.0, %v439
  %v441 = vpop.f32.mrf.mxu0
  %v442 = vadd.f32 0.0, %v441
  %443 = vmatmul.bf16.gmra.mxu0 %v247
  %v444 = vpop.f32.mrf.mxu0
  %v445 = vadd.f32 0.0, %v444
  %v446 = vpop.f32.mrf.mxu0
  %v447 = vadd.f32 0.0, %v446
  %448 = vmatmul.bf16.gmra.mxu0 %v248
  %v449 = vpop.f32.mrf.mxu0
  %v450 = vadd.f32 0.0, %v449
  %v451 = vpop.f32.mrf.mxu0
  %v452 = vadd.f32 0.0, %v451
  %453 = vmatmul.bf16.gmra.mxu0 %v249
  %v454 = vpop.f32.mrf.mxu0
  %v455 = vadd.f32 0.0, %v454
  %v456 = vpop.f32.mrf.mxu0
  %v457 = vadd.f32 0.0, %v456
  %458 = vmatmul.bf16.gmra.mxu0 %v250
  %v459 = vpop.f32.mrf.mxu0
  %v460 = vadd.f32 0.0, %v459
  %v461 = vpop.f32.mrf.mxu0
  %v462 = vadd.f32 0.0, %v461
  %463 = vmatmul.bf16.gmra.mxu0 %v251
  %v464 = vpop.f32.mrf.mxu0
  %v465 = vadd.f32 0.0, %v464
  %v466 = vpop.f32.mrf.mxu0
  %v467 = vadd.f32 0.0, %v466
  %468 = vmatmul.bf16.gmra.mxu0 %v252
  %v469 = vpop.f32.mrf.mxu0
  %v470 = vadd.f32 0.0, %v469
  %v471 = vpop.f32.mrf.mxu0
  %v472 = vadd.f32 0.0, %v471
  %473 = vmatmul.bf16.gmra.mxu0 %v253
  %v474 = vpop.f32.mrf.mxu0
  %v475 = vadd.f32 0.0, %v474
  %v476 = vpop.f32.mrf.mxu0
  %v477 = vadd.f32 0.0, %v476
  %478 = vmatmul.bf16.gmra.mxu0 %v254
  %v479 = vpop.f32.mrf.mxu0
  %v480 = vadd.f32 0.0, %v479
  %v481 = vpop.f32.mrf.mxu0
  %v482 = vadd.f32 0.0, %v481
  %483 = vmatmul.bf16.gmra.mxu0 %v255
  %v484 = vpop.f32.mrf.mxu0
  %v485 = vadd.f32 0.0, %v484
  %v486 = vpop.f32.mrf.mxu0
  %v487 = vadd.f32 0.0, %v486
  %488 = vmatmul.bf16.gmra.mxu0 %v256
  %v489 = vpop.f32.mrf.mxu0
  %v490 = vadd.f32 0.0, %v489
  %v491 = vpop.f32.mrf.mxu0
  %v492 = vadd.f32 0.0, %v491
  %493 = vmatmul.bf16.gmra.mxu0 %v257
  %v494 = vpop.f32.mrf.mxu0
  %v495 = vadd.f32 0.0, %v494
  %v496 = vpop.f32.mrf.mxu0
  %v497 = vadd.f32 0.0, %v496
  %498 = vmatmul.bf16.gmra.mxu0 %v258
  %v499 = vpop.f32.mrf.mxu0
  %v500 = vadd.f32 0.0, %v499
  %v501 = vpop.f32.mrf.mxu0
  %v502 = vadd.f32 0.0, %v501
  %503 = vmatmul.bf16.gmra.mxu0 %v259
  %v504 = vpop.f32.mrf.mxu0
  %v505 = vadd.f32 0.0, %v504
  %v506 = vpop.f32.mrf.mxu0
  %v507 = vadd.f32 0.0, %v506
  %508 = vdwg.mxu0
  %v509 = vpack.c.bf16 %v350, %v350
  %v510 = vpack.c.bf16 %v352, %v352
  %v511 = vpack.c.bf16 %v355, %v355
  %v512 = vpack.c.bf16 %v357, %v357
  %v513 = vpack.c.bf16 %v360, %v360
  %v514 = vpack.c.bf16 %v362, %v362
  %v515 = vpack.c.bf16 %v365, %v365
  %v516 = vpack.c.bf16 %v367, %v367
  %v517 = vpack.c.bf16 %v370, %v370
  %v518 = vpack.c.bf16 %v372, %v372
  %v519 = vpack.c.bf16 %v375, %v375
  %v520 = vpack.c.bf16 %v377, %v377
  %v521 = vpack.c.bf16 %v380, %v380
  %v522 = vpack.c.bf16 %v382, %v382
  %v523 = vpack.c.bf16 %v385, %v385
  %v524 = vpack.c.bf16 %v387, %v387
  %v525 = vpack.c.bf16 %v390, %v390
  %v526 = vpack.c.bf16 %v392, %v392
  %v527 = vpack.c.bf16 %v395, %v395
  %v528 = vpack.c.bf16 %v397, %v397
  %v529 = vpack.c.bf16 %v400, %v400
  %v530 = vpack.c.bf16 %v402, %v402
  %v531 = vpack.c.bf16 %v405, %v405
  %v532 = vpack.c.bf16 %v407, %v407
  %v533 = vpack.c.bf16 %v410, %v410
  %v534 = vpack.c.bf16 %v412, %v412
  %v535 = vpack.c.bf16 %v415, %v415
  %v536 = vpack.c.bf16 %v417, %v417
  %v537 = vpack.c.bf16 %v420, %v420
  %v538 = vpack.c.bf16 %v422, %v422
  %v539 = vpack.c.bf16 %v425, %v425
  %v540 = vpack.c.bf16 %v427, %v427
  %v541 = vpack.c.bf16 %v430, %v430
  %v542 = vpack.c.bf16 %v432, %v432
  %v543 = vpack.c.bf16 %v435, %v435
  %v544 = vpack.c.bf16 %v437, %v437
  %v545 = vpack.c.bf16 %v440, %v440
  %v546 = vpack.c.bf16 %v442, %v442
  %v547 = vpack.c.bf16 %v445, %v445
  %v548 = vpack.c.bf16 %v447, %v447
  %v549 = vpack.c.bf16 %v450, %v450
  %v550 = vpack.c.bf16 %v452, %v452
  %v551 = vpack.c.bf16 %v455, %v455
  %v552 = vpack.c.bf16 %v457, %v457
  %v553 = vpack.c.bf16 %v460, %v460
  %v554 = vpack.c.bf16 %v462, %v462
  %v555 = vpack.c.bf16 %v465, %v465
  %v556 = vpack.c.bf16 %v467, %v467
  %v557 = vpack.c.bf16 %v470, %v470
  %v558 = vpack.c.bf16 %v472, %v472
  %v559 = vpack.c.bf16 %v475, %v475
  %v560 = vpack.c.bf16 %v477, %v477
  %v561 = vpack.c.bf16 %v480, %v480
  %v562 = vpack.c.bf16 %v482, %v482
  %v563 = vpack.c.bf16 %v485, %v485
  %v564 = vpack.c.bf16 %v487, %v487
  %v565 = vpack.c.bf16 %v490, %v490
  %v566 = vpack.c.bf16 %v492, %v492
  %v567 = vpack.c.bf16 %v495, %v495
  %v568 = vpack.c.bf16 %v497, %v497
  %v569 = vpack.c.bf16 %v500, %v500
  %v570 = vpack.c.bf16 %v502, %v502
  %v571 = vpack.c.bf16 %v505, %v505
  %v572 = vpack.c.bf16 %v507, %v507
  %573 = vst [vmem:[%s2] sm:$0xf] %v509
  %574 = vst [vmem:[%s2 + $0x4] sm:$0xf] %v510
  %575 = vst [vmem:[%s2 + $0x8] sm:$0xf] %v511
  %576 = vst [vmem:[%s2 + $0xc] sm:$0xf] %v512
  %577 = vst [vmem:[%s2 + $0x10] sm:$0xf] %v513
  %578 = vst [vmem:[%s2 + $0x14] sm:$0xf] %v514
  %579 = vst [vmem:[%s2 + $0x18] sm:$0xf] %v515
  %580 = vst [vmem:[%s2 + $0x1c] sm:$0xf] %v516
  %581 = vst [vmem:[%s2 + $0x20] sm:$0xf] %v517
  %582 = vst [vmem:[%s2 + $0x24] sm:$0xf] %v518
  %583 = vst [vmem:[%s2 + $0x28] sm:$0xf] %v519
  %584 = vst [vmem:[%s2 + $0x2c] sm:$0xf] %v520
  %585 = vst [vmem:[%s2 + $0x30] sm:$0xf] %v521
  %586 = vst [vmem:[%s2 + $0x34] sm:$0xf] %v522
  %587 = vst [vmem:[%s2 + $0x38] sm:$0xf] %v523
  %588 = vst [vmem:[%s2 + $0x3c] sm:$0xf] %v524
  %589 = vst [vmem:[%s2 + $0x40] sm:$0xf] %v525
  %590 = vst [vmem:[%s2 + $0x44] sm:$0xf] %v526
  %591 = vst [vmem:[%s2 + $0x48] sm:$0xf] %v527
  %592 = vst [vmem:[%s2 + $0x4c] sm:$0xf] %v528
  %593 = vst [vmem:[%s2 + $0x50] sm:$0xf] %v529
  %594 = vst [vmem:[%s2 + $0x54] sm:$0xf] %v530
  %595 = vst [vmem:[%s2 + $0x58] sm:$0xf] %v531
  %596 = vst [vmem:[%s2 + $0x5c] sm:$0xf] %v532
  %597 = vst [vmem:[%s2 + $0x60] sm:$0xf] %v533
  %598 = vst [vmem:[%s2 + $0x64] sm:$0xf] %v534
  %599 = vst [vmem:[%s2 + $0x68] sm:$0xf] %v535
  %600 = vst [vmem:[%s2 + $0x6c] sm:$0xf] %v536
  %601 = vst [vmem:[%s2 + $0x70] sm:$0xf] %v537
  %602 = vst [vmem:[%s2 + $0x74] sm:$0xf] %v538
  %603 = vst [vmem:[%s2 + $0x78] sm:$0xf] %v539
  %604 = vst [vmem:[%s2 + $0x7c] sm:$0xf] %v540
  %605 = vst [vmem:[%s2 + $0x80] sm:$0xf] %v541
  %606 = vst [vmem:[%s2 + $0x84] sm:$0xf] %v542
  %607 = vst [vmem:[%s2 + $0x88] sm:$0xf] %v543
  %608 = vst [vmem:[%s2 + $0x8c] sm:$0xf] %v544
  %609 = vst [vmem:[%s2 + $0x90] sm:$0xf] %v545
  %610 = vst [vmem:[%s2 + $0x94] sm:$0xf] %v546
  %611 = vst [vmem:[%s2 + $0x98] sm:$0xf] %v547
  %612 = vst [vmem:[%s2 + $0x9c] sm:$0xf] %v548
  %613 = vst [vmem:[%s2 + $0xa0] sm:$0xf] %v549
  %614 = vst [vmem:[%s2 + $0xa4] sm:$0xf] %v550
  %615 = vst [vmem:[%s2 + $0xa8] sm:$0xf] %v551
  %616 = vst [vmem:[%s2 + $0xac] sm:$0xf] %v552
  %617 = vst [vmem:[%s2 + $0xb0] sm:$0xf] %v553
  %618 = vst [vmem:[%s2 + $0xb4] sm:$0xf] %v554
  %619 = vst [vmem:[%s2 + $0xb8] sm:$0xf] %v555
  %620 = vst [vmem:[%s2 + $0xbc] sm:$0xf] %v556
  %621 = vst [vmem:[%s2 + $0xc0] sm:$0xf] %v557
  %622 = vst [vmem:[%s2 + $0xc4] sm:$0xf] %v558
  %623 = vst [vmem:[%s2 + $0xc8] sm:$0xf] %v559
  %624 = vst [vmem:[%s2 + $0xcc] sm:$0xf] %v560
  %625 = vst [vmem:[%s2 + $0xd0] sm:$0xf] %v561
  %626 = vst [vmem:[%s2 + $0xd4] sm:$0xf] %v562
  %627 = vst [vmem:[%s2 + $0xd8] sm:$0xf] %v563
  %628 = vst [vmem:[%s2 + $0xdc] sm:$0xf] %v564
  %629 = vst [vmem:[%s2 + $0xe0] sm:$0xf] %v565
  %630 = vst [vmem:[%s2 + $0xe4] sm:$0xf] %v566
  %631 = vst [vmem:[%s2 + $0xe8] sm:$0xf] %v567
  %632 = vst [vmem:[%s2 + $0xec] sm:$0xf] %v568
  %633 = vst [vmem:[%s2 + $0xf0] sm:$0xf] %v569
  %634 = vst [vmem:[%s2 + $0xf4] sm:$0xf] %v570
  %635 = vst [vmem:[%s2 + $0xf8] sm:$0xf] %v571
  %636 = vst [vmem:[%s2 + $0xfc] sm:$0xf] %v572
  %v637 = vld [vmem:[%s3] sm:$0x1]
  %v638 = vadd.f32 %v350, %v352
  %v639 = vadd.f32 %v638, %v355
  %v640 = vadd.f32 %v639, %v357
  %v641 = vadd.f32 %v640, %v360
  %v642 = vadd.f32 %v641, %v362
  %v643 = vadd.f32 %v642, %v365
  %v644 = vadd.f32 %v643, %v367
  %v645 = vadd.f32 %v644, %v370
  %v646 = vadd.f32 %v645, %v372
  %v647 = vadd.f32 %v646, %v375
  %v648 = vadd.f32 %v647, %v377
  %v649 = vadd.f32 %v648, %v380
  %v650 = vadd.f32 %v649, %v382
  %v651 = vadd.f32 %v650, %v385
  %v652 = vadd.f32 %v651, %v387
  %v653 = vadd.f32 %v652, %v390
  %v654 = vadd.f32 %v653, %v392
  %v655 = vadd.f32 %v654, %v395
  %v656 = vadd.f32 %v655, %v397
  %v657 = vadd.f32 %v656, %v400
  %v658 = vadd.f32 %v657, %v402
  %v659 = vadd.f32 %v658, %v405
  %v660 = vadd.f32 %v659, %v407
  %v661 = vadd.f32 %v660, %v410
  %v662 = vadd.f32 %v661, %v412
  %v663 = vadd.f32 %v662, %v415
  %v664 = vadd.f32 %v663, %v417
  %v665 = vadd.f32 %v664, %v420
  %v666 = vadd.f32 %v665, %v422
  %v667 = vadd.f32 %v666, %v425
  %v668 = vadd.f32 %v667, %v427
  %v669 = vadd.f32 %v668, %v430
  %v670 = vadd.f32 %v669, %v432
  %v671 = vadd.f32 %v670, %v435
  %v672 = vadd.f32 %v671, %v437
  %v673 = vadd.f32 %v672, %v440
  %v674 = vadd.f32 %v673, %v442
  %v675 = vadd.f32 %v674, %v445
  %v676 = vadd.f32 %v675, %v447
  %v677 = vadd.f32 %v676, %v450
  %v678 = vadd.f32 %v677, %v452
  %v679 = vadd.f32 %v678, %v455
  %v680 = vadd.f32 %v679, %v457
  %v681 = vadd.f32 %v680, %v460
  %v682 = vadd.f32 %v681, %v462
  %v683 = vadd.f32 %v682, %v465
  %v684 = vadd.f32 %v683, %v467
  %v685 = vadd.f32 %v684, %v470
  %v686 = vadd.f32 %v685, %v472
  %v687 = vadd.f32 %v686, %v475
  %v688 = vadd.f32 %v687, %v477
  %v689 = vadd.f32 %v688, %v480
  %v690 = vadd.f32 %v689, %v482
  %v691 = vadd.f32 %v690, %v485
  %v692 = vadd.f32 %v691, %v487
  %v693 = vadd.f32 %v692, %v490
  %v694 = vadd.f32 %v693, %v492
  %v695 = vadd.f32 %v694, %v495
  %v696 = vadd.f32 %v695, %v497
  %v697 = vadd.f32 %v696, %v500
  %v698 = vadd.f32 %v697, %v502
  %v699 = vadd.f32 %v698, %v505
  %v700 = vadd.f32 %v699, %v507
  %v701 = vrot.slane %v700, 4
  %v702 = vadd.f32 %v700, %v701
  %v703 = vrot.slane %v702, 2
  %v704 = vadd.f32 %v702, %v703
  %v705 = vrot.slane %v704, 1
  %v706 = vadd.f32 %v704, %v705
  %v707 = vadd.f32 %v637, %v706
  %708 = vst [vmem:[%s3] sm:$0x1] %v707
  %v709 = vld [vmem:[%s4] sm:$0x1]
  %v710 = vmul.f32 %v350, %v350
  %v711 = vmul.f32 %v352, %v352
  %v712 = vmul.f32 %v355, %v355
  %v713 = vmul.f32 %v357, %v357
  %v714 = vmul.f32 %v360, %v360
  %v715 = vmul.f32 %v362, %v362
  %v716 = vmul.f32 %v365, %v365
  %v717 = vmul.f32 %v367, %v367
  %v718 = vmul.f32 %v370, %v370
  %v719 = vmul.f32 %v372, %v372
  %v720 = vmul.f32 %v375, %v375
  %v721 = vmul.f32 %v377, %v377
  %v722 = vmul.f32 %v380, %v380
  %v723 = vmul.f32 %v382, %v382
  %v724 = vmul.f32 %v385, %v385
  %v725 = vmul.f32 %v387, %v387
  %v726 = vmul.f32 %v390, %v390
  %v727 = vmul.f32 %v392, %v392
  %v728 = vmul.f32 %v395, %v395
  %v729 = vmul.f32 %v397, %v397
  %v730 = vmul.f32 %v400, %v400
  %v731 = vmul.f32 %v402, %v402
  %v732 = vmul.f32 %v405, %v405
  %v733 = vmul.f32 %v407, %v407
  %v734 = vmul.f32 %v410, %v410
  %v735 = vmul.f32 %v412, %v412
  %v736 = vmul.f32 %v415, %v415
  %v737 = vmul.f32 %v417, %v417
  %v738 = vmul.f32 %v420, %v420
  %v739 = vmul.f32 %v422, %v422
  %v740 = vmul.f32 %v425, %v425
  %v741 = vmul.f32 %v427, %v427
  %v742 = vmul.f32 %v430, %v430
  %v743 = vmul.f32 %v432, %v432
  %v744 = vmul.f32 %v435, %v435
  %v745 = vmul.f32 %v437, %v437
  %v746 = vmul.f32 %v440, %v440
  %v747 = vmul.f32 %v442, %v442
  %v748 = vmul.f32 %v445, %v445
  %v749 = vmul.f32 %v447, %v447
  %v750 = vmul.f32 %v450, %v450
  %v751 = vmul.f32 %v452, %v452
  %v752 = vmul.f32 %v455, %v455
  %v753 = vmul.f32 %v457, %v457
  %v754 = vmul.f32 %v460, %v460
  %v755 = vmul.f32 %v462, %v462
  %v756 = vmul.f32 %v465, %v465
  %v757 = vmul.f32 %v467, %v467
  %v758 = vmul.f32 %v470, %v470
  %v759 = vmul.f32 %v472, %v472
  %v760 = vmul.f32 %v475, %v475
  %v761 = vmul.f32 %v477, %v477
  %v762 = vmul.f32 %v480, %v480
  %v763 = vmul.f32 %v482, %v482
  %v764 = vmul.f32 %v485, %v485
  %v765 = vmul.f32 %v487, %v487
  %v766 = vmul.f32 %v490, %v490
  %v767 = vmul.f32 %v492, %v492
  %v768 = vmul.f32 %v495, %v495
  %v769 = vmul.f32 %v497, %v497
  %v770 = vmul.f32 %v500, %v500
  %v771 = vmul.f32 %v502, %v502
  %v772 = vmul.f32 %v505, %v505
  %v773 = vmul.f32 %v507, %v507
  %v774 = vadd.f32 %v710, %v711
  %v775 = vadd.f32 %v774, %v712
  %v776 = vadd.f32 %v775, %v713
  %v777 = vadd.f32 %v776, %v714
  %v778 = vadd.f32 %v777, %v715
  %v779 = vadd.f32 %v778, %v716
  %v780 = vadd.f32 %v779, %v717
  %v781 = vadd.f32 %v780, %v718
  %v782 = vadd.f32 %v781, %v719
  %v783 = vadd.f32 %v782, %v720
  %v784 = vadd.f32 %v783, %v721
  %v785 = vadd.f32 %v784, %v722
  %v786 = vadd.f32 %v785, %v723
  %v787 = vadd.f32 %v786, %v724
  %v788 = vadd.f32 %v787, %v725
  %v789 = vadd.f32 %v788, %v726
  %v790 = vadd.f32 %v789, %v727
  %v791 = vadd.f32 %v790, %v728
  %v792 = vadd.f32 %v791, %v729
  %v793 = vadd.f32 %v792, %v730
  %v794 = vadd.f32 %v793, %v731
  %v795 = vadd.f32 %v794, %v732
  %v796 = vadd.f32 %v795, %v733
  %v797 = vadd.f32 %v796, %v734
  %v798 = vadd.f32 %v797, %v735
  %v799 = vadd.f32 %v798, %v736
  %v800 = vadd.f32 %v799, %v737
  %v801 = vadd.f32 %v800, %v738
  %v802 = vadd.f32 %v801, %v739
  %v803 = vadd.f32 %v802, %v740
  %v804 = vadd.f32 %v803, %v741
  %v805 = vadd.f32 %v804, %v742
  %v806 = vadd.f32 %v805, %v743
  %v807 = vadd.f32 %v806, %v744
  %v808 = vadd.f32 %v807, %v745
  %v809 = vadd.f32 %v808, %v746
  %v810 = vadd.f32 %v809, %v747
  %v811 = vadd.f32 %v810, %v748
  %v812 = vadd.f32 %v811, %v749
  %v813 = vadd.f32 %v812, %v750
  %v814 = vadd.f32 %v813, %v751
  %v815 = vadd.f32 %v814, %v752
  %v816 = vadd.f32 %v815, %v753
  %v817 = vadd.f32 %v816, %v754
  %v818 = vadd.f32 %v817, %v755
  %v819 = vadd.f32 %v818, %v756
  %v820 = vadd.f32 %v819, %v757
  %v821 = vadd.f32 %v820, %v758
  %v822 = vadd.f32 %v821, %v759
  %v823 = vadd.f32 %v822, %v760
  %v824 = vadd.f32 %v823, %v761
  %v825 = vadd.f32 %v824, %v762
  %v826 = vadd.f32 %v825, %v763
  %v827 = vadd.f32 %v826, %v764
  %v828 = vadd.f32 %v827, %v765
  %v829 = vadd.f32 %v828, %v766
  %v830 = vadd.f32 %v829, %v767
  %v831 = vadd.f32 %v830, %v768
  %v832 = vadd.f32 %v831, %v769
  %v833 = vadd.f32 %v832, %v770
  %v834 = vadd.f32 %v833, %v771
  %v835 = vadd.f32 %v834, %v772
  %v836 = vadd.f32 %v835, %v773
  %v837 = vrot.slane %v836, 4
  %v838 = vadd.f32 %v836, %v837
  %v839 = vrot.slane %v838, 2
  %v840 = vadd.f32 %v838, %v839
  %v841 = vrot.slane %v840, 1
  %v842 = vadd.f32 %v840, %v841
  %v843 = vadd.f32 %v709, %v842
  %844 = vst [vmem:[%s4] sm:$0x1] %v843
  // Predicated region
  $region14: #{discriminator_forward.11} parent=0 // pred_check
    _
  $region15: #{discriminator_forward.11} parent=0 // pred_check_branch
    %846 = sbr.rel (0) target = $region17
  $region16: #{discriminator_forward.11} parent=0 // pred_region
    _
  $region17: #{discriminator_forward.11} parent=0 // pred_fallthru
    _
  // Predicated region
  $region18: #{discriminator_forward.11} parent=0 // pred_check
    _
  $region19: #{discriminator_forward.11} parent=0 // pred_check_branch
    %848 = sbr.rel (0) target = $region21
  $region20: #{discriminator_forward.11} parent=0 // pred_region
    _
  $region21: #{discriminator_forward.11} parent=0 // pred_fallthru
    _
  // Predicated region
  $region22: #{discriminator_forward.11} parent=0 // pred_check
    _
  $region23: #{discriminator_forward.11} parent=0 // pred_check_branch
    %850 = sbr.rel (0) target = $region25
  $region24: #{discriminator_forward.11} parent=0 // pred_region
    _
  $region25: #{discriminator_forward.11} parent=0 // pred_fallthru
    _
  // Predicated region
  $region26: #{discriminator_forward.11} parent=0 // pred_check
    _
  $region27: #{discriminator_forward.11} parent=0 // pred_check_branch
    %852 = sbr.rel (0) target = $region29
  $region28: #{discriminator_forward.11} parent=0 // pred_region
    _
  $region29: #{discriminator_forward.11} parent=0 // pred_fallthru
    _
  // Predicated region
  $region30: #{discriminator_forward.11} parent=0 // pred_check
    _
  $region31: #{discriminator_forward.11} parent=0 // pred_check_branch
    %854 = sbr.rel (0) target = $region33
  $region32: #{discriminator_forward.11} parent=0 // pred_region
    _
  $region33: #{discriminator_forward.11} parent=0 // pred_fallthru
    _
  // Predicated region
  $region34: #{discriminator_forward.11} parent=0 // pred_check
    _
  $region35: #{discriminator_forward.11} parent=0 // pred_check_branch
    %856 = sbr.rel (0) target = $region37
  $region36: #{discriminator_forward.11} parent=0 // pred_region
    _
  $region37: #{discriminator_forward.11} parent=0 // pred_fallthru
    _

// kernel: discriminator_forward.12
$region0: #{discriminator_forward.12}
  #allocation0 [shape = 'u32[]', space=smem, size = 0x4, offset = 0x4, fixed_abs, tag = 'smem constant byte address 0x4 - core index']
  #allocation1 [shape = 'u32[72,128]{1,0:T(1,128)}', space=vmem, size = 0x9000, scoped, tag = 'internal scratch']
  %s0 = inlined_call_operand.vmem [shape: bf16[512,128], index: 0, kind: input, shape index: {}]
  %s1 = inlined_call_operand.vmem [shape: f32[1,128], index: 1, kind: input, shape index: {}]
  %s2 = inlined_call_operand.vmem [shape: f32[1,128], index: 2, kind: input, shape index: {}]
  %s3 = inlined_call_operand.vmem [shape: bf16[512,128], index: 3, kind: output, shape index: {}]
  %s4 = sld [smem:[#allocation0]]
  $region22: #{discriminator_forward.12} parent=0
    _
  %s6 = ssub.s32 1, %s4
  %s7 = scalar_select 0, %s6, %s4
  // Predicated region
  $region2: #{discriminator_forward.12} parent=0 // pred_check
    _
  $region3: #{discriminator_forward.12} parent=0 // pred_check_branch
    %9 = sbr.rel (0) target = $region5
  $region4: #{discriminator_forward.12} parent=0 // pred_region
    _
  $region5: #{discriminator_forward.12} parent=0 // pred_fallthru
    _
  // Predicated region
  $region6: #{discriminator_forward.12} parent=0 // pred_check
    _
  $region7: #{discriminator_forward.12} parent=0 // pred_check_branch
    %11 = sbr.rel (0) target = $region9
  $region8: #{discriminator_forward.12} parent=0 // pred_region
    _
  $region9: #{discriminator_forward.12} parent=0 // pred_fallthru
    _
  // Predicated region
  $region10: #{discriminator_forward.12} parent=0 // pred_check
    _
  $region11: #{discriminator_forward.12} parent=0 // pred_check_branch
    %13 = sbr.rel (0) target = $region13
  $region12: #{discriminator_forward.12} parent=0 // pred_region
    _
  $region13: #{discriminator_forward.12} parent=0 // pred_fallthru
    _
  %v14 = vld [vmem:[%s0] sm:$0xf]
  %v15 = vld [vmem:[%s0 + $0x4] sm:$0xf]
  %v16 = vld [vmem:[%s0 + $0x8] sm:$0xf]
  %v17 = vld [vmem:[%s0 + $0xc] sm:$0xf]
  %v18 = vld [vmem:[%s0 + $0x10] sm:$0xf]
  %v19 = vld [vmem:[%s0 + $0x14] sm:$0xf]
  %v20 = vld [vmem:[%s0 + $0x18] sm:$0xf]
  %v21 = vld [vmem:[%s0 + $0x1c] sm:$0xf]
  %v22 = vld [vmem:[%s0 + $0x20] sm:$0xf]
  %v23 = vld [vmem:[%s0 + $0x24] sm:$0xf]
  %v24 = vld [vmem:[%s0 + $0x28] sm:$0xf]
  %v25 = vld [vmem:[%s0 + $0x2c] sm:$0xf]
  %v26 = vld [vmem:[%s0 + $0x30] sm:$0xf]
  %v27 = vld [vmem:[%s0 + $0x34] sm:$0xf]
  %v28 = vld [vmem:[%s0 + $0x38] sm:$0xf]
  %v29 = vld [vmem:[%s0 + $0x3c] sm:$0xf]
  %v30 = vld [vmem:[%s0 + $0x40] sm:$0xf]
  %v31 = vld [vmem:[%s0 + $0x44] sm:$0xf]
  %v32 = vld [vmem:[%s0 + $0x48] sm:$0xf]
  %v33 = vld [vmem:[%s0 + $0x4c] sm:$0xf]
  %v34 = vld [vmem:[%s0 + $0x50] sm:$0xf]
  %v35 = vld [vmem:[%s0 + $0x54] sm:$0xf]
  %v36 = vld [vmem:[%s0 + $0x58] sm:$0xf]
  %v37 = vld [vmem:[%s0 + $0x5c] sm:$0xf]
  %v38 = vld [vmem:[%s0 + $0x60] sm:$0xf]
  %v39 = vld [vmem:[%s0 + $0x64] sm:$0xf]
  %v40 = vld [vmem:[%s0 + $0x68] sm:$0xf]
  %v41 = vld [vmem:[%s0 + $0x6c] sm:$0xf]
  %v42 = vld [vmem:[%s0 + $0x70] sm:$0xf]
  %v43 = vld [vmem:[%s0 + $0x74] sm:$0xf]
  %v44 = vld [vmem:[%s0 + $0x78] sm:$0xf]
  %v45 = vld [vmem:[%s0 + $0x7c] sm:$0xf]
  %v46 = vld [vmem:[%s0 + $0x80] sm:$0xf]
  %v47 = vld [vmem:[%s0 + $0x84] sm:$0xf]
  %v48 = vld [vmem:[%s0 + $0x88] sm:$0xf]
  %v49 = vld [vmem:[%s0 + $0x8c] sm:$0xf]
  %v50 = vld [vmem:[%s0 + $0x90] sm:$0xf]
  %v51 = vld [vmem:[%s0 + $0x94] sm:$0xf]
  %v52 = vld [vmem:[%s0 + $0x98] sm:$0xf]
  %v53 = vld [vmem:[%s0 + $0x9c] sm:$0xf]
  %v54 = vld [vmem:[%s0 + $0xa0] sm:$0xf]
  %v55 = vld [vmem:[%s0 + $0xa4] sm:$0xf]
  %v56 = vld [vmem:[%s0 + $0xa8] sm:$0xf]
  %v57 = vld [vmem:[%s0 + $0xac] sm:$0xf]
  %v58 = vld [vmem:[%s0 + $0xb0] sm:$0xf]
  %v59 = vld [vmem:[%s0 + $0xb4] sm:$0xf]
  %v60 = vld [vmem:[%s0 + $0xb8] sm:$0xf]
  %v61 = vld [vmem:[%s0 + $0xbc] sm:$0xf]
  %v62 = vld [vmem:[%s0 + $0xc0] sm:$0xf]
  %v63 = vld [vmem:[%s0 + $0xc4] sm:$0xf]
  %v64 = vld [vmem:[%s0 + $0xc8] sm:$0xf]
  %v65 = vld [vmem:[%s0 + $0xcc] sm:$0xf]
  %v66 = vld [vmem:[%s0 + $0xd0] sm:$0xf]
  %v67 = vld [vmem:[%s0 + $0xd4] sm:$0xf]
  %v68 = vld [vmem:[%s0 + $0xd8] sm:$0xf]
  %v69 = vld [vmem:[%s0 + $0xdc] sm:$0xf]
  %v70 = vld [vmem:[%s0 + $0xe0] sm:$0xf]
  %v71 = vld [vmem:[%s0 + $0xe4] sm:$0xf]
  %v72 = vld [vmem:[%s0 + $0xe8] sm:$0xf]
  %v73 = vld [vmem:[%s0 + $0xec] sm:$0xf]
  %v74 = vld [vmem:[%s0 + $0xf0] sm:$0xf]
  %v75 = vld [vmem:[%s0 + $0xf4] sm:$0xf]
  %v76 = vld [vmem:[%s0 + $0xf8] sm:$0xf]
  %v77 = vld [vmem:[%s0 + $0xfc] sm:$0xf]
  %v78 = vunpack.c.l.bf16 %v14
  %v79 = vunpack.c.l.bf16 %v15
  %v80 = vunpack.c.l.bf16 %v16
  %v81 = vunpack.c.l.bf16 %v17
  %v82 = vunpack.c.l.bf16 %v18
  %v83 = vunpack.c.l.bf16 %v19
  %v84 = vunpack.c.l.bf16 %v20
  %v85 = vunpack.c.l.bf16 %v21
  %v86 = vunpack.c.l.bf16 %v22
  %v87 = vunpack.c.l.bf16 %v23
  %v88 = vunpack.c.l.bf16 %v24
  %v89 = vunpack.c.l.bf16 %v25
  %v90 = vunpack.c.l.bf16 %v26
  %v91 = vunpack.c.l.bf16 %v27
  %v92 = vunpack.c.l.bf16 %v28
  %v93 = vunpack.c.l.bf16 %v29
  %v94 = vunpack.c.l.bf16 %v30
  %v95 = vunpack.c.l.bf16 %v31
  %v96 = vunpack.c.l.bf16 %v32
  %v97 = vunpack.c.l.bf16 %v33
  %v98 = vunpack.c.l.bf16 %v34
  %v99 = vunpack.c.l.bf16 %v35
  %v100 = vunpack.c.l.bf16 %v36
  %v101 = vunpack.c.l.bf16 %v37
  %v102 = vunpack.c.l.bf16 %v38
  %v103 = vunpack.c.l.bf16 %v39
  %v104 = vunpack.c.l.bf16 %v40
  %v105 = vunpack.c.l.bf16 %v41
  %v106 = vunpack.c.l.bf16 %v42
  %v107 = vunpack.c.l.bf16 %v43
  %v108 = vunpack.c.l.bf16 %v44
  %v109 = vunpack.c.l.bf16 %v45
  %v110 = vunpack.c.l.bf16 %v46
  %v111 = vunpack.c.l.bf16 %v47
  %v112 = vunpack.c.l.bf16 %v48
  %v113 = vunpack.c.l.bf16 %v49
  %v114 = vunpack.c.l.bf16 %v50
  %v115 = vunpack.c.l.bf16 %v51
  %v116 = vunpack.c.l.bf16 %v52
  %v117 = vunpack.c.l.bf16 %v53
  %v118 = vunpack.c.l.bf16 %v54
  %v119 = vunpack.c.l.bf16 %v55
  %v120 = vunpack.c.l.bf16 %v56
  %v121 = vunpack.c.l.bf16 %v57
  %v122 = vunpack.c.l.bf16 %v58
  %v123 = vunpack.c.l.bf16 %v59
  %v124 = vunpack.c.l.bf16 %v60
  %v125 = vunpack.c.l.bf16 %v61
  %v126 = vunpack.c.l.bf16 %v62
  %v127 = vunpack.c.l.bf16 %v63
  %v128 = vunpack.c.l.bf16 %v64
  %v129 = vunpack.c.l.bf16 %v65
  %v130 = vunpack.c.l.bf16 %v66
  %v131 = vunpack.c.l.bf16 %v67
  %v132 = vunpack.c.l.bf16 %v68
  %v133 = vunpack.c.l.bf16 %v69
  %v134 = vunpack.c.l.bf16 %v70
  %v135 = vunpack.c.l.bf16 %v71
  %v136 = vunpack.c.l.bf16 %v72
  %v137 = vunpack.c.l.bf16 %v73
  %v138 = vunpack.c.l.bf16 %v74
  %v139 = vunpack.c.l.bf16 %v75
  %v140 = vunpack.c.l.bf16 %v76
  %v141 = vunpack.c.l.bf16 %v77
  %v142 = vld [vmem:[%s1] sm:$0x1]
  %v144 = vperm.slane %v142, 0
  %v146 = vmul.f32 %v78, %v144
  %v147 = vmul.f32 %v79, %v144
  %v148 = vmul.f32 %v80, %v144
  %v149 = vmul.f32 %v81, %v144
  %v150 = vmul.f32 %v82, %v144
  %v151 = vmul.f32 %v83, %v144
  %v152 = vmul.f32 %v84, %v144
  %v153 = vmul.f32 %v85, %v144
  %v154 = vmul.f32 %v86, %v144
  %v155 = vmul.f32 %v87, %v144
  %v156 = vmul.f32 %v88, %v144
  %v157 = vmul.f32 %v89, %v144
  %v158 = vmul.f32 %v90, %v144
  %v159 = vmul.f32 %v91, %v144
  %v160 = vmul.f32 %v92, %v144
  %v161 = vmul.f32 %v93, %v144
  %v162 = vmul.f32 %v94, %v144
  %v163 = vmul.f32 %v95, %v144
  %v164 = vmul.f32 %v96, %v144
  %v165 = vmul.f32 %v97, %v144
  %v166 = vmul.f32 %v98, %v144
  %v167 = vmul.f32 %v99, %v144
  %v168 = vmul.f32 %v100, %v144
  %v169 = vmul.f32 %v101, %v144
  %v170 = vmul.f32 %v102, %v144
  %v171 = vmul.f32 %v103, %v144
  %v172 = vmul.f32 %v104, %v144
  %v173 = vmul.f32 %v105, %v144
  %v174 = vmul.f32 %v106, %v144
  %v175 = vmul.f32 %v107, %v144
  %v176 = vmul.f32 %v108, %v144
  %v177 = vmul.f32 %v109, %v144
  %v178 = vmul.f32 %v110, %v144
  %v179 = vmul.f32 %v111, %v144
  %v180 = vmul.f32 %v112, %v144
  %v181 = vmul.f32 %v113, %v144
  %v182 = vmul.f32 %v114, %v144
  %v183 = vmul.f32 %v115, %v144
  %v184 = vmul.f32 %v116, %v144
  %v185 = vmul.f32 %v117, %v144
  %v186 = vmul.f32 %v118, %v144
  %v187 = vmul.f32 %v119, %v144
  %v188 = vmul.f32 %v120, %v144
  %v189 = vmul.f32 %v121, %v144
  %v190 = vmul.f32 %v122, %v144
  %v191 = vmul.f32 %v123, %v144
  %v192 = vmul.f32 %v124, %v144
  %v193 = vmul.f32 %v125, %v144
  %v194 = vmul.f32 %v126, %v144
  %v195 = vmul.f32 %v127, %v144
  %v196 = vmul.f32 %v128, %v144
  %v197 = vmul.f32 %v129, %v144
  %v198 = vmul.f32 %v130, %v144
  %v199 = vmul.f32 %v131, %v144
  %v200 = vmul.f32 %v132, %v144
  %v201 = vmul.f32 %v133, %v144
  %v202 = vmul.f32 %v134, %v144
  %v203 = vmul.f32 %v135, %v144
  %v204 = vmul.f32 %v136, %v144
  %v205 = vmul.f32 %v137, %v144
  %v206 = vmul.f32 %v138, %v144
  %v207 = vmul.f32 %v139, %v144
  %v208 = vmul.f32 %v140, %v144
  %v209 = vmul.f32 %v141, %v144
  %v210 = vld [vmem:[%s2] sm:$0x1]
  %v212 = vperm.slane %v210, 0
  %v214 = vadd.f32 %v146, %v212
  %v215 = vadd.f32 %v147, %v212
  %v216 = vadd.f32 %v148, %v212
  %v217 = vadd.f32 %v149, %v212
  %v218 = vadd.f32 %v150, %v212
  %v219 = vadd.f32 %v151, %v212
  %v220 = vadd.f32 %v152, %v212
  %v221 = vadd.f32 %v153, %v212
  %v222 = vadd.f32 %v154, %v212
  %v223 = vadd.f32 %v155, %v212
  %v224 = vadd.f32 %v156, %v212
  %v225 = vadd.f32 %v157, %v212
  %v226 = vadd.f32 %v158, %v212
  %v227 = vadd.f32 %v159, %v212
  %v228 = vadd.f32 %v160, %v212
  %v229 = vadd.f32 %v161, %v212
  %v230 = vadd.f32 %v162, %v212
  %v231 = vadd.f32 %v163, %v212
  %v232 = vadd.f32 %v164, %v212
  %v233 = vadd.f32 %v165, %v212
  %v234 = vadd.f32 %v166, %v212
  %v235 = vadd.f32 %v167, %v212
  %v236 = vadd.f32 %v168, %v212
  %v237 = vadd.f32 %v169, %v212
  %v238 = vadd.f32 %v170, %v212
  %v239 = vadd.f32 %v171, %v212
  %v240 = vadd.f32 %v172, %v212
  %v241 = vadd.f32 %v173, %v212
  %v242 = vadd.f32 %v174, %v212
  %v243 = vadd.f32 %v175, %v212
  %v244 = vadd.f32 %v176, %v212
  %v245 = vadd.f32 %v177, %v212
  %v246 = vadd.f32 %v178, %v212
  %v247 = vadd.f32 %v179, %v212
  %v248 = vadd.f32 %v180, %v212
  %v249 = vadd.f32 %v181, %v212
  %v250 = vadd.f32 %v182, %v212
  %v251 = vadd.f32 %v183, %v212
  %v252 = vadd.f32 %v184, %v212
  %v253 = vadd.f32 %v185, %v212
  %v254 = vadd.f32 %v186, %v212
  %v255 = vadd.f32 %v187, %v212
  %v256 = vadd.f32 %v188, %v212
  %v257 = vadd.f32 %v189, %v212
  %v258 = vadd.f32 %v190, %v212
  %v259 = vadd.f32 %v191, %v212
  %v260 = vadd.f32 %v192, %v212
  %v261 = vadd.f32 %v193, %v212
  %v262 = vadd.f32 %v194, %v212
  %v263 = vadd.f32 %v195, %v212
  %v264 = vadd.f32 %v196, %v212
  %v265 = vadd.f32 %v197, %v212
  %v266 = vadd.f32 %v198, %v212
  %v267 = vadd.f32 %v199, %v212
  %v268 = vadd.f32 %v200, %v212
  %v269 = vadd.f32 %v201, %v212
  %v270 = vadd.f32 %v202, %v212
  %v271 = vadd.f32 %v203, %v212
  %v272 = vadd.f32 %v204, %v212
  %v273 = vadd.f32 %v205, %v212
  %v274 = vadd.f32 %v206, %v212
  %v275 = vadd.f32 %v207, %v212
  %v276 = vadd.f32 %v208, %v212
  %v277 = vadd.f32 %v209, %v212
  %vm278 = vcmp.ge.f32.partialorder %v214, 0.0
  %vm279 = vcmp.ge.f32.partialorder %v215, 0.0
  %vm280 = vcmp.ge.f32.partialorder %v216, 0.0
  %vm281 = vcmp.ge.f32.partialorder %v217, 0.0
  %vm282 = vcmp.ge.f32.partialorder %v218, 0.0
  %vm283 = vcmp.ge.f32.partialorder %v219, 0.0
  %vm284 = vcmp.ge.f32.partialorder %v220, 0.0
  %vm285 = vcmp.ge.f32.partialorder %v221, 0.0
  %vm286 = vcmp.ge.f32.partialorder %v222, 0.0
  %vm287 = vcmp.ge.f32.partialorder %v223, 0.0
  %vm288 = vcmp.ge.f32.partialorder %v224, 0.0
  %vm289 = vcmp.ge.f32.partialorder %v225, 0.0
  %vm290 = vcmp.ge.f32.partialorder %v226, 0.0
  %vm291 = vcmp.ge.f32.partialorder %v227, 0.0
  %vm292 = vcmp.ge.f32.partialorder %v228, 0.0
  %vm293 = vcmp.ge.f32.partialorder %v229, 0.0
  %vm294 = vcmp.ge.f32.partialorder %v230, 0.0
  %vm295 = vcmp.ge.f32.partialorder %v231, 0.0
  %vm296 = vcmp.ge.f32.partialorder %v232, 0.0
  %vm297 = vcmp.ge.f32.partialorder %v233, 0.0
  %vm298 = vcmp.ge.f32.partialorder %v234, 0.0
  %vm299 = vcmp.ge.f32.partialorder %v235, 0.0
  %vm300 = vcmp.ge.f32.partialorder %v236, 0.0
  %vm301 = vcmp.ge.f32.partialorder %v237, 0.0
  %vm302 = vcmp.ge.f32.partialorder %v238, 0.0
  %vm303 = vcmp.ge.f32.partialorder %v239, 0.0
  %vm304 = vcmp.ge.f32.partialorder %v240, 0.0
  %vm305 = vcmp.ge.f32.partialorder %v241, 0.0
  %vm306 = vcmp.ge.f32.partialorder %v242, 0.0
  %vm307 = vcmp.ge.f32.partialorder %v243, 0.0
  %vm308 = vcmp.ge.f32.partialorder %v244, 0.0
  %vm309 = vcmp.ge.f32.partialorder %v245, 0.0
  %vm310 = vcmp.ge.f32.partialorder %v246, 0.0
  %vm311 = vcmp.ge.f32.partialorder %v247, 0.0
  %vm312 = vcmp.ge.f32.partialorder %v248, 0.0
  %vm313 = vcmp.ge.f32.partialorder %v249, 0.0
  %vm314 = vcmp.ge.f32.partialorder %v250, 0.0
  %vm315 = vcmp.ge.f32.partialorder %v251, 0.0
  %vm316 = vcmp.ge.f32.partialorder %v252, 0.0
  %vm317 = vcmp.ge.f32.partialorder %v253, 0.0
  %vm318 = vcmp.ge.f32.partialorder %v254, 0.0
  %vm319 = vcmp.ge.f32.partialorder %v255, 0.0
  %vm320 = vcmp.ge.f32.partialorder %v256, 0.0
  %vm321 = vcmp.ge.f32.partialorder %v257, 0.0
  %vm322 = vcmp.ge.f32.partialorder %v258, 0.0
  %vm323 = vcmp.ge.f32.partialorder %v259, 0.0
  %vm324 = vcmp.ge.f32.partialorder %v260, 0.0
  %vm325 = vcmp.ge.f32.partialorder %v261, 0.0
  %vm326 = vcmp.ge.f32.partialorder %v262, 0.0
  %vm327 = vcmp.ge.f32.partialorder %v263, 0.0
  %vm328 = vcmp.ge.f32.partialorder %v264, 0.0
  %vm329 = vcmp.ge.f32.partialorder %v265, 0.0
  %vm330 = vcmp.ge.f32.partialorder %v266, 0.0
  %vm331 = vcmp.ge.f32.partialorder %v267, 0.0
  %vm332 = vcmp.ge.f32.partialorder %v268, 0.0
  %vm333 = vcmp.ge.f32.partialorder %v269, 0.0
  %vm334 = vcmp.ge.f32.partialorder %v270, 0.0
  %vm335 = vcmp.ge.f32.partialorder %v271, 0.0
  %vm336 = vcmp.ge.f32.partialorder %v272, 0.0
  %vm337 = vcmp.ge.f32.partialorder %v273, 0.0
  %vm338 = vcmp.ge.f32.partialorder %v274, 0.0
  %vm339 = vcmp.ge.f32.partialorder %v275, 0.0
  %vm340 = vcmp.ge.f32.partialorder %v276, 0.0
  %vm341 = vcmp.ge.f32.partialorder %v277, 0.0
  %v342 = vmul.f32 %v214, 0.2
  %v343 = vmul.f32 %v215, 0.2
  %v344 = vmul.f32 %v216, 0.2
  %v345 = vmul.f32 %v217, 0.2
  %v346 = vmul.f32 %v218, 0.2
  %v347 = vmul.f32 %v219, 0.2
  %v348 = vmul.f32 %v220, 0.2
  %v349 = vmul.f32 %v221, 0.2
  %v350 = vmul.f32 %v222, 0.2
  %v351 = vmul.f32 %v223, 0.2
  %v352 = vmul.f32 %v224, 0.2
  %v353 = vmul.f32 %v225, 0.2
  %v354 = vmul.f32 %v226, 0.2
  %v355 = vmul.f32 %v227, 0.2
  %v356 = vmul.f32 %v228, 0.2
  %v357 = vmul.f32 %v229, 0.2
  %v358 = vmul.f32 %v230, 0.2
  %v359 = vmul.f32 %v231, 0.2
  %v360 = vmul.f32 %v232, 0.2
  %v361 = vmul.f32 %v233, 0.2
  %v362 = vmul.f32 %v234, 0.2
  %v363 = vmul.f32 %v235, 0.2
  %v364 = vmul.f32 %v236, 0.2
  %v365 = vmul.f32 %v237, 0.2
  %v366 = vmul.f32 %v238, 0.2
  %v367 = vmul.f32 %v239, 0.2
  %v368 = vmul.f32 %v240, 0.2
  %v369 = vmul.f32 %v241, 0.2
  %v370 = vmul.f32 %v242, 0.2
  %v371 = vmul.f32 %v243, 0.2
  %v372 = vmul.f32 %v244, 0.2
  %v373 = vmul.f32 %v245, 0.2
  %v374 = vmul.f32 %v246, 0.2
  %v375 = vmul.f32 %v247, 0.2
  %v376 = vmul.f32 %v248, 0.2
  %v377 = vmul.f32 %v249, 0.2
  %v378 = vmul.f32 %v250, 0.2
  %v379 = vmul.f32 %v251, 0.2
  %v380 = vmul.f32 %v252, 0.2
  %v381 = vmul.f32 %v253, 0.2
  %v382 = vmul.f32 %v254, 0.2
  %v383 = vmul.f32 %v255, 0.2
  %v384 = vmul.f32 %v256, 0.2
  %v385 = vmul.f32 %v257, 0.2
  %v386 = vmul.f32 %v258, 0.2
  %v387 = vmul.f32 %v259, 0.2
  %v388 = vmul.f32 %v260, 0.2
  %v389 = vmul.f32 %v261, 0.2
  %v390 = vmul.f32 %v262, 0.2
  %v391 = vmul.f32 %v263, 0.2
  %v392 = vmul.f32 %v264, 0.2
  %v393 = vmul.f32 %v265, 0.2
  %v394 = vmul.f32 %v266, 0.2
  %v395 = vmul.f32 %v267, 0.2
  %v396 = vmul.f32 %v268, 0.2
  %v397 = vmul.f32 %v269, 0.2
  %v398 = vmul.f32 %v270, 0.2
  %v399 = vmul.f32 %v271, 0.2
  %v400 = vmul.f32 %v272, 0.2
  %v401 = vmul.f32 %v273, 0.2
  %v402 = vmul.f32 %v274, 0.2
  %v403 = vmul.f32 %v275, 0.2
  %v404 = vmul.f32 %v276, 0.2
  %v405 = vmul.f32 %v277, 0.2
  %v406 = vsel %vm278, %v214, %v342
  %v407 = vsel %vm279, %v215, %v343
  %v408 = vsel %vm280, %v216, %v344
  %v409 = vsel %vm281, %v217, %v345
  %v410 = vsel %vm282, %v218, %v346
  %v411 = vsel %vm283, %v219, %v347
  %v412 = vsel %vm284, %v220, %v348
  %v413 = vsel %vm285, %v221, %v349
  %v414 = vsel %vm286, %v222, %v350
  %v415 = vsel %vm287, %v223, %v351
  %v416 = vsel %vm288, %v224, %v352
  %v417 = vsel %vm289, %v225, %v353
  %v418 = vsel %vm290, %v226, %v354
  %v419 = vsel %vm291, %v227, %v355
  %v420 = vsel %vm292, %v228, %v356
  %v421 = vsel %vm293, %v229, %v357
  %v422 = vsel %vm294, %v230, %v358
  %v423 = vsel %vm295, %v231, %v359
  %v424 = vsel %vm296, %v232, %v360
  %v425 = vsel %vm297, %v233, %v361
  %v426 = vsel %vm298, %v234, %v362
  %v427 = vsel %vm299, %v235, %v363
  %v428 = vsel %vm300, %v236, %v364
  %v429 = vsel %vm301, %v237, %v365
  %v430 = vsel %vm302, %v238, %v366
  %v431 = vsel %vm303, %v239, %v367
  %v432 = vsel %vm304, %v240, %v368
  %v433 = vsel %vm305, %v241, %v369
  %v434 = vsel %vm306, %v242, %v370
  %v435 = vsel %vm307, %v243, %v371
  %v436 = vsel %vm308, %v244, %v372
  %v437 = vsel %vm309, %v245, %v373
  %v438 = vsel %vm310, %v246, %v374
  %v439 = vsel %vm311, %v247, %v375
  %v440 = vsel %vm312, %v248, %v376
  %v441 = vsel %vm313, %v249, %v377
  %v442 = vsel %vm314, %v250, %v378
  %v443 = vsel %vm315, %v251, %v379
  %v444 = vsel %vm316, %v252, %v380
  %v445 = vsel %vm317, %v253, %v381
  %v446 = vsel %vm318, %v254, %v382
  %v447 = vsel %vm319, %v255, %v383
  %v448 = vsel %vm320, %v256, %v384
  %v449 = vsel %vm321, %v257, %v385
  %v450 = vsel %vm322, %v258, %v386
  %v451 = vsel %vm323, %v259, %v387
  %v452 = vsel %vm324, %v260, %v388
  %v453 = vsel %vm325, %v261, %v389
  %v454 = vsel %vm326, %v262, %v390
  %v455 = vsel %vm327, %v263, %v391
  %v456 = vsel %vm328, %v264, %v392
  %v457 = vsel %vm329, %v265, %v393
  %v458 = vsel %vm330, %v266, %v394
  %v459 = vsel %vm331, %v267, %v395
  %v460 = vsel %vm332, %v268, %v396
  %v461 = vsel %vm333, %v269, %v397
  %v462 = vsel %vm334, %v270, %v398
  %v463 = vsel %vm335, %v271, %v399
  %v464 = vsel %vm336, %v272, %v400
  %v465 = vsel %vm337, %v273, %v401
  %v466 = vsel %vm338, %v274, %v402
  %v467 = vsel %vm339, %v275, %v403
  %v468 = vsel %vm340, %v276, %v404
  %v469 = vsel %vm341, %v277, %v405
  %v470 = vpack.c.bf16 %v406, %v406
  %v471 = vpack.c.bf16 %v407, %v407
  %v472 = vpack.c.bf16 %v408, %v408
  %v473 = vpack.c.bf16 %v409, %v409
  %v474 = vpack.c.bf16 %v410, %v410
  %v475 = vpack.c.bf16 %v411, %v411
  %v476 = vpack.c.bf16 %v412, %v412
  %v477 = vpack.c.bf16 %v413, %v413
  %v478 = vpack.c.bf16 %v414, %v414
  %v479 = vpack.c.bf16 %v415, %v415
  %v480 = vpack.c.bf16 %v416, %v416
  %v481 = vpack.c.bf16 %v417, %v417
  %v482 = vpack.c.bf16 %v418, %v418
  %v483 = vpack.c.bf16 %v419, %v419
  %v484 = vpack.c.bf16 %v420, %v420
  %v485 = vpack.c.bf16 %v421, %v421
  %v486 = vpack.c.bf16 %v422, %v422
  %v487 = vpack.c.bf16 %v423, %v423
  %v488 = vpack.c.bf16 %v424, %v424
  %v489 = vpack.c.bf16 %v425, %v425
  %v490 = vpack.c.bf16 %v426, %v426
  %v491 = vpack.c.bf16 %v427, %v427
  %v492 = vpack.c.bf16 %v428, %v428
  %v493 = vpack.c.bf16 %v429, %v429
  %v494 = vpack.c.bf16 %v430, %v430
  %v495 = vpack.c.bf16 %v431, %v431
  %v496 = vpack.c.bf16 %v432, %v432
  %v497 = vpack.c.bf16 %v433, %v433
  %v498 = vpack.c.bf16 %v434, %v434
  %v499 = vpack.c.bf16 %v435, %v435
  %v500 = vpack.c.bf16 %v436, %v436
  %v501 = vpack.c.bf16 %v437, %v437
  %v502 = vpack.c.bf16 %v438, %v438
  %v503 = vpack.c.bf16 %v439, %v439
  %v504 = vpack.c.bf16 %v440, %v440
  %v505 = vpack.c.bf16 %v441, %v441
  %v506 = vpack.c.bf16 %v442, %v442
  %v507 = vpack.c.bf16 %v443, %v443
  %v508 = vpack.c.bf16 %v444, %v444
  %v509 = vpack.c.bf16 %v445, %v445
  %v510 = vpack.c.bf16 %v446, %v446
  %v511 = vpack.c.bf16 %v447, %v447
  %v512 = vpack.c.bf16 %v448, %v448
  %v513 = vpack.c.bf16 %v449, %v449
  %v514 = vpack.c.bf16 %v450, %v450
  %v515 = vpack.c.bf16 %v451, %v451
  %v516 = vpack.c.bf16 %v452, %v452
  %v517 = vpack.c.bf16 %v453, %v453
  %v518 = vpack.c.bf16 %v454, %v454
  %v519 = vpack.c.bf16 %v455, %v455
  %v520 = vpack.c.bf16 %v456, %v456
  %v521 = vpack.c.bf16 %v457, %v457
  %v522 = vpack.c.bf16 %v458, %v458
  %v523 = vpack.c.bf16 %v459, %v459
  %v524 = vpack.c.bf16 %v460, %v460
  %v525 = vpack.c.bf16 %v461, %v461
  %v526 = vpack.c.bf16 %v462, %v462
  %v527 = vpack.c.bf16 %v463, %v463
  %v528 = vpack.c.bf16 %v464, %v464
  %v529 = vpack.c.bf16 %v465, %v465
  %v530 = vpack.c.bf16 %v466, %v466
  %v531 = vpack.c.bf16 %v467, %v467
  %v532 = vpack.c.bf16 %v468, %v468
  %v533 = vpack.c.bf16 %v469, %v469
  %534 = vst [vmem:[%s3] sm:$0xf] %v470
  %535 = vst [vmem:[%s3 + $0x4] sm:$0xf] %v471
  %536 = vst [vmem:[%s3 + $0x8] sm:$0xf] %v472
  %537 = vst [vmem:[%s3 + $0xc] sm:$0xf] %v473
  %538 = vst [vmem:[%s3 + $0x10] sm:$0xf] %v474
  %539 = vst [vmem:[%s3 + $0x14] sm:$0xf] %v475
  %540 = vst [vmem:[%s3 + $0x18] sm:$0xf] %v476
  %541 = vst [vmem:[%s3 + $0x1c] sm:$0xf] %v477
  %542 = vst [vmem:[%s3 + $0x20] sm:$0xf] %v478
  %543 = vst [vmem:[%s3 + $0x24] sm:$0xf] %v479
  %544 = vst [vmem:[%s3 + $0x28] sm:$0xf] %v480
  %545 = vst [vmem:[%s3 + $0x2c] sm:$0xf] %v481
  %546 = vst [vmem:[%s3 + $0x30] sm:$0xf] %v482
  %547 = vst [vmem:[%s3 + $0x34] sm:$0xf] %v483
  %548 = vst [vmem:[%s3 + $0x38] sm:$0xf] %v484
  %549 = vst [vmem:[%s3 + $0x3c] sm:$0xf] %v485
  %550 = vst [vmem:[%s3 + $0x40] sm:$0xf] %v486
  %551 = vst [vmem:[%s3 + $0x44] sm:$0xf] %v487
  %552 = vst [vmem:[%s3 + $0x48] sm:$0xf] %v488
  %553 = vst [vmem:[%s3 + $0x4c] sm:$0xf] %v489
  %554 = vst [vmem:[%s3 + $0x50] sm:$0xf] %v490
  %555 = vst [vmem:[%s3 + $0x54] sm:$0xf] %v491
  %556 = vst [vmem:[%s3 + $0x58] sm:$0xf] %v492
  %557 = vst [vmem:[%s3 + $0x5c] sm:$0xf] %v493
  %558 = vst [vmem:[%s3 + $0x60] sm:$0xf] %v494
  %559 = vst [vmem:[%s3 + $0x64] sm:$0xf] %v495
  %560 = vst [vmem:[%s3 + $0x68] sm:$0xf] %v496
  %561 = vst [vmem:[%s3 + $0x6c] sm:$0xf] %v497
  %562 = vst [vmem:[%s3 + $0x70] sm:$0xf] %v498
  %563 = vst [vmem:[%s3 + $0x74] sm:$0xf] %v499
  %564 = vst [vmem:[%s3 + $0x78] sm:$0xf] %v500
  %565 = vst [vmem:[%s3 + $0x7c] sm:$0xf] %v501
  %566 = vst [vmem:[%s3 + $0x80] sm:$0xf] %v502
  %567 = vst [vmem:[%s3 + $0x84] sm:$0xf] %v503
  %568 = vst [vmem:[%s3 + $0x88] sm:$0xf] %v504
  %569 = vst [vmem:[%s3 + $0x8c] sm:$0xf] %v505
  %570 = vst [vmem:[%s3 + $0x90] sm:$0xf] %v506
  %571 = vst [vmem:[%s3 + $0x94] sm:$0xf] %v507
  %572 = vst [vmem:[%s3 + $0x98] sm:$0xf] %v508
  %573 = vst [vmem:[%s3 + $0x9c] sm:$0xf] %v509
  %574 = vst [vmem:[%s3 + $0xa0] sm:$0xf] %v510
  %575 = vst [vmem:[%s3 + $0xa4] sm:$0xf] %v511
  %576 = vst [vmem:[%s3 + $0xa8] sm:$0xf] %v512
  %577 = vst [vmem:[%s3 + $0xac] sm:$0xf] %v513
  %578 = vst [vmem:[%s3 + $0xb0] sm:$0xf] %v514
  %579 = vst [vmem:[%s3 + $0xb4] sm:$0xf] %v515
  %580 = vst [vmem:[%s3 + $0xb8] sm:$0xf] %v516
  %581 = vst [vmem:[%s3 + $0xbc] sm:$0xf] %v517
  %582 = vst [vmem:[%s3 + $0xc0] sm:$0xf] %v518
  %583 = vst [vmem:[%s3 + $0xc4] sm:$0xf] %v519
  %584 = vst [vmem:[%s3 + $0xc8] sm:$0xf] %v520
  %585 = vst [vmem:[%s3 + $0xcc] sm:$0xf] %v521
  %586 = vst [vmem:[%s3 + $0xd0] sm:$0xf] %v522
  %587 = vst [vmem:[%s3 + $0xd4] sm:$0xf] %v523
  %588 = vst [vmem:[%s3 + $0xd8] sm:$0xf] %v524
  %589 = vst [vmem:[%s3 + $0xdc] sm:$0xf] %v525
  %590 = vst [vmem:[%s3 + $0xe0] sm:$0xf] %v526
  %591 = vst [vmem:[%s3 + $0xe4] sm:$0xf] %v527
  %592 = vst [vmem:[%s3 + $0xe8] sm:$0xf] %v528
  %593 = vst [vmem:[%s3 + $0xec] sm:$0xf] %v529
  %594 = vst [vmem:[%s3 + $0xf0] sm:$0xf] %v530
  %595 = vst [vmem:[%s3 + $0xf4] sm:$0xf] %v531
  %596 = vst [vmem:[%s3 + $0xf8] sm:$0xf] %v532
  %597 = vst [vmem:[%s3 + $0xfc] sm:$0xf] %v533
  // Predicated region
  $region14: #{discriminator_forward.12} parent=0 // pred_check
    _
  $region15: #{discriminator_forward.12} parent=0 // pred_check_branch
    %599 = sbr.rel (0) target = $region17
  $region16: #{discriminator_forward.12} parent=0 // pred_region
    _
  $region17: #{discriminator_forward.12} parent=0 // pred_fallthru
    _
  // Predicated region
  $region18: #{discriminator_forward.12} parent=0 // pred_check
    _
  $region19: #{discriminator_forward.12} parent=0 // pred_check_branch
    %601 = sbr.rel (0) target = $region21
  $region20: #{discriminator_forward.12} parent=0 // pred_region
    _
  $region21: #{discriminator_forward.12} parent=0 // pred_fallthru
    _

// kernel: discriminator_forward.14
$region0: #{discriminator_forward.14}
  #allocation0 [shape = 'u32[]', space=smem, size = 0x4, offset = 0x4, fixed_abs, tag = 'smem constant byte address 0x4 - core index']
  #allocation1 [shape = 'u32[72,128]{1,0:T(1,128)}', space=vmem, size = 0x9000, scoped, tag = 'internal scratch']
  %s0 = inlined_call_operand.vmem [shape: bf16[128,128], index: 0, kind: input, shape index: {}]
  %s1 = inlined_call_operand.vmem [shape: f32[1,128], index: 1, kind: input, shape index: {}]
  %s2 = inlined_call_operand.vmem [shape: f32[1,128], index: 2, kind: input, shape index: {}]
  %s3 = inlined_call_operand.vmem [shape: bf16[128,128], index: 3, kind: output, shape index: {}]
  %s4 = sld [smem:[#allocation0]]
  $region22: #{discriminator_forward.14} parent=0
    _
  %s6 = ssub.s32 1, %s4
  %s7 = scalar_select 0, %s6, %s4
  // Predicated region
  $region2: #{discriminator_forward.14} parent=0 // pred_check
    _
  $region3: #{discriminator_forward.14} parent=0 // pred_check_branch
    %9 = sbr.rel (0) target = $region5
  $region4: #{discriminator_forward.14} parent=0 // pred_region
    _
  $region5: #{discriminator_forward.14} parent=0 // pred_fallthru
    _
  // Predicated region
  $region6: #{discriminator_forward.14} parent=0 // pred_check
    _
  $region7: #{discriminator_forward.14} parent=0 // pred_check_branch
    %11 = sbr.rel (0) target = $region9
  $region8: #{discriminator_forward.14} parent=0 // pred_region
    _
  $region9: #{discriminator_forward.14} parent=0 // pred_fallthru
    _
  // Predicated region
  $region10: #{discriminator_forward.14} parent=0 // pred_check
    _
  $region11: #{discriminator_forward.14} parent=0 // pred_check_branch
    %13 = sbr.rel (0) target = $region13
  $region12: #{discriminator_forward.14} parent=0 // pred_region
    _
  $region13: #{discriminator_forward.14} parent=0 // pred_fallthru
    _
  %v14 = vld [vmem:[%s0] sm:$0xf]
  %v15 = vld [vmem:[%s0 + $0x4] sm:$0xf]
  %v16 = vld [vmem:[%s0 + $0x8] sm:$0xf]
  %v17 = vld [vmem:[%s0 + $0xc] sm:$0xf]
  %v18 = vld [vmem:[%s0 + $0x10] sm:$0xf]
  %v19 = vld [vmem:[%s0 + $0x14] sm:$0xf]
  %v20 = vld [vmem:[%s0 + $0x18] sm:$0xf]
  %v21 = vld [vmem:[%s0 + $0x1c] sm:$0xf]
  %v22 = vld [vmem:[%s0 + $0x20] sm:$0xf]
  %v23 = vld [vmem:[%s0 + $0x24] sm:$0xf]
  %v24 = vld [vmem:[%s0 + $0x28] sm:$0xf]
  %v25 = vld [vmem:[%s0 + $0x2c] sm:$0xf]
  %v26 = vld [vmem:[%s0 + $0x30] sm:$0xf]
  %v27 = vld [vmem:[%s0 + $0x34] sm:$0xf]
  %v28 = vld [vmem:[%s0 + $0x38] sm:$0xf]
  %v29 = vld [vmem:[%s0 + $0x3c] sm:$0xf]
  %v30 = vunpack.c.l.bf16 %v14
  %v31 = vunpack.c.l.bf16 %v15
  %v32 = vunpack.c.l.bf16 %v16
  %v33 = vunpack.c.l.bf16 %v17
  %v34 = vunpack.c.l.bf16 %v18
  %v35 = vunpack.c.l.bf16 %v19
  %v36 = vunpack.c.l.bf16 %v20
  %v37 = vunpack.c.l.bf16 %v21
  %v38 = vunpack.c.l.bf16 %v22
  %v39 = vunpack.c.l.bf16 %v23
  %v40 = vunpack.c.l.bf16 %v24
  %v41 = vunpack.c.l.bf16 %v25
  %v42 = vunpack.c.l.bf16 %v26
  %v43 = vunpack.c.l.bf16 %v27
  %v44 = vunpack.c.l.bf16 %v28
  %v45 = vunpack.c.l.bf16 %v29
  %v46 = vld [vmem:[%s1] sm:$0x1]
  %v48 = vperm.slane %v46, 0
  %v50 = vmul.f32 %v30, %v48
  %v51 = vmul.f32 %v31, %v48
  %v52 = vmul.f32 %v32, %v48
  %v53 = vmul.f32 %v33, %v48
  %v54 = vmul.f32 %v34, %v48
  %v55 = vmul.f32 %v35, %v48
  %v56 = vmul.f32 %v36, %v48
  %v57 = vmul.f32 %v37, %v48
  %v58 = vmul.f32 %v38, %v48
  %v59 = vmul.f32 %v39, %v48
  %v60 = vmul.f32 %v40, %v48
  %v61 = vmul.f32 %v41, %v48
  %v62 = vmul.f32 %v42, %v48
  %v63 = vmul.f32 %v43, %v48
  %v64 = vmul.f32 %v44, %v48
  %v65 = vmul.f32 %v45, %v48
  %v66 = vld [vmem:[%s2] sm:$0x1]
  %v68 = vperm.slane %v66, 0
  %v70 = vadd.f32 %v50, %v68
  %v71 = vadd.f32 %v51, %v68
  %v72 = vadd.f32 %v52, %v68
  %v73 = vadd.f32 %v53, %v68
  %v74 = vadd.f32 %v54, %v68
  %v75 = vadd.f32 %v55, %v68
  %v76 = vadd.f32 %v56, %v68
  %v77 = vadd.f32 %v57, %v68
  %v78 = vadd.f32 %v58, %v68
  %v79 = vadd.f32 %v59, %v68
  %v80 = vadd.f32 %v60, %v68
  %v81 = vadd.f32 %v61, %v68
  %v82 = vadd.f32 %v62, %v68
  %v83 = vadd.f32 %v63, %v68
  %v84 = vadd.f32 %v64, %v68
  %v85 = vadd.f32 %v65, %v68
  %vm86 = vcmp.ge.f32.partialorder %v70, 0.0
  %vm87 = vcmp.ge.f32.partialorder %v71, 0.0
  %vm88 = vcmp.ge.f32.partialorder %v72, 0.0
  %vm89 = vcmp.ge.f32.partialorder %v73, 0.0
  %vm90 = vcmp.ge.f32.partialorder %v74, 0.0
  %vm91 = vcmp.ge.f32.partialorder %v75, 0.0
  %vm92 = vcmp.ge.f32.partialorder %v76, 0.0
  %vm93 = vcmp.ge.f32.partialorder %v77, 0.0
  %vm94 = vcmp.ge.f32.partialorder %v78, 0.0
  %vm95 = vcmp.ge.f32.partialorder %v79, 0.0
  %vm96 = vcmp.ge.f32.partialorder %v80, 0.0
  %vm97 = vcmp.ge.f32.partialorder %v81, 0.0
  %vm98 = vcmp.ge.f32.partialorder %v82, 0.0
  %vm99 = vcmp.ge.f32.partialorder %v83, 0.0
  %vm100 = vcmp.ge.f32.partialorder %v84, 0.0
  %vm101 = vcmp.ge.f32.partialorder %v85, 0.0
  %v102 = vmul.f32 %v70, 0.2
  %v103 = vmul.f32 %v71, 0.2
  %v104 = vmul.f32 %v72, 0.2
  %v105 = vmul.f32 %v73, 0.2
  %v106 = vmul.f32 %v74, 0.2
  %v107 = vmul.f32 %v75, 0.2
  %v108 = vmul.f32 %v76, 0.2
  %v109 = vmul.f32 %v77, 0.2
  %v110 = vmul.f32 %v78, 0.2
  %v111 = vmul.f32 %v79, 0.2
  %v112 = vmul.f32 %v80, 0.2
  %v113 = vmul.f32 %v81, 0.2
  %v114 = vmul.f32 %v82, 0.2
  %v115 = vmul.f32 %v83, 0.2
  %v116 = vmul.f32 %v84, 0.2
  %v117 = vmul.f32 %v85, 0.2
  %v118 = vsel %vm86, %v70, %v102
  %v119 = vsel %vm87, %v71, %v103
  %v120 = vsel %vm88, %v72, %v104
  %v121 = vsel %vm89, %v73, %v105
  %v122 = vsel %vm90, %v74, %v106
  %v123 = vsel %vm91, %v75, %v107
  %v124 = vsel %vm92, %v76, %v108
  %v125 = vsel %vm93, %v77, %v109
  %v126 = vsel %vm94, %v78, %v110
  %v127 = vsel %vm95, %v79, %v111
  %v128 = vsel %vm96, %v80, %v112
  %v129 = vsel %vm97, %v81, %v113
  %v130 = vsel %vm98, %v82, %v114
  %v131 = vsel %vm99, %v83, %v115
  %v132 = vsel %vm100, %v84, %v116
  %v133 = vsel %vm101, %v85, %v117
  %v134 = vpack.c.bf16 %v118, %v118
  %v135 = vpack.c.bf16 %v119, %v119
  %v136 = vpack.c.bf16 %v120, %v120
  %v137 = vpack.c.bf16 %v121, %v121
  %v138 = vpack.c.bf16 %v122, %v122
  %v139 = vpack.c.bf16 %v123, %v123
  %v140 = vpack.c.bf16 %v124, %v124
  %v141 = vpack.c.bf16 %v125, %v125
  %v142 = vpack.c.bf16 %v126, %v126
  %v143 = vpack.c.bf16 %v127, %v127
  %v144 = vpack.c.bf16 %v128, %v128
  %v145 = vpack.c.bf16 %v129, %v129
  %v146 = vpack.c.bf16 %v130, %v130
  %v147 = vpack.c.bf16 %v131, %v131
  %v148 = vpack.c.bf16 %v132, %v132
  %v149 = vpack.c.bf16 %v133, %v133
  %150 = vst [vmem:[%s3] sm:$0xf] %v134
  %151 = vst [vmem:[%s3 + $0x4] sm:$0xf] %v135
  %152 = vst [vmem:[%s3 + $0x8] sm:$0xf] %v136
  %153 = vst [vmem:[%s3 + $0xc] sm:$0xf] %v137
  %154 = vst [vmem:[%s3 + $0x10] sm:$0xf] %v138
  %155 = vst [vmem:[%s3 + $0x14] sm:$0xf] %v139
  %156 = vst [vmem:[%s3 + $0x18] sm:$0xf] %v140
  %157 = vst [vmem:[%s3 + $0x1c] sm:$0xf] %v141
  %158 = vst [vmem:[%s3 + $0x20] sm:$0xf] %v142
  %159 = vst [vmem:[%s3 + $0x24] sm:$0xf] %v143
  %160 = vst [vmem:[%s3 + $0x28] sm:$0xf] %v144
  %161 = vst [vmem:[%s3 + $0x2c] sm:$0xf] %v145
  %162 = vst [vmem:[%s3 + $0x30] sm:$0xf] %v146
  %163 = vst [vmem:[%s3 + $0x34] sm:$0xf] %v147
  %164 = vst [vmem:[%s3 + $0x38] sm:$0xf] %v148
  %165 = vst [vmem:[%s3 + $0x3c] sm:$0xf] %v149
  // Predicated region
  $region14: #{discriminator_forward.14} parent=0 // pred_check
    _
  $region15: #{discriminator_forward.14} parent=0 // pred_check_branch
    %167 = sbr.rel (0) target = $region17
  $region16: #{discriminator_forward.14} parent=0 // pred_region
    _
  $region17: #{discriminator_forward.14} parent=0 // pred_fallthru
    _
  // Predicated region
  $region18: #{discriminator_forward.14} parent=0 // pred_check
    _
  $region19: #{discriminator_forward.14} parent=0 // pred_check_branch
    %169 = sbr.rel (0) target = $region21
  $region20: #{discriminator_forward.14} parent=0 // pred_region
    _
  $region21: #{discriminator_forward.14} parent=0 // pred_fallthru
    _

// kernel: discriminator_forward.13
$region0: #{discriminator_forward.13}
  #allocation0 [shape = 'u32[]', space=smem, size = 0x4, offset = 0x4, fixed_abs, tag = 'smem constant byte address 0x4 - core index']
  #allocation1 [shape = 'u32[72,128]{1,0:T(1,128)}', space=vmem, size = 0x9000, scoped, tag = 'internal scratch']
  %s0 = inlined_call_operand.vmem [shape: bf16[128,256], index: 0, kind: input, shape index: {}]
  %s1 = inlined_call_operand.vmem [shape: bf16[256,128], index: 1, kind: input, shape index: {}]
  %s2 = inlined_call_operand.vmem [shape: bf16[128,128], index: 2, kind: output, shape index: {0}]
  %s3 = inlined_call_operand.vmem [shape: f32[1,128], index: 3, kind: output, shape index: {1}]
  %s4 = inlined_call_operand.vmem [shape: f32[1,128], index: 4, kind: output, shape index: {2}]
  %5 = xla_tuple %s2, %s3, %s4
  %s6 = sld [smem:[#allocation0]]
  $region38: #{discriminator_forward.13} parent=0
    _
  %s8 = ssub.s32 1, %s6
  %s9 = scalar_select 0, %s8, %s6
  // Predicated region
  $region2: #{discriminator_forward.13} parent=0 // pred_check
    _
  $region3: #{discriminator_forward.13} parent=0 // pred_check_branch
    %11 = sbr.rel (0) target = $region5
  $region4: #{discriminator_forward.13} parent=0 // pred_region
    _
  $region5: #{discriminator_forward.13} parent=0 // pred_fallthru
    _
  // Predicated region
  $region6: #{discriminator_forward.13} parent=0 // pred_check
    _
  $region7: #{discriminator_forward.13} parent=0 // pred_check_branch
    %13 = sbr.rel (0) target = $region9
  $region8: #{discriminator_forward.13} parent=0 // pred_region
    _
  $region9: #{discriminator_forward.13} parent=0 // pred_fallthru
    _
  %p14 = scmp.eq.s32.totalorder 0, 0
  // Predicated region
  $region10: #{discriminator_forward.13} parent=0 // pred_check
    %p15 = pneg %p14
  $region11: #{discriminator_forward.13} parent=0 // pred_check_branch
    %17 = sbr.rel (%p15) target = $region13
  $region12: #{discriminator_forward.13} parent=0 // pred_region
    %18 = vst [vmem:[%s3] sm:$0x1] 0.0
    %19 = vst [vmem:[%s4] sm:$0x1] 0.0
  $region13: #{discriminator_forward.13} parent=0 // pred_fallthru
    _
  %v20 = vld [vmem:[%s0] sm:$0xff]
  %v21 = vld [vmem:[%s0 + $0x8] sm:$0xff]
  %v22 = vld [vmem:[%s0 + $0x10] sm:$0xff]
  %v23 = vld [vmem:[%s0 + $0x18] sm:$0xff]
  %v24 = vld [vmem:[%s0 + $0x20] sm:$0xff]
  %v25 = vld [vmem:[%s0 + $0x28] sm:$0xff]
  %v26 = vld [vmem:[%s0 + $0x30] sm:$0xff]
  %v27 = vld [vmem:[%s0 + $0x38] sm:$0xff]
  %v28 = vld [vmem:[%s0 + $0x40] sm:$0xff]
  %v29 = vld [vmem:[%s0 + $0x48] sm:$0xff]
  %v30 = vld [vmem:[%s0 + $0x50] sm:$0xff]
  %v31 = vld [vmem:[%s0 + $0x58] sm:$0xff]
  %v32 = vld [vmem:[%s0 + $0x60] sm:$0xff]
  %v33 = vld [vmem:[%s0 + $0x68] sm:$0xff]
  %v34 = vld [vmem:[%s0 + $0x70] sm:$0xff]
  %v35 = vld [vmem:[%s0 + $0x78] sm:$0xff]
  %v36 = vld [vmem:[%s1] sm:$0xf]
  %v37 = vld [vmem:[%s1 + $0x4] sm:$0xf]
  %v38 = vld [vmem:[%s1 + $0x8] sm:$0xf]
  %v39 = vld [vmem:[%s1 + $0xc] sm:$0xf]
  %v40 = vld [vmem:[%s1 + $0x10] sm:$0xf]
  %v41 = vld [vmem:[%s1 + $0x14] sm:$0xf]
  %v42 = vld [vmem:[%s1 + $0x18] sm:$0xf]
  %v43 = vld [vmem:[%s1 + $0x1c] sm:$0xf]
  %v44 = vld [vmem:[%s1 + $0x20] sm:$0xf]
  %v45 = vld [vmem:[%s1 + $0x24] sm:$0xf]
  %v46 = vld [vmem:[%s1 + $0x28] sm:$0xf]
  %v47 = vld [vmem:[%s1 + $0x2c] sm:$0xf]
  %v48 = vld [vmem:[%s1 + $0x30] sm:$0xf]
  %v49 = vld [vmem:[%s1 + $0x34] sm:$0xf]
  %v50 = vld [vmem:[%s1 + $0x38] sm:$0xf]
  %v51 = vld [vmem:[%s1 + $0x3c] sm:$0xf]
  %v52 = vld [vmem:[%s1 + $0x40] sm:$0xf]
  %v53 = vld [vmem:[%s1 + $0x44] sm:$0xf]
  %v54 = vld [vmem:[%s1 + $0x48] sm:$0xf]
  %v55 = vld [vmem:[%s1 + $0x4c] sm:$0xf]
  %v56 = vld [vmem:[%s1 + $0x50] sm:$0xf]
  %v57 = vld [vmem:[%s1 + $0x54] sm:$0xf]
  %v58 = vld [vmem:[%s1 + $0x58] sm:$0xf]
  %v59 = vld [vmem:[%s1 + $0x5c] sm:$0xf]
  %v60 = vld [vmem:[%s1 + $0x60] sm:$0xf]
  %v61 = vld [vmem:[%s1 + $0x64] sm:$0xf]
  %v62 = vld [vmem:[%s1 + $0x68] sm:$0xf]
  %v63 = vld [vmem:[%s1 + $0x6c] sm:$0xf]
  %v64 = vld [vmem:[%s1 + $0x70] sm:$0xf]
  %v65 = vld [vmem:[%s1 + $0x74] sm:$0xf]
  %v66 = vld [vmem:[%s1 + $0x78] sm:$0xf]
  %v67 = vld [vmem:[%s1 + $0x7c] sm:$0xf]
  %v84 = vunpack.c.l.b16 %v20
  %v85 = vunpack.c.h.b16 %v20
  %v86 = vunpack.c.l.b16 %v21
  %v87 = vunpack.c.h.b16 %v21
  %v88 = vunpack.c.l.b16 %v22
  %v89 = vunpack.c.h.b16 %v22
  %v90 = vunpack.c.l.b16 %v23
  %v91 = vunpack.c.h.b16 %v23
  %v92 = vunpack.c.l.b16 %v24
  %v93 = vunpack.c.h.b16 %v24
  %v94 = vunpack.c.l.b16 %v25
  %v95 = vunpack.c.h.b16 %v25
  %v96 = vunpack.c.l.b16 %v26
  %v97 = vunpack.c.h.b16 %v26
  %v98 = vunpack.c.l.b16 %v27
  %v99 = vunpack.c.h.b16 %v27
  %v100 = vunpack.c.l.b16 %v28
  %v101 = vunpack.c.h.b16 %v28
  %v102 = vunpack.c.l.b16 %v29
  %v103 = vunpack.c.h.b16 %v29
  %v104 = vunpack.c.l.b16 %v30
  %v105 = vunpack.c.h.b16 %v30
  %v106 = vunpack.c.l.b16 %v31
  %v107 = vunpack.c.h.b16 %v31
  %v108 = vunpack.c.l.b16 %v32
  %v109 = vunpack.c.h.b16 %v32
  %v110 = vunpack.c.l.b16 %v33
  %v111 = vunpack.c.h.b16 %v33
  %v112 = vunpack.c.l.b16 %v34
  %v113 = vunpack.c.h.b16 %v34
  %v114 = vunpack.c.l.b16 %v35
  %v115 = vunpack.c.h.b16 %v35
  %v116 = vpack.c.b16 %v86, %v84
  %v117 = vpack.c.b16 %v87, %v85
  %v118 = vpack.c.b16 %v90, %v88
  %v119 = vpack.c.b16 %v91, %v89
  %v120 = vpack.c.b16 %v94, %v92
  %v121 = vpack.c.b16 %v95, %v93
  %v122 = vpack.c.b16 %v98, %v96
  %v123 = vpack.c.b16 %v99, %v97
  %v124 = vpack.c.b16 %v102, %v100
  %v125 = vpack.c.b16 %v103, %v101
  %v126 = vpack.c.b16 %v106, %v104
  %v127 = vpack.c.b16 %v107, %v105
  %v128 = vpack.c.b16 %v110, %v108
  %v129 = vpack.c.b16 %v111, %v109
  %v130 = vpack.c.b16 %v114, %v112
  %v131 = vpack.c.b16 %v115, %v113
  %v180 = vunpack.c.l.b16 %v36
  %v181 = vunpack.c.l.b16 %v37
  %v182 = vunpack.c.l.b16 %v38
  %v183 = vunpack.c.l.b16 %v39
  %v184 = vunpack.c.l.b16 %v40
  %v185 = vunpack.c.l.b16 %v41
  %v186 = vunpack.c.l.b16 %v42
  %v187 = vunpack.c.l.b16 %v43
  %v188 = vunpack.c.l.b16 %v44
  %v189 = vunpack.c.l.b16 %v45
  %v190 = vunpack.c.l.b16 %v46
  %v191 = vunpack.c.l.b16 %v47
  %v192 = vunpack.c.l.b16 %v48
  %v193 = vunpack.c.l.b16 %v49
  %v194 = vunpack.c.l.b16 %v50
  %v195 = vunpack.c.l.b16 %v51
  %v196 = vunpack.c.l.b16 %v52
  %v197 = vunpack.c.l.b16 %v53
  %v198 = vunpack.c.l.b16 %v54
  %v199 = vunpack.c.l.b16 %v55
  %v200 = vunpack.c.l.b16 %v56
  %v201 = vunpack.c.l.b16 %v57
  %v202 = vunpack.c.l.b16 %v58
  %v203 = vunpack.c.l.b16 %v59
  %v204 = vunpack.c.l.b16 %v60
  %v205 = vunpack.c.l.b16 %v61
  %v206 = vunpack.c.l.b16 %v62
  %v207 = vunpack.c.l.b16 %v63
  %v208 = vunpack.c.l.b16 %v64
  %v209 = vunpack.c.l.b16 %v65
  %v210 = vunpack.c.l.b16 %v66
  %v211 = vunpack.c.l.b16 %v67
  %v212 = vpack.c.b16 %v181, %v180
  %v213 = vpack.c.b16 %v183, %v182
  %v214 = vpack.c.b16 %v185, %v184
  %v215 = vpack.c.b16 %v187, %v186
  %v216 = vpack.c.b16 %v189, %v188
  %v217 = vpack.c.b16 %v191, %v190
  %v218 = vpack.c.b16 %v193, %v192
  %v219 = vpack.c.b16 %v195, %v194
  %v220 = vpack.c.b16 %v197, %v196
  %v221 = vpack.c.b16 %v199, %v198
  %v222 = vpack.c.b16 %v201, %v200
  %v223 = vpack.c.b16 %v203, %v202
  %v224 = vpack.c.b16 %v205, %v204
  %v225 = vpack.c.b16 %v207, %v206
  %v226 = vpack.c.b16 %v209, %v208
  %v227 = vpack.c.b16 %v211, %v210
  %244 = vmatpush.bf16.msra.mxu0 %v219
  %245 = vmatpush.bf16.msra.mxu0 %v218
  %246 = vmatpush.bf16.msra.mxu0 %v217
  %247 = vmatpush.bf16.msra.mxu0 %v216
  %248 = vmatpush.bf16.msra.mxu0 %v215
  %249 = vmatpush.bf16.msra.mxu0 %v214
  %250 = vmatpush.bf16.msra.mxu0 %v213
  %251 = vmatpush.bf16.msra.mxu0 %v212
  %252 = vmatmul.bf16.gmra.mxu0 %v116
  %v253 = vpop.f32.mrf.mxu0
  %v254 = vadd.f32 0.0, %v253
  %v255 = vpop.f32.mrf.mxu0
  %v256 = vadd.f32 0.0, %v255
  %257 = vmatmul.bf16.gmra.mxu0 %v118
  %v258 = vpop.f32.mrf.mxu0
  %v259 = vadd.f32 0.0, %v258
  %v260 = vpop.f32.mrf.mxu0
  %v261 = vadd.f32 0.0, %v260
  %262 = vmatmul.bf16.gmra.mxu0 %v120
  %v263 = vpop.f32.mrf.mxu0
  %v264 = vadd.f32 0.0, %v263
  %v265 = vpop.f32.mrf.mxu0
  %v266 = vadd.f32 0.0, %v265
  %267 = vmatmul.bf16.gmra.mxu0 %v122
  %v268 = vpop.f32.mrf.mxu0
  %v269 = vadd.f32 0.0, %v268
  %v270 = vpop.f32.mrf.mxu0
  %v271 = vadd.f32 0.0, %v270
  %272 = vmatmul.bf16.gmra.mxu0 %v124
  %v273 = vpop.f32.mrf.mxu0
  %v274 = vadd.f32 0.0, %v273
  %v275 = vpop.f32.mrf.mxu0
  %v276 = vadd.f32 0.0, %v275
  %277 = vmatmul.bf16.gmra.mxu0 %v126
  %v278 = vpop.f32.mrf.mxu0
  %v279 = vadd.f32 0.0, %v278
  %v280 = vpop.f32.mrf.mxu0
  %v281 = vadd.f32 0.0, %v280
  %282 = vmatmul.bf16.gmra.mxu0 %v128
  %v283 = vpop.f32.mrf.mxu0
  %v284 = vadd.f32 0.0, %v283
  %v285 = vpop.f32.mrf.mxu0
  %v286 = vadd.f32 0.0, %v285
  %287 = vmatmul.bf16.gmra.mxu0 %v130
  %v288 = vpop.f32.mrf.mxu0
  %v289 = vadd.f32 0.0, %v288
  %v290 = vpop.f32.mrf.mxu0
  %v291 = vadd.f32 0.0, %v290
  %292 = vdwg.mxu0
  %293 = vmatpush.bf16.msra.mxu0 %v227
  %294 = vmatpush.bf16.msra.mxu0 %v226
  %295 = vmatpush.bf16.msra.mxu0 %v225
  %296 = vmatpush.bf16.msra.mxu0 %v224
  %297 = vmatpush.bf16.msra.mxu0 %v223
  %298 = vmatpush.bf16.msra.mxu0 %v222
  %299 = vmatpush.bf16.msra.mxu0 %v221
  %300 = vmatpush.bf16.msra.mxu0 %v220
  %301 = vmatmul.bf16.gmra.mxu0 %v117
  %v302 = vpop.f32.mrf.mxu0
  %v303 = vadd.f32 %v254, %v302
  %v304 = vpop.f32.mrf.mxu0
  %v305 = vadd.f32 %v256, %v304
  %306 = vmatmul.bf16.gmra.mxu0 %v119
  %v307 = vpop.f32.mrf.mxu0
  %v308 = vadd.f32 %v259, %v307
  %v309 = vpop.f32.mrf.mxu0
  %v310 = vadd.f32 %v261, %v309
  %311 = vmatmul.bf16.gmra.mxu0 %v121
  %v312 = vpop.f32.mrf.mxu0
  %v313 = vadd.f32 %v264, %v312
  %v314 = vpop.f32.mrf.mxu0
  %v315 = vadd.f32 %v266, %v314
  %316 = vmatmul.bf16.gmra.mxu0 %v123
  %v317 = vpop.f32.mrf.mxu0
  %v318 = vadd.f32 %v269, %v317
  %v319 = vpop.f32.mrf.mxu0
  %v320 = vadd.f32 %v271, %v319
  %321 = vmatmul.bf16.gmra.mxu0 %v125
  %v322 = vpop.f32.mrf.mxu0
  %v323 = vadd.f32 %v274, %v322
  %v324 = vpop.f32.mrf.mxu0
  %v325 = vadd.f32 %v276, %v324
  %326 = vmatmul.bf16.gmra.mxu0 %v127
  %v327 = vpop.f32.mrf.mxu0
  %v328 = vadd.f32 %v279, %v327
  %v329 = vpop.f32.mrf.mxu0
  %v330 = vadd.f32 %v281, %v329
  %331 = vmatmul.bf16.gmra.mxu0 %v129
  %v332 = vpop.f32.mrf.mxu0
  %v333 = vadd.f32 %v284, %v332
  %v334 = vpop.f32.mrf.mxu0
  %v335 = vadd.f32 %v286, %v334
  %336 = vmatmul.bf16.gmra.mxu0 %v131
  %v337 = vpop.f32.mrf.mxu0
  %v338 = vadd.f32 %v289, %v337
  %v339 = vpop.f32.mrf.mxu0
  %v340 = vadd.f32 %v291, %v339
  %341 = vdwg.mxu0
  %v342 = vpack.c.bf16 %v303, %v303
  %v343 = vpack.c.bf16 %v305, %v305
  %v344 = vpack.c.bf16 %v308, %v308
  %v345 = vpack.c.bf16 %v310, %v310
  %v346 = vpack.c.bf16 %v313, %v313
  %v347 = vpack.c.bf16 %v315, %v315
  %v348 = vpack.c.bf16 %v318, %v318
  %v349 = vpack.c.bf16 %v320, %v320
  %v350 = vpack.c.bf16 %v323, %v323
  %v351 = vpack.c.bf16 %v325, %v325
  %v352 = vpack.c.bf16 %v328, %v328
  %v353 = vpack.c.bf16 %v330, %v330
  %v354 = vpack.c.bf16 %v333, %v333
  %v355 = vpack.c.bf16 %v335, %v335
  %v356 = vpack.c.bf16 %v338, %v338
  %v357 = vpack.c.bf16 %v340, %v340
  %358 = vst [vmem:[%s2] sm:$0xf] %v342
  %359 = vst [vmem:[%s2 + $0x4] sm:$0xf] %v343
  %360 = vst [vmem:[%s2 + $0x8] sm:$0xf] %v344
  %361 = vst [vmem:[%s2 + $0xc] sm:$0xf] %v345
  %362 = vst [vmem:[%s2 + $0x10] sm:$0xf] %v346
  %363 = vst [vmem:[%s2 + $0x14] sm:$0xf] %v347
  %364 = vst [vmem:[%s2 + $0x18] sm:$0xf] %v348
  %365 = vst [vmem:[%s2 + $0x1c] sm:$0xf] %v349
  %366 = vst [vmem:[%s2 + $0x20] sm:$0xf] %v350
  %367 = vst [vmem:[%s2 + $0x24] sm:$0xf] %v351
  %368 = vst [vmem:[%s2 + $0x28] sm:$0xf] %v352
  %369 = vst [vmem:[%s2 + $0x2c] sm:$0xf] %v353
  %370 = vst [vmem:[%s2 + $0x30] sm:$0xf] %v354
  %371 = vst [vmem:[%s2 + $0x34] sm:$0xf] %v355
  %372 = vst [vmem:[%s2 + $0x38] sm:$0xf] %v356
  %373 = vst [vmem:[%s2 + $0x3c] sm:$0xf] %v357
  %v374 = vld [vmem:[%s3] sm:$0x1]
  %v375 = vadd.f32 %v303, %v305
  %v376 = vadd.f32 %v375, %v308
  %v377 = vadd.f32 %v376, %v310
  %v378 = vadd.f32 %v377, %v313
  %v379 = vadd.f32 %v378, %v315
  %v380 = vadd.f32 %v379, %v318
  %v381 = vadd.f32 %v380, %v320
  %v382 = vadd.f32 %v381, %v323
  %v383 = vadd.f32 %v382, %v325
  %v384 = vadd.f32 %v383, %v328
  %v385 = vadd.f32 %v384, %v330
  %v386 = vadd.f32 %v385, %v333
  %v387 = vadd.f32 %v386, %v335
  %v388 = vadd.f32 %v387, %v338
  %v389 = vadd.f32 %v388, %v340
  %v390 = vrot.slane %v389, 4
  %v391 = vadd.f32 %v389, %v390
  %v392 = vrot.slane %v391, 2
  %v393 = vadd.f32 %v391, %v392
  %v394 = vrot.slane %v393, 1
  %v395 = vadd.f32 %v393, %v394
  %v396 = vadd.f32 %v374, %v395
  %397 = vst [vmem:[%s3] sm:$0x1] %v396
  %v398 = vld [vmem:[%s4] sm:$0x1]
  %v399 = vmul.f32 %v303, %v303
  %v400 = vmul.f32 %v305, %v305
  %v401 = vmul.f32 %v308, %v308
  %v402 = vmul.f32 %v310, %v310
  %v403 = vmul.f32 %v313, %v313
  %v404 = vmul.f32 %v315, %v315
  %v405 = vmul.f32 %v318, %v318
  %v406 = vmul.f32 %v320, %v320
  %v407 = vmul.f32 %v323, %v323
  %v408 = vmul.f32 %v325, %v325
  %v409 = vmul.f32 %v328, %v328
  %v410 = vmul.f32 %v330, %v330
  %v411 = vmul.f32 %v333, %v333
  %v412 = vmul.f32 %v335, %v335
  %v413 = vmul.f32 %v338, %v338
  %v414 = vmul.f32 %v340, %v340
  %v415 = vadd.f32 %v399, %v400
  %v416 = vadd.f32 %v415, %v401
  %v417 = vadd.f32 %v416, %v402
  %v418 = vadd.f32 %v417, %v403
  %v419 = vadd.f32 %v418, %v404
  %v420 = vadd.f32 %v419, %v405
  %v421 = vadd.f32 %v420, %v406
  %v422 = vadd.f32 %v421, %v407
  %v423 = vadd.f32 %v422, %v408
  %v424 = vadd.f32 %v423, %v409
  %v425 = vadd.f32 %v424, %v410
  %v426 = vadd.f32 %v425, %v411
  %v427 = vadd.f32 %v426, %v412
  %v428 = vadd.f32 %v427, %v413
  %v429 = vadd.f32 %v428, %v414
  %v430 = vrot.slane %v429, 4
  %v431 = vadd.f32 %v429, %v430
  %v432 = vrot.slane %v431, 2
  %v433 = vadd.f32 %v431, %v432
  %v434 = vrot.slane %v433, 1
  %v435 = vadd.f32 %v433, %v434
  %v436 = vadd.f32 %v398, %v435
  %437 = vst [vmem:[%s4] sm:$0x1] %v436
  // Predicated region
  $region14: #{discriminator_forward.13} parent=0 // pred_check
    _
  $region15: #{discriminator_forward.13} parent=0 // pred_check_branch
    %439 = sbr.rel (0) target = $region17
  $region16: #{discriminator_forward.13} parent=0 // pred_region
    _
  $region17: #{discriminator_forward.13} parent=0 // pred_fallthru
    _
  // Predicated region
  $region18: #{discriminator_forward.13} parent=0 // pred_check
    _
  $region19: #{discriminator_forward.13} parent=0 // pred_check_branch
    %441 = sbr.rel (0) target = $region21
  $region20: #{discriminator_forward.13} parent=0 // pred_region
    _
  $region21: #{discriminator_forward.13} parent=0 // pred_fallthru
    _
  // Predicated region
  $region22: #{discriminator_forward.13} parent=0 // pred_check
    _
  $region23: #{discriminator_forward.13} parent=0 // pred_check_branch
    %443 = sbr.rel (0) target = $region25
  $region24: #{discriminator_forward.13} parent=0 // pred_region
    _
  $region25: #{discriminator_forward.13} parent=0 // pred_fallthru
    _
  // Predicated region
  $region26: #{discriminator_forward.13} parent=0 // pred_check
    _
  $region27: #{discriminator_forward.13} parent=0 // pred_check_branch
    %445 = sbr.rel (0) target = $region29
  $region28: #{discriminator_forward.13} parent=0 // pred_region
    _
  $region29: #{discriminator_forward.13} parent=0 // pred_fallthru
    _
  // Predicated region
  $region30: #{discriminator_forward.13} parent=0 // pred_check
    _
  $region31: #{discriminator_forward.13} parent=0 // pred_check_branch
    %447 = sbr.rel (0) target = $region33
  $region32: #{discriminator_forward.13} parent=0 // pred_region
    _
  $region33: #{discriminator_forward.13} parent=0 // pred_fallthru
    _
  // Predicated region
  $region34: #{discriminator_forward.13} parent=0 // pred_check
    _
  $region35: #{discriminator_forward.13} parent=0 // pred_check_branch
    %449 = sbr.rel (0) target = $region37
  $region36: #{discriminator_forward.13} parent=0 // pred_region
    _
  $region37: #{discriminator_forward.13} parent=0 // pred_fallthru
    _

// kernel: discriminator_forward.16
$region0: #{discriminator_forward.16}
  #allocation0 [shape = 'u32[]', space=smem, size = 0x4, offset = 0x4, fixed_abs, tag = 'smem constant byte address 0x4 - core index']
  #allocation1 [shape = 'u32[72,128]{1,0:T(1,128)}', space=vmem, size = 0x9000, scoped, tag = 'internal scratch']
  %s0 = inlined_call_operand.vmem [shape: bf16[32,128], index: 0, kind: input, shape index: {}]
  %s1 = inlined_call_operand.vmem [shape: f32[1,128], index: 1, kind: input, shape index: {}]
  %s2 = inlined_call_operand.vmem [shape: f32[1,128], index: 2, kind: input, shape index: {}]
  %s3 = inlined_call_operand.vmem [shape: bf16[32,128], index: 3, kind: output, shape index: {}]
  %s4 = sld [smem:[#allocation0]]
  $region22: #{discriminator_forward.16} parent=0
    _
  %s6 = ssub.s32 1, %s4
  %s7 = scalar_select 0, %s6, %s4
  // Predicated region
  $region2: #{discriminator_forward.16} parent=0 // pred_check
    _
  $region3: #{discriminator_forward.16} parent=0 // pred_check_branch
    %9 = sbr.rel (0) target = $region5
  $region4: #{discriminator_forward.16} parent=0 // pred_region
    _
  $region5: #{discriminator_forward.16} parent=0 // pred_fallthru
    _
  // Predicated region
  $region6: #{discriminator_forward.16} parent=0 // pred_check
    _
  $region7: #{discriminator_forward.16} parent=0 // pred_check_branch
    %11 = sbr.rel (0) target = $region9
  $region8: #{discriminator_forward.16} parent=0 // pred_region
    _
  $region9: #{discriminator_forward.16} parent=0 // pred_fallthru
    _
  // Predicated region
  $region10: #{discriminator_forward.16} parent=0 // pred_check
    _
  $region11: #{discriminator_forward.16} parent=0 // pred_check_branch
    %13 = sbr.rel (0) target = $region13
  $region12: #{discriminator_forward.16} parent=0 // pred_region
    _
  $region13: #{discriminator_forward.16} parent=0 // pred_fallthru
    _
  %v14 = vld [vmem:[%s0] sm:$0xf]
  %v15 = vld [vmem:[%s0 + $0x4] sm:$0xf]
  %v16 = vld [vmem:[%s0 + $0x8] sm:$0xf]
  %v17 = vld [vmem:[%s0 + $0xc] sm:$0xf]
  %v18 = vunpack.c.l.bf16 %v14
  %v19 = vunpack.c.l.bf16 %v15
  %v20 = vunpack.c.l.bf16 %v16
  %v21 = vunpack.c.l.bf16 %v17
  %v22 = vld [vmem:[%s1] sm:$0x1]
  %v24 = vperm.slane %v22, 0
  %v26 = vmul.f32 %v18, %v24
  %v27 = vmul.f32 %v19, %v24
  %v28 = vmul.f32 %v20, %v24
  %v29 = vmul.f32 %v21, %v24
  %v30 = vld [vmem:[%s2] sm:$0x1]
  %v32 = vperm.slane %v30, 0
  %v34 = vadd.f32 %v26, %v32
  %v35 = vadd.f32 %v27, %v32
  %v36 = vadd.f32 %v28, %v32
  %v37 = vadd.f32 %v29, %v32
  %vm38 = vcmp.ge.f32.partialorder %v34, 0.0
  %vm39 = vcmp.ge.f32.partialorder %v35, 0.0
  %vm40 = vcmp.ge.f32.partialorder %v36, 0.0
  %vm41 = vcmp.ge.f32.partialorder %v37, 0.0
  %v42 = vmul.f32 %v34, 0.2
  %v43 = vmul.f32 %v35, 0.2
  %v44 = vmul.f32 %v36, 0.2
  %v45 = vmul.f32 %v37, 0.2
  %v46 = vsel %vm38, %v34, %v42
  %v47 = vsel %vm39, %v35, %v43
  %v48 = vsel %vm40, %v36, %v44
  %v49 = vsel %vm41, %v37, %v45
  %v50 = vpack.c.bf16 %v46, %v46
  %v51 = vpack.c.bf16 %v47, %v47
  %v52 = vpack.c.bf16 %v48, %v48
  %v53 = vpack.c.bf16 %v49, %v49
  %54 = vst [vmem:[%s3] sm:$0xf] %v50
  %55 = vst [vmem:[%s3 + $0x4] sm:$0xf] %v51
  %56 = vst [vmem:[%s3 + $0x8] sm:$0xf] %v52
  %57 = vst [vmem:[%s3 + $0xc] sm:$0xf] %v53
  // Predicated region
  $region14: #{discriminator_forward.16} parent=0 // pred_check
    _
  $region15: #{discriminator_forward.16} parent=0 // pred_check_branch
    %59 = sbr.rel (0) target = $region17
  $region16: #{discriminator_forward.16} parent=0 // pred_region
    _
  $region17: #{discriminator_forward.16} parent=0 // pred_fallthru
    _
  // Predicated region
  $region18: #{discriminator_forward.16} parent=0 // pred_check
    _
  $region19: #{discriminator_forward.16} parent=0 // pred_check_branch
    %61 = sbr.rel (0) target = $region21
  $region20: #{discriminator_forward.16} parent=0 // pred_region
    _
  $region21: #{discriminator_forward.16} parent=0 // pred_fallthru
    _

// kernel: discriminator_forward.15
$region0: #{discriminator_forward.15}
  #allocation0 [shape = 'u32[]', space=smem, size = 0x4, offset = 0x4, fixed_abs, tag = 'smem constant byte address 0x4 - core index']
  #allocation1 [shape = 'u32[72,128]{1,0:T(1,128)}', space=vmem, size = 0x9000, scoped, tag = 'internal scratch']
  %s0 = inlined_call_operand.vmem [shape: bf16[32,512], index: 0, kind: input, shape index: {}]
  %s1 = inlined_call_operand.vmem [shape: bf16[512,128], index: 1, kind: input, shape index: {}]
  %s2 = inlined_call_operand.vmem [shape: bf16[32,128], index: 2, kind: output, shape index: {0}]
  %s3 = inlined_call_operand.vmem [shape: f32[1,128], index: 3, kind: output, shape index: {1}]
  %s4 = inlined_call_operand.vmem [shape: f32[1,128], index: 4, kind: output, shape index: {2}]
  %5 = xla_tuple %s2, %s3, %s4
  %s6 = sld [smem:[#allocation0]]
  $region38: #{discriminator_forward.15} parent=0
    _
  %s8 = ssub.s32 1, %s6
  %s9 = scalar_select 0, %s8, %s6
  // Predicated region
  $region2: #{discriminator_forward.15} parent=0 // pred_check
    _
  $region3: #{discriminator_forward.15} parent=0 // pred_check_branch
    %11 = sbr.rel (0) target = $region5
  $region4: #{discriminator_forward.15} parent=0 // pred_region
    _
  $region5: #{discriminator_forward.15} parent=0 // pred_fallthru
    _
  // Predicated region
  $region6: #{discriminator_forward.15} parent=0 // pred_check
    _
  $region7: #{discriminator_forward.15} parent=0 // pred_check_branch
    %13 = sbr.rel (0) target = $region9
  $region8: #{discriminator_forward.15} parent=0 // pred_region
    _
  $region9: #{discriminator_forward.15} parent=0 // pred_fallthru
    _
  %p14 = scmp.eq.s32.totalorder 0, 0
  // Predicated region
  $region10: #{discriminator_forward.15} parent=0 // pred_check
    %p15 = pneg %p14
  $region11: #{discriminator_forward.15} parent=0 // pred_check_branch
    %17 = sbr.rel (%p15) target = $region13
  $region12: #{discriminator_forward.15} parent=0 // pred_region
    %18 = vst [vmem:[%s3] sm:$0x1] 0.0
    %19 = vst [vmem:[%s4] sm:$0x1] 0.0
  $region13: #{discriminator_forward.15} parent=0 // pred_fallthru
    _
  %v20 = vld [vmem:[%s0] sm:$0xff]
  %v21 = vld [vmem:[%s0 + $0x8] sm:$0xff]
  %v22 = vld [vmem:[%s0 + $0x10] sm:$0xff]
  %v23 = vld [vmem:[%s0 + $0x18] sm:$0xff]
  %v24 = vld [vmem:[%s0 + $0x20] sm:$0xff]
  %v25 = vld [vmem:[%s0 + $0x28] sm:$0xff]
  %v26 = vld [vmem:[%s0 + $0x30] sm:$0xff]
  %v27 = vld [vmem:[%s0 + $0x38] sm:$0xff]
  %v28 = vld [vmem:[%s1] sm:$0xf]
  %v29 = vld [vmem:[%s1 + $0x4] sm:$0xf]
  %v30 = vld [vmem:[%s1 + $0x8] sm:$0xf]
  %v31 = vld [vmem:[%s1 + $0xc] sm:$0xf]
  %v32 = vld [vmem:[%s1 + $0x10] sm:$0xf]
  %v33 = vld [vmem:[%s1 + $0x14] sm:$0xf]
  %v34 = vld [vmem:[%s1 + $0x18] sm:$0xf]
  %v35 = vld [vmem:[%s1 + $0x1c] sm:$0xf]
  %v36 = vld [vmem:[%s1 + $0x20] sm:$0xf]
  %v37 = vld [vmem:[%s1 + $0x24] sm:$0xf]
  %v38 = vld [vmem:[%s1 + $0x28] sm:$0xf]
  %v39 = vld [vmem:[%s1 + $0x2c] sm:$0xf]
  %v40 = vld [vmem:[%s1 + $0x30] sm:$0xf]
  %v41 = vld [vmem:[%s1 + $0x34] sm:$0xf]
  %v42 = vld [vmem:[%s1 + $0x38] sm:$0xf]
  %v43 = vld [vmem:[%s1 + $0x3c] sm:$0xf]
  %v44 = vld [vmem:[%s1 + $0x40] sm:$0xf]
  %v45 = vld [vmem:[%s1 + $0x44] sm:$0xf]
  %v46 = vld [vmem:[%s1 + $0x48] sm:$0xf]
  %v47 = vld [vmem:[%s1 + $0x4c] sm:$0xf]
  %v48 = vld [vmem:[%s1 + $0x50] sm:$0xf]
  %v49 = vld [vmem:[%s1 + $0x54] sm:$0xf]
  %v50 = vld [vmem:[%s1 + $0x58] sm:$0xf]
  %v51 = vld [vmem:[%s1 + $0x5c] sm:$0xf]
  %v52 = vld [vmem:[%s1 + $0x60] sm:$0xf]
  %v53 = vld [vmem:[%s1 + $0x64] sm:$0xf]
  %v54 = vld [vmem:[%s1 + $0x68] sm:$0xf]
  %v55 = vld [vmem:[%s1 + $0x6c] sm:$0xf]
  %v56 = vld [vmem:[%s1 + $0x70] sm:$0xf]
  %v57 = vld [vmem:[%s1 + $0x74] sm:$0xf]
  %v58 = vld [vmem:[%s1 + $0x78] sm:$0xf]
  %v59 = vld [vmem:[%s1 + $0x7c] sm:$0xf]
  %v60 = vld [vmem:[%s1 + $0x80] sm:$0xf]
  %v61 = vld [vmem:[%s1 + $0x84] sm:$0xf]
  %v62 = vld [vmem:[%s1 + $0x88] sm:$0xf]
  %v63 = vld [vmem:[%s1 + $0x8c] sm:$0xf]
  %v64 = vld [vmem:[%s1 + $0x90] sm:$0xf]
  %v65 = vld [vmem:[%s1 + $0x94] sm:$0xf]
  %v66 = vld [vmem:[%s1 + $0x98] sm:$0xf]
  %v67 = vld [vmem:[%s1 + $0x9c] sm:$0xf]
  %v68 = vld [vmem:[%s1 + $0xa0] sm:$0xf]
  %v69 = vld [vmem:[%s1 + $0xa4] sm:$0xf]
  %v70 = vld [vmem:[%s1 + $0xa8] sm:$0xf]
  %v71 = vld [vmem:[%s1 + $0xac] sm:$0xf]
  %v72 = vld [vmem:[%s1 + $0xb0] sm:$0xf]
  %v73 = vld [vmem:[%s1 + $0xb4] sm:$0xf]
  %v74 = vld [vmem:[%s1 + $0xb8] sm:$0xf]
  %v75 = vld [vmem:[%s1 + $0xbc] sm:$0xf]
  %v76 = vld [vmem:[%s1 + $0xc0] sm:$0xf]
  %v77 = vld [vmem:[%s1 + $0xc4] sm:$0xf]
  %v78 = vld [vmem:[%s1 + $0xc8] sm:$0xf]
  %v79 = vld [vmem:[%s1 + $0xcc] sm:$0xf]
  %v80 = vld [vmem:[%s1 + $0xd0] sm:$0xf]
  %v81 = vld [vmem:[%s1 + $0xd4] sm:$0xf]
  %v82 = vld [vmem:[%s1 + $0xd8] sm:$0xf]
  %v83 = vld [vmem:[%s1 + $0xdc] sm:$0xf]
  %v84 = vld [vmem:[%s1 + $0xe0] sm:$0xf]
  %v85 = vld [vmem:[%s1 + $0xe4] sm:$0xf]
  %v86 = vld [vmem:[%s1 + $0xe8] sm:$0xf]
  %v87 = vld [vmem:[%s1 + $0xec] sm:$0xf]
  %v88 = vld [vmem:[%s1 + $0xf0] sm:$0xf]
  %v89 = vld [vmem:[%s1 + $0xf4] sm:$0xf]
  %v90 = vld [vmem:[%s1 + $0xf8] sm:$0xf]
  %v91 = vld [vmem:[%s1 + $0xfc] sm:$0xf]
  %v100 = vunpack.c.l.b16 %v20
  %v101 = vunpack.c.h.b16 %v20
  %v102 = vunpack.c.l.b16 %v21
  %v103 = vunpack.c.h.b16 %v21
  %v104 = vunpack.c.l.b16 %v22
  %v105 = vunpack.c.h.b16 %v22
  %v106 = vunpack.c.l.b16 %v23
  %v107 = vunpack.c.h.b16 %v23
  %v108 = vunpack.c.l.b16 %v24
  %v109 = vunpack.c.h.b16 %v24
  %v110 = vunpack.c.l.b16 %v25
  %v111 = vunpack.c.h.b16 %v25
  %v112 = vunpack.c.l.b16 %v26
  %v113 = vunpack.c.h.b16 %v26
  %v114 = vunpack.c.l.b16 %v27
  %v115 = vunpack.c.h.b16 %v27
  %v116 = vpack.c.b16 %v104, %v100
  %v117 = vpack.c.b16 %v105, %v101
  %v118 = vpack.c.b16 %v106, %v102
  %v119 = vpack.c.b16 %v107, %v103
  %v120 = vpack.c.b16 %v112, %v108
  %v121 = vpack.c.b16 %v113, %v109
  %v122 = vpack.c.b16 %v114, %v110
  %v123 = vpack.c.b16 %v115, %v111
  %v196 = vunpack.c.l.b16 %v28
  %v197 = vunpack.c.l.b16 %v29
  %v198 = vunpack.c.l.b16 %v30
  %v199 = vunpack.c.l.b16 %v31
  %v200 = vunpack.c.l.b16 %v32
  %v201 = vunpack.c.l.b16 %v33
  %v202 = vunpack.c.l.b16 %v34
  %v203 = vunpack.c.l.b16 %v35
  %v204 = vunpack.c.l.b16 %v36
  %v205 = vunpack.c.l.b16 %v37
  %v206 = vunpack.c.l.b16 %v38
  %v207 = vunpack.c.l.b16 %v39
  %v208 = vunpack.c.l.b16 %v40
  %v209 = vunpack.c.l.b16 %v41
  %v210 = vunpack.c.l.b16 %v42
  %v211 = vunpack.c.l.b16 %v43
  %v212 = vunpack.c.l.b16 %v44
  %v213 = vunpack.c.l.b16 %v45
  %v214 = vunpack.c.l.b16 %v46
  %v215 = vunpack.c.l.b16 %v47
  %v216 = vunpack.c.l.b16 %v48
  %v217 = vunpack.c.l.b16 %v49
  %v218 = vunpack.c.l.b16 %v50
  %v219 = vunpack.c.l.b16 %v51
  %v220 = vunpack.c.l.b16 %v52
  %v221 = vunpack.c.l.b16 %v53
  %v222 = vunpack.c.l.b16 %v54
  %v223 = vunpack.c.l.b16 %v55
  %v224 = vunpack.c.l.b16 %v56
  %v225 = vunpack.c.l.b16 %v57
  %v226 = vunpack.c.l.b16 %v58
  %v227 = vunpack.c.l.b16 %v59
  %v228 = vunpack.c.l.b16 %v60
  %v229 = vunpack.c.l.b16 %v61
  %v230 = vunpack.c.l.b16 %v62
  %v231 = vunpack.c.l.b16 %v63
  %v232 = vunpack.c.l.b16 %v64
  %v233 = vunpack.c.l.b16 %v65
  %v234 = vunpack.c.l.b16 %v66
  %v235 = vunpack.c.l.b16 %v67
  %v236 = vunpack.c.l.b16 %v68
  %v237 = vunpack.c.l.b16 %v69
  %v238 = vunpack.c.l.b16 %v70
  %v239 = vunpack.c.l.b16 %v71
  %v240 = vunpack.c.l.b16 %v72
  %v241 = vunpack.c.l.b16 %v73
  %v242 = vunpack.c.l.b16 %v74
  %v243 = vunpack.c.l.b16 %v75
  %v244 = vunpack.c.l.b16 %v76
  %v245 = vunpack.c.l.b16 %v77
  %v246 = vunpack.c.l.b16 %v78
  %v247 = vunpack.c.l.b16 %v79
  %v248 = vunpack.c.l.b16 %v80
  %v249 = vunpack.c.l.b16 %v81
  %v250 = vunpack.c.l.b16 %v82
  %v251 = vunpack.c.l.b16 %v83
  %v252 = vunpack.c.l.b16 %v84
  %v253 = vunpack.c.l.b16 %v85
  %v254 = vunpack.c.l.b16 %v86
  %v255 = vunpack.c.l.b16 %v87
  %v256 = vunpack.c.l.b16 %v88
  %v257 = vunpack.c.l.b16 %v89
  %v258 = vunpack.c.l.b16 %v90
  %v259 = vunpack.c.l.b16 %v91
  %v260 = vpack.c.b16 %v197, %v196
  %v261 = vpack.c.b16 %v199, %v198
  %v262 = vpack.c.b16 %v201, %v200
  %v263 = vpack.c.b16 %v203, %v202
  %v264 = vpack.c.b16 %v205, %v204
  %v265 = vpack.c.b16 %v207, %v206
  %v266 = vpack.c.b16 %v209, %v208
  %v267 = vpack.c.b16 %v211, %v210
  %v268 = vpack.c.b16 %v213, %v212
  %v269 = vpack.c.b16 %v215, %v214
  %v270 = vpack.c.b16 %v217, %v216
  %v271 = vpack.c.b16 %v219, %v218
  %v272 = vpack.c.b16 %v221, %v220
  %v273 = vpack.c.b16 %v223, %v222
  %v274 = vpack.c.b16 %v225, %v224
  %v275 = vpack.c.b16 %v227, %v226
  %v276 = vpack.c.b16 %v229, %v228
  %v277 = vpack.c.b16 %v231, %v230
  %v278 = vpack.c.b16 %v233, %v232
  %v279 = vpack.c.b16 %v235, %v234
  %v280 = vpack.c.b16 %v237, %v236
  %v281 = vpack.c.b16 %v239, %v238
  %v282 = vpack.c.b16 %v241, %v240
  %v283 = vpack.c.b16 %v243, %v242
  %v284 = vpack.c.b16 %v245, %v244
  %v285 = vpack.c.b16 %v247, %v246
  %v286 = vpack.c.b16 %v249, %v248
  %v287 = vpack.c.b16 %v251, %v250
  %v288 = vpack.c.b16 %v253, %v252
  %v289 = vpack.c.b16 %v255, %v254
  %v290 = vpack.c.b16 %v257, %v256
  %v291 = vpack.c.b16 %v259, %v258
  %324 = vmatpush.bf16.msra.mxu0 %v267
  %325 = vmatpush.bf16.msra.mxu0 %v266
  %326 = vmatpush.bf16.msra.mxu0 %v265
  %327 = vmatpush.bf16.msra.mxu0 %v264
  %328 = vmatpush.bf16.msra.mxu0 %v263
  %329 = vmatpush.bf16.msra.mxu0 %v262
  %330 = vmatpush.bf16.msra.mxu0 %v261
  %331 = vmatpush.bf16.msra.mxu0 %v260
  %332 = vmatmul.bf16.gmra.mxu0 %v116
  %v333 = vpop.f32.mrf.mxu0
  %v334 = vadd.f32 0.0, %v333
  %v335 = vpop.f32.mrf.mxu0
  %v336 = vadd.f32 0.0, %v335
  %337 = vmatmul.bf16.gmra.mxu0 %v120
  %v338 = vpop.f32.mrf.mxu0
  %v339 = vadd.f32 0.0, %v338
  %v340 = vpop.f32.mrf.mxu0
  %v341 = vadd.f32 0.0, %v340
  %342 = vdwg.mxu0
  %343 = vmatpush.bf16.msra.mxu0 %v275
  %344 = vmatpush.bf16.msra.mxu0 %v274
  %345 = vmatpush.bf16.msra.mxu0 %v273
  %346 = vmatpush.bf16.msra.mxu0 %v272
  %347 = vmatpush.bf16.msra.mxu0 %v271
  %348 = vmatpush.bf16.msra.mxu0 %v270
  %349 = vmatpush.bf16.msra.mxu0 %v269
  %350 = vmatpush.bf16.msra.mxu0 %v268
  %351 = vmatmul.bf16.gmra.mxu0 %v117
  %v352 = vpop.f32.mrf.mxu0
  %v353 = vadd.f32 %v334, %v352
  %v354 = vpop.f32.mrf.mxu0
  %v355 = vadd.f32 %v336, %v354
  %356 = vmatmul.bf16.gmra.mxu0 %v121
  %v357 = vpop.f32.mrf.mxu0
  %v358 = vadd.f32 %v339, %v357
  %v359 = vpop.f32.mrf.mxu0
  %v360 = vadd.f32 %v341, %v359
  %361 = vdwg.mxu0
  %362 = vmatpush.bf16.msra.mxu0 %v283
  %363 = vmatpush.bf16.msra.mxu0 %v282
  %364 = vmatpush.bf16.msra.mxu0 %v281
  %365 = vmatpush.bf16.msra.mxu0 %v280
  %366 = vmatpush.bf16.msra.mxu0 %v279
  %367 = vmatpush.bf16.msra.mxu0 %v278
  %368 = vmatpush.bf16.msra.mxu0 %v277
  %369 = vmatpush.bf16.msra.mxu0 %v276
  %370 = vmatmul.bf16.gmra.mxu0 %v118
  %v371 = vpop.f32.mrf.mxu0
  %v372 = vadd.f32 %v353, %v371
  %v373 = vpop.f32.mrf.mxu0
  %v374 = vadd.f32 %v355, %v373
  %375 = vmatmul.bf16.gmra.mxu0 %v122
  %v376 = vpop.f32.mrf.mxu0
  %v377 = vadd.f32 %v358, %v376
  %v378 = vpop.f32.mrf.mxu0
  %v379 = vadd.f32 %v360, %v378
  %380 = vdwg.mxu0
  %381 = vmatpush.bf16.msra.mxu0 %v291
  %382 = vmatpush.bf16.msra.mxu0 %v290
  %383 = vmatpush.bf16.msra.mxu0 %v289
  %384 = vmatpush.bf16.msra.mxu0 %v288
  %385 = vmatpush.bf16.msra.mxu0 %v287
  %386 = vmatpush.bf16.msra.mxu0 %v286
  %387 = vmatpush.bf16.msra.mxu0 %v285
  %388 = vmatpush.bf16.msra.mxu0 %v284
  %389 = vmatmul.bf16.gmra.mxu0 %v119
  %v390 = vpop.f32.mrf.mxu0
  %v391 = vadd.f32 %v372, %v390
  %v392 = vpop.f32.mrf.mxu0
  %v393 = vadd.f32 %v374, %v392
  %394 = vmatmul.bf16.gmra.mxu0 %v123
  %v395 = vpop.f32.mrf.mxu0
  %v396 = vadd.f32 %v377, %v395
  %v397 = vpop.f32.mrf.mxu0
  %v398 = vadd.f32 %v379, %v397
  %399 = vdwg.mxu0
  %v400 = vpack.c.bf16 %v391, %v391
  %v401 = vpack.c.bf16 %v393, %v393
  %v402 = vpack.c.bf16 %v396, %v396
  %v403 = vpack.c.bf16 %v398, %v398
  %404 = vst [vmem:[%s2] sm:$0xf] %v400
  %405 = vst [vmem:[%s2 + $0x4] sm:$0xf] %v401
  %406 = vst [vmem:[%s2 + $0x8] sm:$0xf] %v402
  %407 = vst [vmem:[%s2 + $0xc] sm:$0xf] %v403
  %v408 = vld [vmem:[%s3] sm:$0x1]
  %v409 = vadd.f32 %v391, %v393
  %v410 = vadd.f32 %v409, %v396
  %v411 = vadd.f32 %v410, %v398
  %v412 = vrot.slane %v411, 4
  %v413 = vadd.f32 %v411, %v412
  %v414 = vrot.slane %v413, 2
  %v415 = vadd.f32 %v413, %v414
  %v416 = vrot.slane %v415, 1
  %v417 = vadd.f32 %v415, %v416
  %v418 = vadd.f32 %v408, %v417
  %419 = vst [vmem:[%s3] sm:$0x1] %v418
  %v420 = vld [vmem:[%s4] sm:$0x1]
  %v421 = vmul.f32 %v391, %v391
  %v422 = vmul.f32 %v393, %v393
  %v423 = vmul.f32 %v396, %v396
  %v424 = vmul.f32 %v398, %v398
  %v425 = vadd.f32 %v421, %v422
  %v426 = vadd.f32 %v425, %v423
  %v427 = vadd.f32 %v426, %v424
  %v428 = vrot.slane %v427, 4
  %v429 = vadd.f32 %v427, %v428
  %v430 = vrot.slane %v429, 2
  %v431 = vadd.f32 %v429, %v430
  %v432 = vrot.slane %v431, 1
  %v433 = vadd.f32 %v431, %v432
  %v434 = vadd.f32 %v420, %v433
  %435 = vst [vmem:[%s4] sm:$0x1] %v434
  // Predicated region
  $region14: #{discriminator_forward.15} parent=0 // pred_check
    _
  $region15: #{discriminator_forward.15} parent=0 // pred_check_branch
    %437 = sbr.rel (0) target = $region17
  $region16: #{discriminator_forward.15} parent=0 // pred_region
    _
  $region17: #{discriminator_forward.15} parent=0 // pred_fallthru
    _
  // Predicated region
  $region18: #{discriminator_forward.15} parent=0 // pred_check
    _
  $region19: #{discriminator_forward.15} parent=0 // pred_check_branch
    %439 = sbr.rel (0) target = $region21
  $region20: #{discriminator_forward.15} parent=0 // pred_region
    _
  $region21: #{discriminator_forward.15} parent=0 // pred_fallthru
    _
  // Predicated region
  $region22: #{discriminator_forward.15} parent=0 // pred_check
    _
  $region23: #{discriminator_forward.15} parent=0 // pred_check_branch
    %441 = sbr.rel (0) target = $region25
  $region24: #{discriminator_forward.15} parent=0 // pred_region
    _
  $region25: #{discriminator_forward.15} parent=0 // pred_fallthru
    _
  // Predicated region
  $region26: #{discriminator_forward.15} parent=0 // pred_check
    _
  $region27: #{discriminator_forward.15} parent=0 // pred_check_branch
    %443 = sbr.rel (0) target = $region29
  $region28: #{discriminator_forward.15} parent=0 // pred_region
    _
  $region29: #{discriminator_forward.15} parent=0 // pred_fallthru
    _
  // Predicated region
  $region30: #{discriminator_forward.15} parent=0 // pred_check
    _
  $region31: #{discriminator_forward.15} parent=0 // pred_check_branch
    %445 = sbr.rel (0) target = $region33
  $region32: #{discriminator_forward.15} parent=0 // pred_region
    _
  $region33: #{discriminator_forward.15} parent=0 // pred_fallthru
    _
  // Predicated region
  $region34: #{discriminator_forward.15} parent=0 // pred_check
    _
  $region35: #{discriminator_forward.15} parent=0 // pred_check_branch
    %447 = sbr.rel (0) target = $region37
  $region36: #{discriminator_forward.15} parent=0 // pred_region
    _
  $region37: #{discriminator_forward.15} parent=0 // pred_fallthru
    _

// kernel: discriminator_forward.17
$region0: #{discriminator_forward.17}
  #allocation0 [shape = 'u32[]', space=smem, size = 0x4, offset = 0x4, fixed_abs, tag = 'smem constant byte address 0x4 - core index']
  #allocation1 [shape = 'u32[72,128]{1,0:T(1,128)}', space=vmem, size = 0x9000, scoped, tag = 'internal scratch']
  %s0 = inlined_call_operand.vmem [shape: bf16[16,1024], index: 0, kind: input, shape index: {}]
  %s1 = inlined_call_operand.vmem [shape: bf16[1024,128], index: 1, kind: input, shape index: {}]
  %s2 = inlined_call_operand.vmem [shape: f32[16,128], index: 2, kind: output, shape index: {}]
  %s3 = sld [smem:[#allocation0]]
  $region18: #{discriminator_forward.17} parent=0
    _
  %s5 = ssub.s32 1, %s3
  %s6 = scalar_select 0, %s5, %s3
  // Predicated region
  $region2: #{discriminator_forward.17} parent=0 // pred_check
    _
  $region3: #{discriminator_forward.17} parent=0 // pred_check_branch
    %8 = sbr.rel (0) target = $region5
  $region4: #{discriminator_forward.17} parent=0 // pred_region
    _
  $region5: #{discriminator_forward.17} parent=0 // pred_fallthru
    _
  // Predicated region
  $region6: #{discriminator_forward.17} parent=0 // pred_check
    _
  $region7: #{discriminator_forward.17} parent=0 // pred_check_branch
    %10 = sbr.rel (0) target = $region9
  $region8: #{discriminator_forward.17} parent=0 // pred_region
    _
  $region9: #{discriminator_forward.17} parent=0 // pred_fallthru
    _
  %v11 = vld [vmem:[%s0] sm:$0xff]
  %v12 = vld [vmem:[%s0 + $0x8] sm:$0xff]
  %v13 = vld [vmem:[%s0 + $0x10] sm:$0xff]
  %v14 = vld [vmem:[%s0 + $0x18] sm:$0xff]
  %v15 = vld [vmem:[%s0 + $0x20] sm:$0xff]
  %v16 = vld [vmem:[%s0 + $0x28] sm:$0xff]
  %v17 = vld [vmem:[%s0 + $0x30] sm:$0xff]
  %v18 = vld [vmem:[%s0 + $0x38] sm:$0xff]
  %v19 = vld [vmem:[%s1] sm:$0xf]
  %v20 = vld [vmem:[%s1 + $0x4] sm:$0xf]
  %v21 = vld [vmem:[%s1 + $0x8] sm:$0xf]
  %v22 = vld [vmem:[%s1 + $0xc] sm:$0xf]
  %v23 = vld [vmem:[%s1 + $0x10] sm:$0xf]
  %v24 = vld [vmem:[%s1 + $0x14] sm:$0xf]
  %v25 = vld [vmem:[%s1 + $0x18] sm:$0xf]
  %v26 = vld [vmem:[%s1 + $0x1c] sm:$0xf]
  %v27 = vld [vmem:[%s1 + $0x20] sm:$0xf]
  %v28 = vld [vmem:[%s1 + $0x24] sm:$0xf]
  %v29 = vld [vmem:[%s1 + $0x28] sm:$0xf]
  %v30 = vld [vmem:[%s1 + $0x2c] sm:$0xf]
  %v31 = vld [vmem:[%s1 + $0x30] sm:$0xf]
  %v32 = vld [vmem:[%s1 + $0x34] sm:$0xf]
  %v33 = vld [vmem:[%s1 + $0x38] sm:$0xf]
  %v34 = vld [vmem:[%s1 + $0x3c] sm:$0xf]
  %v35 = vld [vmem:[%s1 + $0x40] sm:$0xf]
  %v36 = vld [vmem:[%s1 + $0x44] sm:$0xf]
  %v37 = vld [vmem:[%s1 + $0x48] sm:$0xf]
  %v38 = vld [vmem:[%s1 + $0x4c] sm:$0xf]
  %v39 = vld [vmem:[%s1 + $0x50] sm:$0xf]
  %v40 = vld [vmem:[%s1 + $0x54] sm:$0xf]
  %v41 = vld [vmem:[%s1 + $0x58] sm:$0xf]
  %v42 = vld [vmem:[%s1 + $0x5c] sm:$0xf]
  %v43 = vld [vmem:[%s1 + $0x60] sm:$0xf]
  %v44 = vld [vmem:[%s1 + $0x64] sm:$0xf]
  %v45 = vld [vmem:[%s1 + $0x68] sm:$0xf]
  %v46 = vld [vmem:[%s1 + $0x6c] sm:$0xf]
  %v47 = vld [vmem:[%s1 + $0x70] sm:$0xf]
  %v48 = vld [vmem:[%s1 + $0x74] sm:$0xf]
  %v49 = vld [vmem:[%s1 + $0x78] sm:$0xf]
  %v50 = vld [vmem:[%s1 + $0x7c] sm:$0xf]
  %v51 = vld [vmem:[%s1 + $0x80] sm:$0xf]
  %v52 = vld [vmem:[%s1 + $0x84] sm:$0xf]
  %v53 = vld [vmem:[%s1 + $0x88] sm:$0xf]
  %v54 = vld [vmem:[%s1 + $0x8c] sm:$0xf]
  %v55 = vld [vmem:[%s1 + $0x90] sm:$0xf]
  %v56 = vld [vmem:[%s1 + $0x94] sm:$0xf]
  %v57 = vld [vmem:[%s1 + $0x98] sm:$0xf]
  %v58 = vld [vmem:[%s1 + $0x9c] sm:$0xf]
  %v59 = vld [vmem:[%s1 + $0xa0] sm:$0xf]
  %v60 = vld [vmem:[%s1 + $0xa4] sm:$0xf]
  %v61 = vld [vmem:[%s1 + $0xa8] sm:$0xf]
  %v62 = vld [vmem:[%s1 + $0xac] sm:$0xf]
  %v63 = vld [vmem:[%s1 + $0xb0] sm:$0xf]
  %v64 = vld [vmem:[%s1 + $0xb4] sm:$0xf]
  %v65 = vld [vmem:[%s1 + $0xb8] sm:$0xf]
  %v66 = vld [vmem:[%s1 + $0xbc] sm:$0xf]
  %v67 = vld [vmem:[%s1 + $0xc0] sm:$0xf]
  %v68 = vld [vmem:[%s1 + $0xc4] sm:$0xf]
  %v69 = vld [vmem:[%s1 + $0xc8] sm:$0xf]
  %v70 = vld [vmem:[%s1 + $0xcc] sm:$0xf]
  %v71 = vld [vmem:[%s1 + $0xd0] sm:$0xf]
  %v72 = vld [vmem:[%s1 + $0xd4] sm:$0xf]
  %v73 = vld [vmem:[%s1 + $0xd8] sm:$0xf]
  %v74 = vld [vmem:[%s1 + $0xdc] sm:$0xf]
  %v75 = vld [vmem:[%s1 + $0xe0] sm:$0xf]
  %v76 = vld [vmem:[%s1 + $0xe4] sm:$0xf]
  %v77 = vld [vmem:[%s1 + $0xe8] sm:$0xf]
  %v78 = vld [vmem:[%s1 + $0xec] sm:$0xf]
  %v79 = vld [vmem:[%s1 + $0xf0] sm:$0xf]
  %v80 = vld [vmem:[%s1 + $0xf4] sm:$0xf]
  %v81 = vld [vmem:[%s1 + $0xf8] sm:$0xf]
  %v82 = vld [vmem:[%s1 + $0xfc] sm:$0xf]
  %v83 = vld [vmem:[%s1 + $0x100] sm:$0xf]
  %v84 = vld [vmem:[%s1 + $0x104] sm:$0xf]
  %v85 = vld [vmem:[%s1 + $0x108] sm:$0xf]
  %v86 = vld [vmem:[%s1 + $0x10c] sm:$0xf]
  %v87 = vld [vmem:[%s1 + $0x110] sm:$0xf]
  %v88 = vld [vmem:[%s1 + $0x114] sm:$0xf]
  %v89 = vld [vmem:[%s1 + $0x118] sm:$0xf]
  %v90 = vld [vmem:[%s1 + $0x11c] sm:$0xf]
  %v91 = vld [vmem:[%s1 + $0x120] sm:$0xf]
  %v92 = vld [vmem:[%s1 + $0x124] sm:$0xf]
  %v93 = vld [vmem:[%s1 + $0x128] sm:$0xf]
  %v94 = vld [vmem:[%s1 + $0x12c] sm:$0xf]
  %v95 = vld [vmem:[%s1 + $0x130] sm:$0xf]
  %v96 = vld [vmem:[%s1 + $0x134] sm:$0xf]
  %v97 = vld [vmem:[%s1 + $0x138] sm:$0xf]
  %v98 = vld [vmem:[%s1 + $0x13c] sm:$0xf]
  %v99 = vld [vmem:[%s1 + $0x140] sm:$0xf]
  %v100 = vld [vmem:[%s1 + $0x144] sm:$0xf]
  %v101 = vld [vmem:[%s1 + $0x148] sm:$0xf]
  %v102 = vld [vmem:[%s1 + $0x14c] sm:$0xf]
  %v103 = vld [vmem:[%s1 + $0x150] sm:$0xf]
  %v104 = vld [vmem:[%s1 + $0x154] sm:$0xf]
  %v105 = vld [vmem:[%s1 + $0x158] sm:$0xf]
  %v106 = vld [vmem:[%s1 + $0x15c] sm:$0xf]
  %v107 = vld [vmem:[%s1 + $0x160] sm:$0xf]
  %v108 = vld [vmem:[%s1 + $0x164] sm:$0xf]
  %v109 = vld [vmem:[%s1 + $0x168] sm:$0xf]
  %v110 = vld [vmem:[%s1 + $0x16c] sm:$0xf]
  %v111 = vld [vmem:[%s1 + $0x170] sm:$0xf]
  %v112 = vld [vmem:[%s1 + $0x174] sm:$0xf]
  %v113 = vld [vmem:[%s1 + $0x178] sm:$0xf]
  %v114 = vld [vmem:[%s1 + $0x17c] sm:$0xf]
  %v115 = vld [vmem:[%s1 + $0x180] sm:$0xf]
  %v116 = vld [vmem:[%s1 + $0x184] sm:$0xf]
  %v117 = vld [vmem:[%s1 + $0x188] sm:$0xf]
  %v118 = vld [vmem:[%s1 + $0x18c] sm:$0xf]
  %v119 = vld [vmem:[%s1 + $0x190] sm:$0xf]
  %v120 = vld [vmem:[%s1 + $0x194] sm:$0xf]
  %v121 = vld [vmem:[%s1 + $0x198] sm:$0xf]
  %v122 = vld [vmem:[%s1 + $0x19c] sm:$0xf]
  %v123 = vld [vmem:[%s1 + $0x1a0] sm:$0xf]
  %v124 = vld [vmem:[%s1 + $0x1a4] sm:$0xf]
  %v125 = vld [vmem:[%s1 + $0x1a8] sm:$0xf]
  %v126 = vld [vmem:[%s1 + $0x1ac] sm:$0xf]
  %v127 = vld [vmem:[%s1 + $0x1b0] sm:$0xf]
  %v128 = vld [vmem:[%s1 + $0x1b4] sm:$0xf]
  %v129 = vld [vmem:[%s1 + $0x1b8] sm:$0xf]
  %v130 = vld [vmem:[%s1 + $0x1bc] sm:$0xf]
  %v131 = vld [vmem:[%s1 + $0x1c0] sm:$0xf]
  %v132 = vld [vmem:[%s1 + $0x1c4] sm:$0xf]
  %v133 = vld [vmem:[%s1 + $0x1c8] sm:$0xf]
  %v134 = vld [vmem:[%s1 + $0x1cc] sm:$0xf]
  %v135 = vld [vmem:[%s1 + $0x1d0] sm:$0xf]
  %v136 = vld [vmem:[%s1 + $0x1d4] sm:$0xf]
  %v137 = vld [vmem:[%s1 + $0x1d8] sm:$0xf]
  %v138 = vld [vmem:[%s1 + $0x1dc] sm:$0xf]
  %v139 = vld [vmem:[%s1 + $0x1e0] sm:$0xf]
  %v140 = vld [vmem:[%s1 + $0x1e4] sm:$0xf]
  %v141 = vld [vmem:[%s1 + $0x1e8] sm:$0xf]
  %v142 = vld [vmem:[%s1 + $0x1ec] sm:$0xf]
  %v143 = vld [vmem:[%s1 + $0x1f0] sm:$0xf]
  %v144 = vld [vmem:[%s1 + $0x1f4] sm:$0xf]
  %v145 = vld [vmem:[%s1 + $0x1f8] sm:$0xf]
  %v146 = vld [vmem:[%s1 + $0x1fc] sm:$0xf]
  %v155 = vunpack.c.l.b16 %v11
  %v156 = vunpack.c.h.b16 %v11
  %v157 = vunpack.c.l.b16 %v12
  %v158 = vunpack.c.h.b16 %v12
  %v159 = vunpack.c.l.b16 %v13
  %v160 = vunpack.c.h.b16 %v13
  %v161 = vunpack.c.l.b16 %v14
  %v162 = vunpack.c.h.b16 %v14
  %v163 = vunpack.c.l.b16 %v15
  %v164 = vunpack.c.h.b16 %v15
  %v165 = vunpack.c.l.b16 %v16
  %v166 = vunpack.c.h.b16 %v16
  %v167 = vunpack.c.l.b16 %v17
  %v168 = vunpack.c.h.b16 %v17
  %v169 = vunpack.c.l.b16 %v18
  %v170 = vunpack.c.h.b16 %v18
  %v171 = vpack.c.b16 %v163, %v155
  %v172 = vpack.c.b16 %v164, %v156
  %v173 = vpack.c.b16 %v165, %v157
  %v174 = vpack.c.b16 %v166, %v158
  %v175 = vpack.c.b16 %v167, %v159
  %v176 = vpack.c.b16 %v168, %v160
  %v177 = vpack.c.b16 %v169, %v161
  %v178 = vpack.c.b16 %v170, %v162
  %v315 = vunpack.c.l.b16 %v19
  %v316 = vunpack.c.l.b16 %v20
  %v317 = vunpack.c.l.b16 %v21
  %v318 = vunpack.c.l.b16 %v22
  %v319 = vunpack.c.l.b16 %v23
  %v320 = vunpack.c.l.b16 %v24
  %v321 = vunpack.c.l.b16 %v25
  %v322 = vunpack.c.l.b16 %v26
  %v323 = vunpack.c.l.b16 %v27
  %v324 = vunpack.c.l.b16 %v28
  %v325 = vunpack.c.l.b16 %v29
  %v326 = vunpack.c.l.b16 %v30
  %v327 = vunpack.c.l.b16 %v31
  %v328 = vunpack.c.l.b16 %v32
  %v329 = vunpack.c.l.b16 %v33
  %v330 = vunpack.c.l.b16 %v34
  %v331 = vunpack.c.l.b16 %v35
  %v332 = vunpack.c.l.b16 %v36
  %v333 = vunpack.c.l.b16 %v37
  %v334 = vunpack.c.l.b16 %v38
  %v335 = vunpack.c.l.b16 %v39
  %v336 = vunpack.c.l.b16 %v40
  %v337 = vunpack.c.l.b16 %v41
  %v338 = vunpack.c.l.b16 %v42
  %v339 = vunpack.c.l.b16 %v43
  %v340 = vunpack.c.l.b16 %v44
  %v341 = vunpack.c.l.b16 %v45
  %v342 = vunpack.c.l.b16 %v46
  %v343 = vunpack.c.l.b16 %v47
  %v344 = vunpack.c.l.b16 %v48
  %v345 = vunpack.c.l.b16 %v49
  %v346 = vunpack.c.l.b16 %v50
  %v347 = vunpack.c.l.b16 %v51
  %v348 = vunpack.c.l.b16 %v52
  %v349 = vunpack.c.l.b16 %v53
  %v350 = vunpack.c.l.b16 %v54
  %v351 = vunpack.c.l.b16 %v55
  %v352 = vunpack.c.l.b16 %v56
  %v353 = vunpack.c.l.b16 %v57
  %v354 = vunpack.c.l.b16 %v58
  %v355 = vunpack.c.l.b16 %v59
  %v356 = vunpack.c.l.b16 %v60
  %v357 = vunpack.c.l.b16 %v61
  %v358 = vunpack.c.l.b16 %v62
  %v359 = vunpack.c.l.b16 %v63
  %v360 = vunpack.c.l.b16 %v64
  %v361 = vunpack.c.l.b16 %v65
  %v362 = vunpack.c.l.b16 %v66
  %v363 = vunpack.c.l.b16 %v67
  %v364 = vunpack.c.l.b16 %v68
  %v365 = vunpack.c.l.b16 %v69
  %v366 = vunpack.c.l.b16 %v70
  %v367 = vunpack.c.l.b16 %v71
  %v368 = vunpack.c.l.b16 %v72
  %v369 = vunpack.c.l.b16 %v73
  %v370 = vunpack.c.l.b16 %v74
  %v371 = vunpack.c.l.b16 %v75
  %v372 = vunpack.c.l.b16 %v76
  %v373 = vunpack.c.l.b16 %v77
  %v374 = vunpack.c.l.b16 %v78
  %v375 = vunpack.c.l.b16 %v79
  %v376 = vunpack.c.l.b16 %v80
  %v377 = vunpack.c.l.b16 %v81
  %v378 = vunpack.c.l.b16 %v82
  %v379 = vunpack.c.l.b16 %v83
  %v380 = vunpack.c.l.b16 %v84
  %v381 = vunpack.c.l.b16 %v85
  %v382 = vunpack.c.l.b16 %v86
  %v383 = vunpack.c.l.b16 %v87
  %v384 = vunpack.c.l.b16 %v88
  %v385 = vunpack.c.l.b16 %v89
  %v386 = vunpack.c.l.b16 %v90
  %v387 = vunpack.c.l.b16 %v91
  %v388 = vunpack.c.l.b16 %v92
  %v389 = vunpack.c.l.b16 %v93
  %v390 = vunpack.c.l.b16 %v94
  %v391 = vunpack.c.l.b16 %v95
  %v392 = vunpack.c.l.b16 %v96
  %v393 = vunpack.c.l.b16 %v97
  %v394 = vunpack.c.l.b16 %v98
  %v395 = vunpack.c.l.b16 %v99
  %v396 = vunpack.c.l.b16 %v100
  %v397 = vunpack.c.l.b16 %v101
  %v398 = vunpack.c.l.b16 %v102
  %v399 = vunpack.c.l.b16 %v103
  %v400 = vunpack.c.l.b16 %v104
  %v401 = vunpack.c.l.b16 %v105
  %v402 = vunpack.c.l.b16 %v106
  %v403 = vunpack.c.l.b16 %v107
  %v404 = vunpack.c.l.b16 %v108
  %v405 = vunpack.c.l.b16 %v109
  %v406 = vunpack.c.l.b16 %v110
  %v407 = vunpack.c.l.b16 %v111
  %v408 = vunpack.c.l.b16 %v112
  %v409 = vunpack.c.l.b16 %v113
  %v410 = vunpack.c.l.b16 %v114
  %v411 = vunpack.c.l.b16 %v115
  %v412 = vunpack.c.l.b16 %v116
  %v413 = vunpack.c.l.b16 %v117
  %v414 = vunpack.c.l.b16 %v118
  %v415 = vunpack.c.l.b16 %v119
  %v416 = vunpack.c.l.b16 %v120
  %v417 = vunpack.c.l.b16 %v121
  %v418 = vunpack.c.l.b16 %v122
  %v419 = vunpack.c.l.b16 %v123
  %v420 = vunpack.c.l.b16 %v124
  %v421 = vunpack.c.l.b16 %v125
  %v422 = vunpack.c.l.b16 %v126
  %v423 = vunpack.c.l.b16 %v127
  %v424 = vunpack.c.l.b16 %v128
  %v425 = vunpack.c.l.b16 %v129
  %v426 = vunpack.c.l.b16 %v130
  %v427 = vunpack.c.l.b16 %v131
  %v428 = vunpack.c.l.b16 %v132
  %v429 = vunpack.c.l.b16 %v133
  %v430 = vunpack.c.l.b16 %v134
  %v431 = vunpack.c.l.b16 %v135
  %v432 = vunpack.c.l.b16 %v136
  %v433 = vunpack.c.l.b16 %v137
  %v434 = vunpack.c.l.b16 %v138
  %v435 = vunpack.c.l.b16 %v139
  %v436 = vunpack.c.l.b16 %v140
  %v437 = vunpack.c.l.b16 %v141
  %v438 = vunpack.c.l.b16 %v142
  %v439 = vunpack.c.l.b16 %v143
  %v440 = vunpack.c.l.b16 %v144
  %v441 = vunpack.c.l.b16 %v145
  %v442 = vunpack.c.l.b16 %v146
  %v443 = vpack.c.b16 %v316, %v315
  %v444 = vpack.c.b16 %v318, %v317
  %v445 = vpack.c.b16 %v320, %v319
  %v446 = vpack.c.b16 %v322, %v321
  %v447 = vpack.c.b16 %v324, %v323
  %v448 = vpack.c.b16 %v326, %v325
  %v449 = vpack.c.b16 %v328, %v327
  %v450 = vpack.c.b16 %v330, %v329
  %v451 = vpack.c.b16 %v332, %v331
  %v452 = vpack.c.b16 %v334, %v333
  %v453 = vpack.c.b16 %v336, %v335
  %v454 = vpack.c.b16 %v338, %v337
  %v455 = vpack.c.b16 %v340, %v339
  %v456 = vpack.c.b16 %v342, %v341
  %v457 = vpack.c.b16 %v344, %v343
  %v458 = vpack.c.b16 %v346, %v345
  %v459 = vpack.c.b16 %v348, %v347
  %v460 = vpack.c.b16 %v350, %v349
  %v461 = vpack.c.b16 %v352, %v351
  %v462 = vpack.c.b16 %v354, %v353
  %v463 = vpack.c.b16 %v356, %v355
  %v464 = vpack.c.b16 %v358, %v357
  %v465 = vpack.c.b16 %v360, %v359
  %v466 = vpack.c.b16 %v362, %v361
  %v467 = vpack.c.b16 %v364, %v363
  %v468 = vpack.c.b16 %v366, %v365
  %v469 = vpack.c.b16 %v368, %v367
  %v470 = vpack.c.b16 %v370, %v369
  %v471 = vpack.c.b16 %v372, %v371
  %v472 = vpack.c.b16 %v374, %v373
  %v473 = vpack.c.b16 %v376, %v375
  %v474 = vpack.c.b16 %v378, %v377
  %v475 = vpack.c.b16 %v380, %v379
  %v476 = vpack.c.b16 %v382, %v381
  %v477 = vpack.c.b16 %v384, %v383
  %v478 = vpack.c.b16 %v386, %v385
  %v479 = vpack.c.b16 %v388, %v387
  %v480 = vpack.c.b16 %v390, %v389
  %v481 = vpack.c.b16 %v392, %v391
  %v482 = vpack.c.b16 %v394, %v393
  %v483 = vpack.c.b16 %v396, %v395
  %v484 = vpack.c.b16 %v398, %v397
  %v485 = vpack.c.b16 %v400, %v399
  %v486 = vpack.c.b16 %v402, %v401
  %v487 = vpack.c.b16 %v404, %v403
  %v488 = vpack.c.b16 %v406, %v405
  %v489 = vpack.c.b16 %v408, %v407
  %v490 = vpack.c.b16 %v410, %v409
  %v491 = vpack.c.b16 %v412, %v411
  %v492 = vpack.c.b16 %v414, %v413
  %v493 = vpack.c.b16 %v416, %v415
  %v494 = vpack.c.b16 %v418, %v417
  %v495 = vpack.c.b16 %v420, %v419
  %v496 = vpack.c.b16 %v422, %v421
  %v497 = vpack.c.b16 %v424, %v423
  %v498 = vpack.c.b16 %v426, %v425
  %v499 = vpack.c.b16 %v428, %v427
  %v500 = vpack.c.b16 %v430, %v429
  %v501 = vpack.c.b16 %v432, %v431
  %v502 = vpack.c.b16 %v434, %v433
  %v503 = vpack.c.b16 %v436, %v435
  %v504 = vpack.c.b16 %v438, %v437
  %v505 = vpack.c.b16 %v440, %v439
  %v506 = vpack.c.b16 %v442, %v441
  %571 = vmatpush.bf16.msra.mxu0 %v450
  %572 = vmatpush.bf16.msra.mxu0 %v449
  %573 = vmatpush.bf16.msra.mxu0 %v448
  %574 = vmatpush.bf16.msra.mxu0 %v447
  %575 = vmatpush.bf16.msra.mxu0 %v446
  %576 = vmatpush.bf16.msra.mxu0 %v445
  %577 = vmatpush.bf16.msra.mxu0 %v444
  %578 = vmatpush.bf16.msra.mxu0 %v443
  %579 = vmatmul.bf16.gmra.mxu0 %v171
  %v580 = vpop.f32.mrf.mxu0
  %v581 = vadd.f32 0.0, %v580
  %v582 = vpop.f32.mrf.mxu0
  %v583 = vadd.f32 0.0, %v582
  %584 = vdwg.mxu0
  %585 = vmatpush.bf16.msra.mxu0 %v458
  %586 = vmatpush.bf16.msra.mxu0 %v457
  %587 = vmatpush.bf16.msra.mxu0 %v456
  %588 = vmatpush.bf16.msra.mxu0 %v455
  %589 = vmatpush.bf16.msra.mxu0 %v454
  %590 = vmatpush.bf16.msra.mxu0 %v453
  %591 = vmatpush.bf16.msra.mxu0 %v452
  %592 = vmatpush.bf16.msra.mxu0 %v451
  %593 = vmatmul.bf16.gmra.mxu0 %v172
  %v594 = vpop.f32.mrf.mxu0
  %v595 = vadd.f32 %v581, %v594
  %v596 = vpop.f32.mrf.mxu0
  %v597 = vadd.f32 %v583, %v596
  %598 = vdwg.mxu0
  %599 = vmatpush.bf16.msra.mxu0 %v466
  %600 = vmatpush.bf16.msra.mxu0 %v465
  %601 = vmatpush.bf16.msra.mxu0 %v464
  %602 = vmatpush.bf16.msra.mxu0 %v463
  %603 = vmatpush.bf16.msra.mxu0 %v462
  %604 = vmatpush.bf16.msra.mxu0 %v461
  %605 = vmatpush.bf16.msra.mxu0 %v460
  %606 = vmatpush.bf16.msra.mxu0 %v459
  %607 = vmatmul.bf16.gmra.mxu0 %v173
  %v608 = vpop.f32.mrf.mxu0
  %v609 = vadd.f32 %v595, %v608
  %v610 = vpop.f32.mrf.mxu0
  %v611 = vadd.f32 %v597, %v610
  %612 = vdwg.mxu0
  %613 = vmatpush.bf16.msra.mxu0 %v474
  %614 = vmatpush.bf16.msra.mxu0 %v473
  %615 = vmatpush.bf16.msra.mxu0 %v472
  %616 = vmatpush.bf16.msra.mxu0 %v471
  %617 = vmatpush.bf16.msra.mxu0 %v470
  %618 = vmatpush.bf16.msra.mxu0 %v469
  %619 = vmatpush.bf16.msra.mxu0 %v468
  %620 = vmatpush.bf16.msra.mxu0 %v467
  %621 = vmatmul.bf16.gmra.mxu0 %v174
  %v622 = vpop.f32.mrf.mxu0
  %v623 = vadd.f32 %v609, %v622
  %v624 = vpop.f32.mrf.mxu0
  %v625 = vadd.f32 %v611, %v624
  %626 = vdwg.mxu0
  %627 = vmatpush.bf16.msra.mxu0 %v482
  %628 = vmatpush.bf16.msra.mxu0 %v481
  %629 = vmatpush.bf16.msra.mxu0 %v480
  %630 = vmatpush.bf16.msra.mxu0 %v479
  %631 = vmatpush.bf16.msra.mxu0 %v478
  %632 = vmatpush.bf16.msra.mxu0 %v477
  %633 = vmatpush.bf16.msra.mxu0 %v476
  %634 = vmatpush.bf16.msra.mxu0 %v475
  %635 = vmatmul.bf16.gmra.mxu0 %v175
  %v636 = vpop.f32.mrf.mxu0
  %v637 = vadd.f32 %v623, %v636
  %v638 = vpop.f32.mrf.mxu0
  %v639 = vadd.f32 %v625, %v638
  %640 = vdwg.mxu0
  %641 = vmatpush.bf16.msra.mxu0 %v490
  %642 = vmatpush.bf16.msra.mxu0 %v489
  %643 = vmatpush.bf16.msra.mxu0 %v488
  %644 = vmatpush.bf16.msra.mxu0 %v487
  %645 = vmatpush.bf16.msra.mxu0 %v486
  %646 = vmatpush.bf16.msra.mxu0 %v485
  %647 = vmatpush.bf16.msra.mxu0 %v484
  %648 = vmatpush.bf16.msra.mxu0 %v483
  %649 = vmatmul.bf16.gmra.mxu0 %v176
  %v650 = vpop.f32.mrf.mxu0
  %v651 = vadd.f32 %v637, %v650
  %v652 = vpop.f32.mrf.mxu0
  %v653 = vadd.f32 %v639, %v652
  %654 = vdwg.mxu0
  %655 = vmatpush.bf16.msra.mxu0 %v498
  %656 = vmatpush.bf16.msra.mxu0 %v497
  %657 = vmatpush.bf16.msra.mxu0 %v496
  %658 = vmatpush.bf16.msra.mxu0 %v495
  %659 = vmatpush.bf16.msra.mxu0 %v494
  %660 = vmatpush.bf16.msra.mxu0 %v493
  %661 = vmatpush.bf16.msra.mxu0 %v492
  %662 = vmatpush.bf16.msra.mxu0 %v491
  %663 = vmatmul.bf16.gmra.mxu0 %v177
  %v664 = vpop.f32.mrf.mxu0
  %v665 = vadd.f32 %v651, %v664
  %v666 = vpop.f32.mrf.mxu0
  %v667 = vadd.f32 %v653, %v666
  %668 = vdwg.mxu0
  %669 = vmatpush.bf16.msra.mxu0 %v506
  %670 = vmatpush.bf16.msra.mxu0 %v505
  %671 = vmatpush.bf16.msra.mxu0 %v504
  %672 = vmatpush.bf16.msra.mxu0 %v503
  %673 = vmatpush.bf16.msra.mxu0 %v502
  %674 = vmatpush.bf16.msra.mxu0 %v501
  %675 = vmatpush.bf16.msra.mxu0 %v500
  %676 = vmatpush.bf16.msra.mxu0 %v499
  %677 = vmatmul.bf16.gmra.mxu0 %v178
  %v678 = vpop.f32.mrf.mxu0
  %v679 = vadd.f32 %v665, %v678
  %v680 = vpop.f32.mrf.mxu0
  %v681 = vadd.f32 %v667, %v680
  %682 = vdwg.mxu0
  %v683 = vxor.u32 %v679, 2147483648
  %v684 = vxor.u32 %v681, 2147483648
  %v685 = vmul.f32 %v683, 1.442695
  %v686 = vpow.pop %v685
  %v687 = vmul.f32 %v684, 1.442695
  %v688 = vpow.pop %v687
  %v689 = vadd.f32 %v686, 1.0
  %v690 = vadd.f32 %v688, 1.0
  %v691 = vrcp.pop %v689
  %v692 = vmul.f32 %v689, %v691
  %v693 = vsub.f32 1.0, %v692
  %v694 = vmul.f32 %v691, %v693
  %v695 = vadd.f32 %v691, %v694
  %vm696 = vweird.f32 %v689
  %vm697 = vweird.f32 %v691
  %vm698 = vmor %vm696, %vm697
  %v699 = vsel %vm698, %v691, %v695
  %v700 = vand.u32 2147483647, %v689
  %vm701 = vcmp.eq.f32.partialorder %v700, 8.507059e+37
  %v702 = vand.u32 %v689, 2147483648
  %v703 = vor.u32 1.1754944e-38, %v702
  %v704 = vsel %vm701, %v703, %v699
  %v705 = vmul.f32 1.0, %v704
  %v706 = vrcp.pop %v690
  %v707 = vmul.f32 %v690, %v706
  %v708 = vsub.f32 1.0, %v707
  %v709 = vmul.f32 %v706, %v708
  %v710 = vadd.f32 %v706, %v709
  %vm711 = vweird.f32 %v690
  %vm712 = vweird.f32 %v706
  %vm713 = vmor %vm711, %vm712
  %v714 = vsel %vm713, %v706, %v710
  %v715 = vand.u32 2147483647, %v690
  %vm716 = vcmp.eq.f32.partialorder %v715, 8.507059e+37
  %v717 = vand.u32 %v690, 2147483648
  %v718 = vor.u32 1.1754944e-38, %v717
  %v719 = vsel %vm716, %v718, %v714
  %v720 = vmul.f32 1.0, %v719
  %721 = vst [vmem:[%s2] sm:$0xff] %v705
  %722 = vst [vmem:[%s2 + $0x8] sm:$0xff] %v720
  // Predicated region
  $region10: #{discriminator_forward.17} parent=0 // pred_check
    _
  $region11: #{discriminator_forward.17} parent=0 // pred_check_branch
    %724 = sbr.rel (0) target = $region13
  $region12: #{discriminator_forward.17} parent=0 // pred_region
    _
  $region13: #{discriminator_forward.17} parent=0 // pred_fallthru
    _
  // Predicated region
  $region14: #{discriminator_forward.17} parent=0 // pred_check
    _
  $region15: #{discriminator_forward.17} parent=0 // pred_check_branch
    %726 = sbr.rel (0) target = $region17
  $region16: #{discriminator_forward.17} parent=0 // pred_region
    _
  $region17: #{discriminator_forward.17} parent=0 // pred_fallthru
    _

</llo_original>
